<compile_context>
chip_gen: v5e
topology: v5e:2x2
jax: 0.10.0
libtpu: 0.0.40
codegen_flags: <defaults>
</compile_context>

<pallas_src>
import functools
import math

import jax
import jax.numpy as jnp
from jax.experimental import pallas as pl
from jax.experimental.pallas import tpu as pltpu

EPS = 1e-5                       # nn.BatchNorm2d default eps
LANE = 128                       # TPU lane width
VMEM_LIMIT = 64 * 1024 * 1024    # safe on v5e/v6e (128 MiB) and v7x (64 MiB)


def _rup(v, m):
    return (v + m - 1) // m * m


def _pad_last(a, n):
    return jnp.pad(a, [(0, 0)] * (a.ndim - 1) + [(0, n - a.shape[-1])])


# ---------------------------------------------------------------------------
# Glue: phase-merged activation layout consumed by the conv kernels
# (only used for the block's external input: conv1 and the 1x1 skip conv).
# ---------------------------------------------------------------------------
def _phase_merge(x_hwnc, stride, pad, kw_size, wo):
    """(H, W, N, C) -> (H + 2*pad, stride*Wq*N, C) bf16.

    W is zero-padded, split into `stride` phases (column j of phase p is padded
    column p + stride*j), each phase cropped/zero-padded to Wq columns, and
    (phase, w, n) merged into one row axis so conv tap (kh, kw) is a contiguous
    row range [((kw % stride)*Wq + kw//stride)*N, +Wo*N).
    """
    x = jnp.pad(x_hwnc, ((pad, pad), (pad, pad), (0, 0), (0, 0)))
    hx, _, n, c = x.shape
    wq = wo + (kw_size - 1) // stride
    phases = []
    for p in range(stride):
        ph = x[:, p::stride, :, :]
        if ph.shape[1] < wq:
            ph = jnp.pad(ph, ((0, 0), (0, wq - ph.shape[1]), (0, 0), (0, 0)))
        else:
            ph = ph[:, :wq, :, :]
        phases.append(ph)
    xq = jnp.stack(phases, axis=1)                     # (Hx, s, Wq, N, C)
    return xq.reshape(hx, stride * wq * n, c).astype(jnp.bfloat16)


# ---------------------------------------------------------------------------
# Pass 1: conv (KHxKW, stride) + bias -> bf16 y rows + f32 BN partial stats.
# kw taps folded into the MXU contraction, kh accumulated into VMEM scratch.
# ---------------------------------------------------------------------------
def _make_conv_pass1_kernel(kh_size, kw_size, stride, wq, wo, n_batch, base_off):
    m_row = wo * n_batch

    def kernel(*refs):
        x_refs = refs[:kh_size]
        w_ref, b_ref = refs[kh_size], refs[kh_size + 1]
        y_ref, stats_ref = refs[kh_size + 2], refs[kh_size + 3]
        acc_ref = refs[kh_size + 4]

        def taps(kh):
            slabs = []
            for kw in range(kw_size):
                p, q = kw % stride, kw // stride
                off = base_off + (p * wq + q) * n_batch
                slabs.append(x_refs[kh][0, pl.ds(off, m_row), :])   # (M, Cin) bf16
            if len(slabs) == 1:
                return slabs[0]
            return jnp.concatenate(slabs, axis=-1)                  # (M, kw*Cin)

        acc_ref[...] = jnp.dot(taps(0), w_ref[0],
                               preferred_element_type=jnp.float32)
        for kh in range(1, kh_size):
            acc_ref[...] += jnp.dot(taps(kh), w_ref[kh],
                                    preferred_element_type=jnp.float32)

        y = acc_ref[...] + b_ref[...]                    # f32 (M, Cout-tile)
        y_ref[0] = y.astype(y_ref.dtype)                 # bf16 HBM stream
        s1 = jnp.sum(y, axis=0, keepdims=True)           # stats from f32 y
        s2 = jnp.sum(y * y, axis=0, keepdims=True)
        stats_ref[0] = jnp.concatenate([s1, s2], axis=0)  # (2, Cout-tile)

    return kernel


def _conv_bn_pass1(xq, w, b, *, stride, ho, wo, n_batch, base_off=0):
    kh_size, kw_size, cin_p, cout_p = w.shape
    wq = wo + (kw_size - 1) // stride
    m_row = wo * n_batch
    swn = xq.shape[1]
    max_off = base_off + max(
        ((kw % stride) * wq + kw // stride) for kw in range(kw_size)) * n_batch
    assert xq.shape[2] == cin_p and max_off + m_row <= swn

    ct = 256 if cout_p % 256 == 0 else LANE              # Cout tile
    nj = cout_p // ct
    wf = w.reshape(kh_size, kw_size * cin_p, cout_p)     # folded-K weights

    def x_map(kh):
        return lambda h, j: (h * stride + kh, 0, 0)

    in_specs = (
        [pl.BlockSpec((1, swn, cin_p), x_map(kh)) for kh in range(kh_size)]
        + [pl.BlockSpec((kh_size, kw_size * cin_p, ct), lambda h, j: (0, 0, j)),
           pl.BlockSpec((1, ct), lambda h, j: (0, j))])
    out_specs = [pl.BlockSpec((1, m_row, ct), lambda h, j: (h, 0, j)),
                 pl.BlockSpec((1, 2, ct), lambda h, j: (h, 0, j))]
    out_shape = [jax.ShapeDtypeStruct((ho, m_row, cout_p), jnp.bfloat16),
                 jax.ShapeDtypeStruct((ho, 2, cout_p), jnp.float32)]

    y, stats = pl.pallas_call(
        _make_conv_pass1_kernel(kh_size, kw_size, stride, wq, wo, n_batch,
                                base_off),
        grid=(ho, nj),
        in_specs=in_specs,
        out_specs=out_specs,
        out_shape=out_shape,
        scratch_shapes=[pltpu.VMEM((m_row, ct), jnp.float32)],
        compiler_params=pltpu.CompilerParams(
            dimension_semantics=("parallel", "parallel"),
            vmem_limit_bytes=VMEM_LIMIT),
    )(*([xq] * kh_size), wf, b)
    return y, stats


# ---------------------------------------------------------------------------
# Fused BN + ReLU + re-pad: writes bf16 output directly in the zero-padded,
# phase-merged (stride-1, pad-1, 3x3) layout consumed by the next conv stage.
# ---------------------------------------------------------------------------
def _bn_relu_pad_apply(y, scale, shift, *, ho, wo, n_batch):
    """Returns (xq_next, base_off): tap kw of the next 3x3/stride-1 conv reads
    rows [base_off + kw*N, +Wo*N) of padded row (h + kh)."""
    m_row = wo * n_batch
    cp = y.shape[-1]
    # Left halo widened so the interior store starts on a packed bf16 sublane
    # boundary (multiple of 16 rows); extra columns are zeros and never read.
    left_cols = 16 // math.gcd(n_batch, 16)
    swn = (left_cols + wo + 1) * n_batch
    off_store = left_cols * n_batch
    base_off = (left_cols - 1) * n_batch

    def kernel(y_ref, sc_ref, sh_ref, o_ref):
        h = pl.program_id(0)
        o_ref[0] = jnp.zeros((swn, cp), o_ref.dtype)      # halo rows / cols

        @pl.when(jnp.logical_and(h >= 1, h <= ho))
        def _():
            v = y_ref[0].astype(jnp.float32) * sc_ref[...] + sh_ref[...]
            o_ref[0, pl.ds(off_store, m_row), :] = (
                jnp.maximum(v, 0.0).astype(o_ref.dtype))

    xq = pl.pallas_call(
        kernel,
        grid=(ho + 2,),
        in_specs=[pl.BlockSpec((1, m_row, cp),
                               lambda h: (jnp.clip(h - 1, 0, ho - 1), 0, 0)),
                  pl.BlockSpec((1, cp), lambda h: (0, 0)),
                  pl.BlockSpec((1, cp), lambda h: (0, 0))],
        out_specs=pl.BlockSpec((1, swn, cp), lambda h: (h, 0, 0)),
        out_shape=jax.ShapeDtypeStruct((ho + 2, swn, cp), jnp.bfloat16),
        compiler_params=pltpu.CompilerParams(
            dimension_semantics=("parallel",), vmem_limit_bytes=VMEM_LIMIT),
    )(y, scale.reshape(1, cp), shift.reshape(1, cp))
    return xq, base_off


# ---------------------------------------------------------------------------
# Fused finalize: BN+ReLU of conv3, BN of skip, residual add — one sweep.
# ---------------------------------------------------------------------------
def _final_add_kernel(y3_ref, ys_ref, sc3_ref, sh3_ref, scs_ref, shs_ref, o_ref):
    main = jnp.maximum(
        y3_ref[0].astype(jnp.float32) * sc3_ref[...] + sh3_ref[...], 0.0)
    skip = ys_ref[0].astype(jnp.float32) * scs_ref[...] + shs_ref[...]
    o_ref[0] = (main + skip).astype(o_ref.dtype)


def _final_fused_add(y3, ys, sc3, sh3, scs, shs):
    ho, m_row, cp = y3.shape
    row = pl.BlockSpec((1, m_row, cp), lambda h: (h, 0, 0))
    vec = pl.BlockSpec((1, cp), lambda h: (0, 0))
    return pl.pallas_call(
        _final_add_kernel,
        grid=(ho,),
        in_specs=[row, row, vec, vec, vec, vec],
        out_specs=row,
        out_shape=jax.ShapeDtypeStruct((ho, m_row, cp), jnp.float32),
        compiler_params=pltpu.CompilerParams(
            dimension_semantics=("parallel",), vmem_limit_bytes=VMEM_LIMIT),
    )(y3, ys, sc3.reshape(1, cp), sh3.reshape(1, cp),
      scs.reshape(1, cp), shs.reshape(1, cp))


# ---------------------------------------------------------------------------
# Glue: accumulated stats -> per-channel BN scale/shift (tiny, per-channel).
# ---------------------------------------------------------------------------
def _bn_scale_shift(stats, gamma_p, beta_p, count):
    tot = jnp.sum(stats, axis=0)                       # (2, Cp)
    mean = tot[0] / count
    var = jnp.maximum(tot[1] / count - mean * mean, 0.0)
    scale = gamma_p * jax.lax.rsqrt(var + EPS)
    shift = beta_p - mean * scale
    return scale, shift


def _prep_w(w_hwio, cin_p, cout_p):
    _, _, cin, cout = w_hwio.shape
    w = jnp.pad(w_hwio, ((0, 0), (0, 0), (0, cin_p - cin), (0, cout_p - cout)))
    return w.astype(jnp.bfloat16)


# ---------------------------------------------------------------------------
# ResBlock forward.
# ---------------------------------------------------------------------------
@functools.partial(jax.jit, static_argnames=("stride",))
def res_block(x_nchw, params, *, stride):
    n, cin, h, w = x_nchw.shape
    cout = params["w1"].shape[-1]
    cin_p, cout_p = _rup(cin, LANE), _rup(cout, LANE)
    ho = (h + 2 - 3) // stride + 1
    wo = (w + 2 - 3) // stride + 1
    count = n * ho * wo

    # NCHW -> (H, W, N, C) bf16, channels zero-padded to a lane multiple (once).
    x_hwnc = _pad_last(jnp.transpose(x_nchw.astype(jnp.bfloat16), (2, 3, 0, 1)),
                       cin_p)

    def conv_stage(xq, w_hwio, b, g, be, *, s, base_off=0):
        wp = _prep_w(w_hwio, xq.shape[-1], cout_p)
        bp = _pad_last(b, cout_p).reshape(1, cout_p)
        y, st = _conv_bn_pass1(xq, wp, bp, stride=s, ho=ho, wo=wo, n_batch=n,
                               base_off=base_off)
        sc, sh = _bn_scale_shift(st, _pad_last(g, cout_p),
                                 _pad_last(be, cout_p), count)
        return y, sc, sh

    # conv1: 3x3, stride, pad 1 (+ BN + ReLU, written directly in conv2 layout).
    xq1 = _phase_merge(x_hwnc, stride, 1, 3, wo)
    y1, sc1, sh1 = conv_stage(xq1, params["w1"], params["b1"], params["g1"],
                              params["be1"], s=stride)
    xq2, off2 = _bn_relu_pad_apply(y1, sc1, sh1, ho=ho, wo=wo, n_batch=n)

    # conv2: 3x3, stride 1, pad 1 (+ BN + ReLU, written in conv3 layout).
    y2, sc2, sh2 = conv_stage(xq2, params["w2"], params["b2"], params["g2"],
                              params["be2"], s=1, base_off=off2)
    xq3, off3 = _bn_relu_pad_apply(y2, sc2, sh2, ho=ho, wo=wo, n_batch=n)

    # conv3: 3x3, stride 1, pad 1 (BN + ReLU deferred to the fused finalize).
    y3, sc3, sh3 = conv_stage(xq3, params["w3"], params["b3"], params["g3"],
                              params["be3"], s=1, base_off=off3)

    # skip: 1x1, stride, pad 0 (BN deferred to the fused finalize).
    xqs = _phase_merge(x_hwnc, stride, 0, 1, wo)
    ys, scs, shs = conv_stage(xqs, params["ws"].reshape(1, 1, cin, cout),
                              params["bs"], params["gs"], params["bes"],
                              s=stride)

    out = _final_fused_add(y3, ys, sc3, sh3, scs, shs)     # (Ho, Wo*N, Cp) f32
    out = out.reshape(ho, wo, n, cout_p)[..., :cout]
    return jnp.transpose(out, (2, 3, 0, 1))                # NCHW


# ---------------------------------------------------------------------------
# Parameter init (HWIO conv weights, BN affine params).
# ---------------------------------------------------------------------------
def init_params(key, in_channels, out_channels):
    ks = jax.random.split(key, 12)

    def conv_w(k, kh, kw, cin, cout):
        return 0.1 * jax.random.normal(k, (kh, kw, cin, cout), jnp.float32)

    params = dict(
        w1=conv_w(ks[0], 3, 3, in_channels, out_channels),
        b1=0.05 * jax.random.normal(ks[1], (out_channels,), jnp.float32),
        g1=1.0 + 0.1 * jax.random.normal(ks[2], (out_channels,), jnp.float32),
        be1=0.05 * jax.random.normal(ks[3], (out_channels,), jnp.float32),
        w2=conv_w(ks[4], 3, 3, out_channels, out_channels),
        b2=0.05 * jax.random.normal(ks[5], (out_channels,), jnp.float32),
        g2=1.0 + 0.1 * jax.random.normal(ks[6], (out_channels,), jnp.float32),
        be2=0.05 * jax.random.normal(ks[7], (out_channels,), jnp.float32),
        w3=conv_w(ks[8], 3, 3, out_channels, out_channels),
        b3=0.05 * jax.random.normal(ks[9], (out_channels,), jnp.float32),
        g3=1.0 + 0.1 * jax.random.normal(ks[10], (out_channels,), jnp.float32),
        be3=0.05 * jax.random.normal(ks[11], (out_channels,), jnp.float32),
    )
    ks2 = jax.random.split(jax.random.fold_in(key, 7), 4)
    params.update(
        ws=0.1 * jax.random.normal(ks2[0], (in_channels, out_channels), jnp.float32),
        bs=0.05 * jax.random.normal(ks2[1], (out_channels,), jnp.float32),
        gs=1.0 + 0.1 * jax.random.normal(ks2[2], (out_channels,), jnp.float32),
        bes=0.05 * jax.random.normal(ks2[3], (out_channels,), jnp.float32),
    )
    return params


# ---------------------------------------------------------------------------
# Pure-JAX f32 reference (for correctness check).
# ---------------------------------------------------------------------------
def _bn_train_ref(y, gamma, beta):
    mean = y.mean(axis=(0, 1, 2), keepdims=True)
    var = ((y - mean) ** 2).mean(axis=(0, 1, 2), keepdims=True)
    return (y - mean) * jax.lax.rsqrt(var + EPS) * gamma + beta


def _conv_ref(x, w, b, stride, padding):
    y = jax.lax.conv_general_dilated(
        x, w, window_strides=(stride, stride),
        padding=[(padding, padding), (padding, padding)],
        dimension_numbers=("NHWC", "HWIO", "NHWC"))
    return y + b


def res_block_ref(x_nchw, params, *, stride):
    x = jnp.transpose(x_nchw, (0, 2, 3, 1)).astype(jnp.float32)
    o = jax.nn.relu(_bn_train_ref(_conv_ref(x, params["w1"], params["b1"], stride, 1),
                                  params["g1"], params["be1"]))
    o = jax.nn.relu(_bn_train_ref(_conv_ref(o, params["w2"], params["b2"], 1, 1),
                                  params["g2"], params["be2"]))
    o = jax.nn.relu(_bn_train_ref(_conv_ref(o, params["w3"], params["b3"], 1, 1),
                                  params["g3"], params["be3"]))
    skip = _conv_ref(x, params["ws"].reshape(1, 1, *params["ws"].shape),
                     params["bs"], stride, 0)
    o = o + _bn_train_ref(skip, params["gs"], params["bes"])
    return jnp.transpose(o, (0, 3, 1, 2))


if __name__ == "__main__":
    key = jax.random.PRNGKey(0)
    k_x, k_p = jax.random.split(key)

    batch, in_channels, out_channels, spatial, stride = 2, 4, 8, 16, 2
    x = jax.random.normal(k_x, (batch, in_channels, spatial, spatial), jnp.float32)
    params = init_params(k_p, in_channels, out_channels)

    out = jax.block_until_ready(res_block(x, params, stride=stride))
    ref = jax.block_until_ready(res_block_ref(x, params, stride=stride))

    assert out.shape == (batch, out_channels, spatial // stride, spatial // stride)
    # bf16 MXU inputs / bf16 intermediates vs f32 reference -> loose tolerance.
    err = float(jnp.max(jnp.abs(out - ref)))
    assert jnp.allclose(out, ref, atol=5e-2, rtol=5e-2), err
    print("KERNEL_OK")
</pallas_src>

<mosaic_0001>
module attributes {stable_mosaic.version = 11 : i64} {
  func.func @kernel(%arg0: i32, %arg1: i32, %arg2: memref<1x36x128xbf16, #tpu.memory_space<vmem>>, %arg3: memref<1x36x128xbf16, #tpu.memory_space<vmem>>, %arg4: memref<1x36x128xbf16, #tpu.memory_space<vmem>>, %arg5: memref<3x384x128xbf16, #tpu.memory_space<vmem>>, %arg6: memref<1x128xf32, #tpu.memory_space<vmem>>, %arg7: memref<1x16x128xbf16, #tpu.memory_space<vmem>>, %arg8: memref<1x2x128xf32, #tpu.memory_space<vmem>>, %arg9: memref<16x128xf32, #tpu.memory_space<vmem>>) attributes {dimension_semantics = [#tpu.dimension_semantics<parallel>, #tpu.dimension_semantics<parallel>], iteration_bounds = array<i64: 8, 1>, scalar_prefetch = 0 : i64, scratch_operands = 1 : i64, tpu.core_type = #tpu.core_type<tc>, window_params = [{transform_indices = @transform_0, window_bounds = array<i64: 1, 36, 128>}, {transform_indices = @transform_1, window_bounds = array<i64: 1, 36, 128>}, {transform_indices = @transform_2, window_bounds = array<i64: 1, 36, 128>}, {transform_indices = @transform_3, window_bounds = array<i64: 3, 384, 128>}, {transform_indices = @transform_4, window_bounds = array<i64: 1, 128>}, {transform_indices = @transform_5, window_bounds = array<i64: 1, 16, 128>}, {transform_indices = @transform_6, window_bounds = array<i64: 1, 2, 128>}]} {
    %c0 = arith.constant 0 : index
    %c0_0 = arith.constant 0 : index
    %c0_1 = arith.constant 0 : index
    %0 = vector.load %arg2[%c0, %c0_0, %c0_1] : memref<1x36x128xbf16, #tpu.memory_space<vmem>>, vector<1x16x128xbf16>
    %1 = vector.shape_cast %0 : vector<1x16x128xbf16> to vector<16x128xbf16>
    %c0_2 = arith.constant 0 : index
    %c18 = arith.constant 18 : index
    %c0_3 = arith.constant 0 : index
    %2 = vector.load %arg2[%c0_2, %c18, %c0_3] : memref<1x36x128xbf16, #tpu.memory_space<vmem>>, vector<1x16x128xbf16>
    %3 = vector.shape_cast %2 : vector<1x16x128xbf16> to vector<16x128xbf16>
    %c0_4 = arith.constant 0 : index
    %c2 = arith.constant 2 : index
    %c0_5 = arith.constant 0 : index
    %4 = vector.load %arg2[%c0_4, %c2, %c0_5] : memref<1x36x128xbf16, #tpu.memory_space<vmem>>, vector<1x16x128xbf16>
    %5 = vector.shape_cast %4 : vector<1x16x128xbf16> to vector<16x128xbf16>
    %6 = tpu.concatenate %1, %3, %5 in 1 : vector<16x128xbf16>, vector<16x128xbf16>, vector<16x128xbf16> -> vector<16x384xbf16>
    %c0_6 = arith.constant 0 : index
    %c0_7 = arith.constant 0 : index
    %c0_8 = arith.constant 0 : index
    %7 = vector.load %arg5[%c0_6, %c0_7, %c0_8] : memref<3x384x128xbf16, #tpu.memory_space<vmem>>, vector<1x384x128xbf16>
    %8 = vector.shape_cast %7 : vector<1x384x128xbf16> to vector<384x128xbf16>
    %cst = arith.constant dense<0.000000e+00> : vector<16x128xf32>
    %9 = tpu.matmul %6, %8, %cst {dimension_numbers = #tpu.dot_dimension_numbers<[1], [0], [0], [1], [0, 0, 1, 1], [], []>} : vector<16x384xbf16>, vector<384x128xbf16>, vector<16x128xf32> -> vector<16x128xf32>
    %c0_9 = arith.constant 0 : index
    %c0_10 = arith.constant 0 : index
    %10 = vector.load %arg9[%c0_9, %c0_10] : memref<16x128xf32, #tpu.memory_space<vmem>>, vector<16x128xf32>
    tpu.vector_store %arg9[%c0_9, %c0_10], %9 {strides = array<i32>} : memref<16x128xf32, #tpu.memory_space<vmem>>, vector<16x128xf32>,
    %c0_11 = arith.constant 0 : index
    %c0_12 = arith.constant 0 : index
    %11 = vector.load %arg9[%c0_11, %c0_12] : memref<16x128xf32, #tpu.memory_space<vmem>>, vector<16x128xf32>
    %c0_13 = arith.constant 0 : index
    %c0_14 = arith.constant 0 : index
    %c0_15 = arith.constant 0 : index
    %12 = vector.load %arg3[%c0_13, %c0_14, %c0_15] : memref<1x36x128xbf16, #tpu.memory_space<vmem>>, vector<1x16x128xbf16>
    %13 = vector.shape_cast %12 : vector<1x16x128xbf16> to vector<16x128xbf16>
    %c0_16 = arith.constant 0 : index
    %c18_17 = arith.constant 18 : index
    %c0_18 = arith.constant 0 : index
    %14 = vector.load %arg3[%c0_16, %c18_17, %c0_18] : memref<1x36x128xbf16, #tpu.memory_space<vmem>>, vector<1x16x128xbf16>
    %15 = vector.shape_cast %14 : vector<1x16x128xbf16> to vector<16x128xbf16>
    %c0_19 = arith.constant 0 : index
    %c2_20 = arith.constant 2 : index
    %c0_21 = arith.constant 0 : index
    %16 = vector.load %arg3[%c0_19, %c2_20, %c0_21] : memref<1x36x128xbf16, #tpu.memory_space<vmem>>, vector<1x16x128xbf16>
    %17 = vector.shape_cast %16 : vector<1x16x128xbf16> to vector<16x128xbf16>
    %18 = tpu.concatenate %13, %15, %17 in 1 : vector<16x128xbf16>, vector<16x128xbf16>, vector<16x128xbf16> -> vector<16x384xbf16>
    %c1 = arith.constant 1 : index
    %c0_22 = arith.constant 0 : index
    %c0_23 = arith.constant 0 : index
    %19 = vector.load %arg5[%c1, %c0_22, %c0_23] : memref<3x384x128xbf16, #tpu.memory_space<vmem>>, vector<1x384x128xbf16>
    %20 = vector.shape_cast %19 : vector<1x384x128xbf16> to vector<384x128xbf16>
    %cst_24 = arith.constant dense<0.000000e+00> : vector<16x128xf32>
    %21 = tpu.matmul %18, %20, %cst_24 {dimension_numbers = #tpu.dot_dimension_numbers<[1], [0], [0], [1], [0, 0, 1, 1], [], []>} : vector<16x384xbf16>, vector<384x128xbf16>, vector<16x128xf32> -> vector<16x128xf32>
    %22 = arith.addf %11, %21 : vector<16x128xf32>
    %c0_25 = arith.constant 0 : index
    %c0_26 = arith.constant 0 : index
    %23 = vector.load %arg9[%c0_25, %c0_26] : memref<16x128xf32, #tpu.memory_space<vmem>>, vector<16x128xf32>
    tpu.vector_store %arg9[%c0_25, %c0_26], %22 {strides = array<i32>} : memref<16x128xf32, #tpu.memory_space<vmem>>, vector<16x128xf32>,
    %c0_27 = arith.constant 0 : index
    %c0_28 = arith.constant 0 : index
    %24 = vector.load %arg9[%c0_27, %c0_28] : memref<16x128xf32, #tpu.memory_space<vmem>>, vector<16x128xf32>
    %c0_29 = arith.constant 0 : index
    %c0_30 = arith.constant 0 : index
    %c0_31 = arith.constant 0 : index
    %25 = vector.load %arg4[%c0_29, %c0_30, %c0_31] : memref<1x36x128xbf16, #tpu.memory_space<vmem>>, vector<1x16x128xbf16>
    %26 = vector.shape_cast %25 : vector<1x16x128xbf16> to vector<16x128xbf16>
    %c0_32 = arith.constant 0 : index
    %c18_33 = arith.constant 18 : index
    %c0_34 = arith.constant 0 : index
    %27 = vector.load %arg4[%c0_32, %c18_33, %c0_34] : memref<1x36x128xbf16, #tpu.memory_space<vmem>>, vector<1x16x128xbf16>
    %28 = vector.shape_cast %27 : vector<1x16x128xbf16> to vector<16x128xbf16>
    %c0_35 = arith.constant 0 : index
    %c2_36 = arith.constant 2 : index
    %c0_37 = arith.constant 0 : index
    %29 = vector.load %arg4[%c0_35, %c2_36, %c0_37] : memref<1x36x128xbf16, #tpu.memory_space<vmem>>, vector<1x16x128xbf16>
    %30 = vector.shape_cast %29 : vector<1x16x128xbf16> to vector<16x128xbf16>
    %31 = tpu.concatenate %26, %28, %30 in 1 : vector<16x128xbf16>, vector<16x128xbf16>, vector<16x128xbf16> -> vector<16x384xbf16>
    %c2_38 = arith.constant 2 : index
    %c0_39 = arith.constant 0 : index
    %c0_40 = arith.constant 0 : index
    %32 = vector.load %arg5[%c2_38, %c0_39, %c0_40] : memref<3x384x128xbf16, #tpu.memory_space<vmem>>, vector<1x384x128xbf16>
    %33 = vector.shape_cast %32 : vector<1x384x128xbf16> to vector<384x128xbf16>
    %cst_41 = arith.constant dense<0.000000e+00> : vector<16x128xf32>
    %34 = tpu.matmul %31, %33, %cst_41 {dimension_numbers = #tpu.dot_dimension_numbers<[1], [0], [0], [1], [0, 0, 1, 1], [], []>} : vector<16x384xbf16>, vector<384x128xbf16>, vector<16x128xf32> -> vector<16x128xf32>
    %35 = arith.addf %24, %34 : vector<16x128xf32>
    %c0_42 = arith.constant 0 : index
    %c0_43 = arith.constant 0 : index
    %36 = vector.load %arg9[%c0_42, %c0_43] : memref<16x128xf32, #tpu.memory_space<vmem>>, vector<16x128xf32>
    tpu.vector_store %arg9[%c0_42, %c0_43], %35 {strides = array<i32>} : memref<16x128xf32, #tpu.memory_space<vmem>>, vector<16x128xf32>,
    %c0_44 = arith.constant 0 : index
    %c0_45 = arith.constant 0 : index
    %37 = vector.load %arg9[%c0_44, %c0_45] : memref<16x128xf32, #tpu.memory_space<vmem>>, vector<16x128xf32>
    %c0_46 = arith.constant 0 : index
    %c0_47 = arith.constant 0 : index
    %38 = vector.load %arg6[%c0_46, %c0_47] : memref<1x128xf32, #tpu.memory_space<vmem>>, vector<1x128xf32>
    %39 = vector.broadcast %38 : vector<1x128xf32> to vector<16x128xf32>
    %40 = arith.addf %37, %39 : vector<16x128xf32>
    %41 = arith.truncf %40 : vector<16x128xf32> to vector<16x128xbf16>
    %c0_48 = arith.constant 0 : index
    %c0_49 = arith.constant 0 : index
    %c0_50 = arith.constant 0 : index
    %42 = vector.load %arg7[%c0_48, %c0_49, %c0_50] : memref<1x16x128xbf16, #tpu.memory_space<vmem>>, vector<1x16x128xbf16>
    %43 = vector.shape_cast %42 : vector<1x16x128xbf16> to vector<16x128xbf16>
    %44 = vector.shape_cast %41 : vector<16x128xbf16> to vector<1x16x128xbf16>
    tpu.vector_store %arg7[%c0_48, %c0_49, %c0_50], %44 {strides = array<i32>} : memref<1x16x128xbf16, #tpu.memory_space<vmem>>, vector<1x16x128xbf16>,
    %cst_51 = arith.constant dense<0.000000e+00> : vector<128xf32>
    %45 = vector.multi_reduction <add>, %40, %cst_51 [0] : vector<16x128xf32> to vector<128xf32>
    %46 = vector.shape_cast %45 : vector<128xf32> to vector<1x128xf32>
    %47 = arith.mulf %40, %40 : vector<16x128xf32>
    %cst_52 = arith.constant dense<0.000000e+00> : vector<128xf32>
    %48 = vector.multi_reduction <add>, %47, %cst_52 [0] : vector<16x128xf32> to vector<128xf32>
    %49 = vector.shape_cast %48 : vector<128xf32> to vector<1x128xf32>
    %50 = tpu.concatenate %46, %49 in 0 : vector<1x128xf32>, vector<1x128xf32> -> vector<2x128xf32>
    %c0_53 = arith.constant 0 : index
    %c0_54 = arith.constant 0 : index
    %c0_55 = arith.constant 0 : index
    %51 = vector.load %arg8[%c0_53, %c0_54, %c0_55] : memref<1x2x128xf32, #tpu.memory_space<vmem>>, vector<1x2x128xf32>
    %52 = vector.shape_cast %51 : vector<1x2x128xf32> to vector<2x128xf32>
    %53 = vector.shape_cast %50 : vector<2x128xf32> to vector<1x2x128xf32>
    tpu.vector_store %arg8[%c0_53, %c0_54, %c0_55], %53 {strides = array<i32>} : memref<1x2x128xf32, #tpu.memory_space<vmem>>, vector<1x2x128xf32>,
    return
  }
  func.func @transform_0(%arg0: i32, %arg1: i32) -> (i32, i32, i32) {
    %c2_i32 = arith.constant 2 : i32
    %0 = arith.muli %arg0, %c2_i32 : i32
    %c0_i32 = arith.constant 0 : i32
    %1 = arith.addi %0, %c0_i32 : i32
    %c0_i32_0 = arith.constant 0 : i32
    %c0_i32_1 = arith.constant 0 : i32
    %c0_i32_2 = arith.constant 0 : i32
    return %1, %c0_i32_0, %c0_i32_1 : i32, i32, i32
  }
  func.func @transform_1(%arg0: i32, %arg1: i32) -> (i32, i32, i32) {
    %c2_i32 = arith.constant 2 : i32
    %0 = arith.muli %arg0, %c2_i32 : i32
    %c1_i32 = arith.constant 1 : i32
    %1 = arith.addi %0, %c1_i32 : i32
    %c0_i32 = arith.constant 0 : i32
    %c0_i32_0 = arith.constant 0 : i32
    %c0_i32_1 = arith.constant 0 : i32
    return %1, %c0_i32, %c0_i32_0 : i32, i32, i32
  }
  func.func @transform_2(%arg0: i32, %arg1: i32) -> (i32, i32, i32) {
    %c2_i32 = arith.constant 2 : i32
    %0 = arith.muli %arg0, %c2_i32 : i32
    %c2_i32_0 = arith.constant 2 : i32
    %1 = arith.addi %0, %c2_i32_0 : i32
    %c0_i32 = arith.constant 0 : i32
    %c0_i32_1 = arith.constant 0 : i32
    %c0_i32_2 = arith.constant 0 : i32
    return %1, %c0_i32, %c0_i32_1 : i32, i32, i32
  }
  func.func @transform_3(%arg0: i32, %arg1: i32) -> (i32, i32, i32) {
    %c0_i32 = arith.constant 0 : i32
    %c0_i32_0 = arith.constant 0 : i32
    %c0_i32_1 = arith.constant 0 : i32
    return %c0_i32, %c0_i32_0, %arg1 : i32, i32, i32
  }
  func.func @transform_4(%arg0: i32, %arg1: i32) -> (i32, i32) {
    %c0_i32 = arith.constant 0 : i32
    %c0_i32_0 = arith.constant 0 : i32
    return %c0_i32, %arg1 : i32, i32
  }
  func.func @transform_5(%arg0: i32, %arg1: i32) -> (i32, i32, i32) {
    %c0_i32 = arith.constant 0 : i32
    %c0_i32_0 = arith.constant 0 : i32
    return %arg0, %c0_i32, %arg1 : i32, i32, i32
  }
  func.func @transform_6(%arg0: i32, %arg1: i32) -> (i32, i32, i32) {
    %c0_i32 = arith.constant 0 : i32
    %c0_i32_0 = arith.constant 0 : i32
    return %arg0, %c0_i32, %arg1 : i32, i32, i32
  }
}

module attributes {stable_mosaic.version = 11 : i64} {
  func.func @kernel(%arg0: i32, %arg1: memref<1x16x128xbf16, #tpu.memory_space<vmem>>, %arg2: memref<1x128xf32, #tpu.memory_space<vmem>>, %arg3: memref<1x128xf32, #tpu.memory_space<vmem>>, %arg4: memref<1x34x128xbf16, #tpu.memory_space<vmem>>) attributes {dimension_semantics = [#tpu.dimension_semantics<parallel>], iteration_bounds = array<i64: 10>, scalar_prefetch = 0 : i64, scratch_operands = 0 : i64, tpu.core_type = #tpu.core_type<tc>, window_params = [{transform_indices = @transform_0, window_bounds = array<i64: 1, 16, 128>}, {pipeline_mode = #tpu.pipeline_mode<synchronous>, transform_indices = @transform_1, window_bounds = array<i64: 1, 128>}, {pipeline_mode = #tpu.pipeline_mode<synchronous>, transform_indices = @transform_2, window_bounds = array<i64: 1, 128>}, {transform_indices = @transform_3, window_bounds = array<i64: 1, 34, 128>}]} {
    %cst = arith.constant 0.000000e+00 : bf16
    %0 = vector.broadcast %cst : bf16 to vector<34x128xbf16>
    %c0 = arith.constant 0 : index
    %c0_0 = arith.constant 0 : index
    %c0_1 = arith.constant 0 : index
    %1 = vector.load %arg4[%c0, %c0_0, %c0_1] : memref<1x34x128xbf16, #tpu.memory_space<vmem>>, vector<1x34x128xbf16>
    %2 = vector.shape_cast %1 : vector<1x34x128xbf16> to vector<34x128xbf16>
    %3 = vector.shape_cast %0 : vector<34x128xbf16> to vector<1x34x128xbf16>
    tpu.vector_store %arg4[%c0, %c0_0, %c0_1], %3 {strides = array<i32>} : memref<1x34x128xbf16, #tpu.memory_space<vmem>>, vector<1x34x128xbf16>,
    %c1_i32 = arith.constant 1 : i32
    %4 = arith.cmpi sge, %arg0, %c1_i32 : i32
    %c8_i32 = arith.constant 8 : i32
    %5 = arith.cmpi sle, %arg0, %c8_i32 : i32
    %6 = arith.andi %4, %5 : i1
    %7 = arith.extui %6 : i1 to i32
    %c0_i32 = arith.constant 0 : i32
    %8 = arith.cmpi ne, %7, %c0_i32 : i32
    scf.if %8 {
      %c0_2 = arith.constant 0 : index
      %c0_3 = arith.constant 0 : index
      %c0_4 = arith.constant 0 : index
      %9 = vector.load %arg1[%c0_2, %c0_3, %c0_4] : memref<1x16x128xbf16, #tpu.memory_space<vmem>>, vector<1x16x128xbf16>
      %10 = vector.shape_cast %9 : vector<1x16x128xbf16> to vector<16x128xbf16>
      %11 = arith.extf %10 : vector<16x128xbf16> to vector<16x128xf32>
      %c0_5 = arith.constant 0 : index
      %c0_6 = arith.constant 0 : index
      %12 = vector.load %arg2[%c0_5, %c0_6] : memref<1x128xf32, #tpu.memory_space<vmem>>, vector<1x128xf32>
      %13 = vector.broadcast %12 : vector<1x128xf32> to vector<16x128xf32>
      %14 = arith.mulf %11, %13 : vector<16x128xf32>
      %c0_7 = arith.constant 0 : index
      %c0_8 = arith.constant 0 : index
      %15 = vector.load %arg3[%c0_7, %c0_8] : memref<1x128xf32, #tpu.memory_space<vmem>>, vector<1x128xf32>
      %16 = vector.broadcast %15 : vector<1x128xf32> to vector<16x128xf32>
      %17 = arith.addf %14, %16 : vector<16x128xf32>
      %cst_9 = arith.constant 0.000000e+00 : f32
      %18 = vector.broadcast %cst_9 : f32 to vector<16x128xf32>
      %19 = arith.maximumf %17, %18 : vector<16x128xf32>
      %20 = arith.truncf %19 : vector<16x128xf32> to vector<16x128xbf16>
      %c0_10 = arith.constant 0 : index
      %c16 = arith.constant 16 : index
      %c0_11 = arith.constant 0 : index
      %21 = vector.load %arg4[%c0_10, %c16, %c0_11] : memref<1x34x128xbf16, #tpu.memory_space<vmem>>, vector<1x16x128xbf16>
      %22 = vector.shape_cast %21 : vector<1x16x128xbf16> to vector<16x128xbf16>
      %23 = vector.shape_cast %20 : vector<16x128xbf16> to vector<1x16x128xbf16>
      tpu.vector_store %arg4[%c0_10, %c16, %c0_11], %23 {strides = array<i32>} : memref<1x34x128xbf16, #tpu.memory_space<vmem>>, vector<1x16x128xbf16>,
    } else {
    }
    return
  }
  func.func @transform_0(%arg0: i32) -> (i32, i32, i32) {
    %c1_i32 = arith.constant 1 : i32
    %0 = arith.subi %arg0, %c1_i32 : i32
    %c0_i32 = arith.constant 0 : i32
    %c7_i32 = arith.constant 7 : i32
    %1 = arith.maxsi %c0_i32, %0 : i32
    %2 = arith.minsi %c7_i32, %1 : i32
    %c0_i32_0 = arith.constant 0 : i32
    %c0_i32_1 = arith.constant 0 : i32
    %c0_i32_2 = arith.constant 0 : i32
    return %2, %c0_i32_0, %c0_i32_1 : i32, i32, i32
  }
  func.func @transform_1(%arg0: i32) -> (i32, i32) {
    %c0_i32 = arith.constant 0 : i32
    %c0_i32_0 = arith.constant 0 : i32
    %c0_i32_1 = arith.constant 0 : i32
    return %c0_i32, %c0_i32_0 : i32, i32
  }
  func.func @transform_2(%arg0: i32) -> (i32, i32) {
    %c0_i32 = arith.constant 0 : i32
    %c0_i32_0 = arith.constant 0 : i32
    %c0_i32_1 = arith.constant 0 : i32
    return %c0_i32, %c0_i32_0 : i32, i32
  }
  func.func @transform_3(%arg0: i32) -> (i32, i32, i32) {
    %c0_i32 = arith.constant 0 : i32
    %c0_i32_0 = arith.constant 0 : i32
    %c0_i32_1 = arith.constant 0 : i32
    return %arg0, %c0_i32, %c0_i32_0 : i32, i32, i32
  }
}

module attributes {stable_mosaic.version = 11 : i64} {
  func.func @kernel(%arg0: i32, %arg1: i32, %arg2: memref<1x34x128xbf16, #tpu.memory_space<vmem>>, %arg3: memref<1x34x128xbf16, #tpu.memory_space<vmem>>, %arg4: memref<1x34x128xbf16, #tpu.memory_space<vmem>>, %arg5: memref<3x384x128xbf16, #tpu.memory_space<vmem>>, %arg6: memref<1x128xf32, #tpu.memory_space<vmem>>, %arg7: memref<1x16x128xbf16, #tpu.memory_space<vmem>>, %arg8: memref<1x2x128xf32, #tpu.memory_space<vmem>>, %arg9: memref<16x128xf32, #tpu.memory_space<vmem>>) attributes {dimension_semantics = [#tpu.dimension_semantics<parallel>, #tpu.dimension_semantics<parallel>], iteration_bounds = array<i64: 8, 1>, scalar_prefetch = 0 : i64, scratch_operands = 1 : i64, tpu.core_type = #tpu.core_type<tc>, window_params = [{transform_indices = @transform_0, window_bounds = array<i64: 1, 34, 128>}, {transform_indices = @transform_1, window_bounds = array<i64: 1, 34, 128>}, {transform_indices = @transform_2, window_bounds = array<i64: 1, 34, 128>}, {transform_indices = @transform_3, window_bounds = array<i64: 3, 384, 128>}, {transform_indices = @transform_4, window_bounds = array<i64: 1, 128>}, {transform_indices = @transform_5, window_bounds = array<i64: 1, 16, 128>}, {transform_indices = @transform_6, window_bounds = array<i64: 1, 2, 128>}]} {
    %c0 = arith.constant 0 : index
    %c14 = arith.constant 14 : index
    %c0_0 = arith.constant 0 : index
    %0 = vector.load %arg2[%c0, %c14, %c0_0] : memref<1x34x128xbf16, #tpu.memory_space<vmem>>, vector<1x16x128xbf16>
    %1 = vector.shape_cast %0 : vector<1x16x128xbf16> to vector<16x128xbf16>
    %c0_1 = arith.constant 0 : index
    %c16 = arith.constant 16 : index
    %c0_2 = arith.constant 0 : index
    %2 = vector.load %arg2[%c0_1, %c16, %c0_2] : memref<1x34x128xbf16, #tpu.memory_space<vmem>>, vector<1x16x128xbf16>
    %3 = vector.shape_cast %2 : vector<1x16x128xbf16> to vector<16x128xbf16>
    %c0_3 = arith.constant 0 : index
    %c18 = arith.constant 18 : index
    %c0_4 = arith.constant 0 : index
    %4 = vector.load %arg2[%c0_3, %c18, %c0_4] : memref<1x34x128xbf16, #tpu.memory_space<vmem>>, vector<1x16x128xbf16>
    %5 = vector.shape_cast %4 : vector<1x16x128xbf16> to vector<16x128xbf16>
    %6 = tpu.concatenate %1, %3, %5 in 1 : vector<16x128xbf16>, vector<16x128xbf16>, vector<16x128xbf16> -> vector<16x384xbf16>
    %c0_5 = arith.constant 0 : index
    %c0_6 = arith.constant 0 : index
    %c0_7 = arith.constant 0 : index
    %7 = vector.load %arg5[%c0_5, %c0_6, %c0_7] : memref<3x384x128xbf16, #tpu.memory_space<vmem>>, vector<1x384x128xbf16>
    %8 = vector.shape_cast %7 : vector<1x384x128xbf16> to vector<384x128xbf16>
    %cst = arith.constant dense<0.000000e+00> : vector<16x128xf32>
    %9 = tpu.matmul %6, %8, %cst {dimension_numbers = #tpu.dot_dimension_numbers<[1], [0], [0], [1], [0, 0, 1, 1], [], []>} : vector<16x384xbf16>, vector<384x128xbf16>, vector<16x128xf32> -> vector<16x128xf32>
    %c0_8 = arith.constant 0 : index
    %c0_9 = arith.constant 0 : index
    %10 = vector.load %arg9[%c0_8, %c0_9] : memref<16x128xf32, #tpu.memory_space<vmem>>, vector<16x128xf32>
    tpu.vector_store %arg9[%c0_8, %c0_9], %9 {strides = array<i32>} : memref<16x128xf32, #tpu.memory_space<vmem>>, vector<16x128xf32>,
    %c0_10 = arith.constant 0 : index
    %c0_11 = arith.constant 0 : index
    %11 = vector.load %arg9[%c0_10, %c0_11] : memref<16x128xf32, #tpu.memory_space<vmem>>, vector<16x128xf32>
    %c0_12 = arith.constant 0 : index
    %c14_13 = arith.constant 14 : index
    %c0_14 = arith.constant 0 : index
    %12 = vector.load %arg3[%c0_12, %c14_13, %c0_14] : memref<1x34x128xbf16, #tpu.memory_space<vmem>>, vector<1x16x128xbf16>
    %13 = vector.shape_cast %12 : vector<1x16x128xbf16> to vector<16x128xbf16>
    %c0_15 = arith.constant 0 : index
    %c16_16 = arith.constant 16 : index
    %c0_17 = arith.constant 0 : index
    %14 = vector.load %arg3[%c0_15, %c16_16, %c0_17] : memref<1x34x128xbf16, #tpu.memory_space<vmem>>, vector<1x16x128xbf16>
    %15 = vector.shape_cast %14 : vector<1x16x128xbf16> to vector<16x128xbf16>
    %c0_18 = arith.constant 0 : index
    %c18_19 = arith.constant 18 : index
    %c0_20 = arith.constant 0 : index
    %16 = vector.load %arg3[%c0_18, %c18_19, %c0_20] : memref<1x34x128xbf16, #tpu.memory_space<vmem>>, vector<1x16x128xbf16>
    %17 = vector.shape_cast %16 : vector<1x16x128xbf16> to vector<16x128xbf16>
    %18 = tpu.concatenate %13, %15, %17 in 1 : vector<16x128xbf16>, vector<16x128xbf16>, vector<16x128xbf16> -> vector<16x384xbf16>
    %c1 = arith.constant 1 : index
    %c0_21 = arith.constant 0 : index
    %c0_22 = arith.constant 0 : index
    %19 = vector.load %arg5[%c1, %c0_21, %c0_22] : memref<3x384x128xbf16, #tpu.memory_space<vmem>>, vector<1x384x128xbf16>
    %20 = vector.shape_cast %19 : vector<1x384x128xbf16> to vector<384x128xbf16>
    %cst_23 = arith.constant dense<0.000000e+00> : vector<16x128xf32>
    %21 = tpu.matmul %18, %20, %cst_23 {dimension_numbers = #tpu.dot_dimension_numbers<[1], [0], [0], [1], [0, 0, 1, 1], [], []>} : vector<16x384xbf16>, vector<384x128xbf16>, vector<16x128xf32> -> vector<16x128xf32>
    %22 = arith.addf %11, %21 : vector<16x128xf32>
    %c0_24 = arith.constant 0 : index
    %c0_25 = arith.constant 0 : index
    %23 = vector.load %arg9[%c0_24, %c0_25] : memref<16x128xf32, #tpu.memory_space<vmem>>, vector<16x128xf32>
    tpu.vector_store %arg9[%c0_24, %c0_25], %22 {strides = array<i32>} : memref<16x128xf32, #tpu.memory_space<vmem>>, vector<16x128xf32>,
    %c0_26 = arith.constant 0 : index
    %c0_27 = arith.constant 0 : index
    %24 = vector.load %arg9[%c0_26, %c0_27] : memref<16x128xf32, #tpu.memory_space<vmem>>, vector<16x128xf32>
    %c0_28 = arith.constant 0 : index
    %c14_29 = arith.constant 14 : index
    %c0_30 = arith.constant 0 : index
    %25 = vector.load %arg4[%c0_28, %c14_29, %c0_30] : memref<1x34x128xbf16, #tpu.memory_space<vmem>>, vector<1x16x128xbf16>
    %26 = vector.shape_cast %25 : vector<1x16x128xbf16> to vector<16x128xbf16>
    %c0_31 = arith.constant 0 : index
    %c16_32 = arith.constant 16 : index
    %c0_33 = arith.constant 0 : index
    %27 = vector.load %arg4[%c0_31, %c16_32, %c0_33] : memref<1x34x128xbf16, #tpu.memory_space<vmem>>, vector<1x16x128xbf16>
    %28 = vector.shape_cast %27 : vector<1x16x128xbf16> to vector<16x128xbf16>
    %c0_34 = arith.constant 0 : index
    %c18_35 = arith.constant 18 : index
    %c0_36 = arith.constant 0 : index
    %29 = vector.load %arg4[%c0_34, %c18_35, %c0_36] : memref<1x34x128xbf16, #tpu.memory_space<vmem>>, vector<1x16x128xbf16>
    %30 = vector.shape_cast %29 : vector<1x16x128xbf16> to vector<16x128xbf16>
    %31 = tpu.concatenate %26, %28, %30 in 1 : vector<16x128xbf16>, vector<16x128xbf16>, vector<16x128xbf16> -> vector<16x384xbf16>
    %c2 = arith.constant 2 : index
    %c0_37 = arith.constant 0 : index
    %c0_38 = arith.constant 0 : index
    %32 = vector.load %arg5[%c2, %c0_37, %c0_38] : memref<3x384x128xbf16, #tpu.memory_space<vmem>>, vector<1x384x128xbf16>
    %33 = vector.shape_cast %32 : vector<1x384x128xbf16> to vector<384x128xbf16>
    %cst_39 = arith.constant dense<0.000000e+00> : vector<16x128xf32>
    %34 = tpu.matmul %31, %33, %cst_39 {dimension_numbers = #tpu.dot_dimension_numbers<[1], [0], [0], [1], [0, 0, 1, 1], [], []>} : vector<16x384xbf16>, vector<384x128xbf16>, vector<16x128xf32> -> vector<16x128xf32>
    %35 = arith.addf %24, %34 : vector<16x128xf32>
    %c0_40 = arith.constant 0 : index
    %c0_41 = arith.constant 0 : index
    %36 = vector.load %arg9[%c0_40, %c0_41] : memref<16x128xf32, #tpu.memory_space<vmem>>, vector<16x128xf32>
    tpu.vector_store %arg9[%c0_40, %c0_41], %35 {strides = array<i32>} : memref<16x128xf32, #tpu.memory_space<vmem>>, vector<16x128xf32>,
    %c0_42 = arith.constant 0 : index
    %c0_43 = arith.constant 0 : index
    %37 = vector.load %arg9[%c0_42, %c0_43] : memref<16x128xf32, #tpu.memory_space<vmem>>, vector<16x128xf32>
    %c0_44 = arith.constant 0 : index
    %c0_45 = arith.constant 0 : index
    %38 = vector.load %arg6[%c0_44, %c0_45] : memref<1x128xf32, #tpu.memory_space<vmem>>, vector<1x128xf32>
    %39 = vector.broadcast %38 : vector<1x128xf32> to vector<16x128xf32>
    %40 = arith.addf %37, %39 : vector<16x128xf32>
    %41 = arith.truncf %40 : vector<16x128xf32> to vector<16x128xbf16>
    %c0_46 = arith.constant 0 : index
    %c0_47 = arith.constant 0 : index
    %c0_48 = arith.constant 0 : index
    %42 = vector.load %arg7[%c0_46, %c0_47, %c0_48] : memref<1x16x128xbf16, #tpu.memory_space<vmem>>, vector<1x16x128xbf16>
    %43 = vector.shape_cast %42 : vector<1x16x128xbf16> to vector<16x128xbf16>
    %44 = vector.shape_cast %41 : vector<16x128xbf16> to vector<1x16x128xbf16>
    tpu.vector_store %arg7[%c0_46, %c0_47, %c0_48], %44 {strides = array<i32>} : memref<1x16x128xbf16, #tpu.memory_space<vmem>>, vector<1x16x128xbf16>,
    %cst_49 = arith.constant dense<0.000000e+00> : vector<128xf32>
    %45 = vector.multi_reduction <add>, %40, %cst_49 [0] : vector<16x128xf32> to vector<128xf32>
    %46 = vector.shape_cast %45 : vector<128xf32> to vector<1x128xf32>
    %47 = arith.mulf %40, %40 : vector<16x128xf32>
    %cst_50 = arith.constant dense<0.000000e+00> : vector<128xf32>
    %48 = vector.multi_reduction <add>, %47, %cst_50 [0] : vector<16x128xf32> to vector<128xf32>
    %49 = vector.shape_cast %48 : vector<128xf32> to vector<1x128xf32>
    %50 = tpu.concatenate %46, %49 in 0 : vector<1x128xf32>, vector<1x128xf32> -> vector<2x128xf32>
    %c0_51 = arith.constant 0 : index
    %c0_52 = arith.constant 0 : index
    %c0_53 = arith.constant 0 : index
    %51 = vector.load %arg8[%c0_51, %c0_52, %c0_53] : memref<1x2x128xf32, #tpu.memory_space<vmem>>, vector<1x2x128xf32>
    %52 = vector.shape_cast %51 : vector<1x2x128xf32> to vector<2x128xf32>
    %53 = vector.shape_cast %50 : vector<2x128xf32> to vector<1x2x128xf32>
    tpu.vector_store %arg8[%c0_51, %c0_52, %c0_53], %53 {strides = array<i32>} : memref<1x2x128xf32, #tpu.memory_space<vmem>>, vector<1x2x128xf32>,
    return
  }
  func.func @transform_0(%arg0: i32, %arg1: i32) -> (i32, i32, i32) {
    %c1_i32 = arith.constant 1 : i32
    %0 = arith.muli %arg0, %c1_i32 : i32
    %c0_i32 = arith.constant 0 : i32
    %1 = arith.addi %0, %c0_i32 : i32
    %c0_i32_0 = arith.constant 0 : i32
    %c0_i32_1 = arith.constant 0 : i32
    %c0_i32_2 = arith.constant 0 : i32
    return %1, %c0_i32_0, %c0_i32_1 : i32, i32, i32
  }
  func.func @transform_1(%arg0: i32, %arg1: i32) -> (i32, i32, i32) {
    %c1_i32 = arith.constant 1 : i32
    %0 = arith.muli %arg0, %c1_i32 : i32
    %c1_i32_0 = arith.constant 1 : i32
    %1 = arith.addi %0, %c1_i32_0 : i32
    %c0_i32 = arith.constant 0 : i32
    %c0_i32_1 = arith.constant 0 : i32
    %c0_i32_2 = arith.constant 0 : i32
    return %1, %c0_i32, %c0_i32_1 : i32, i32, i32
  }
  func.func @transform_2(%arg0: i32, %arg1: i32) -> (i32, i32, i32) {
    %c1_i32 = arith.constant 1 : i32
    %0 = arith.muli %arg0, %c1_i32 : i32
    %c2_i32 = arith.constant 2 : i32
    %1 = arith.addi %0, %c2_i32 : i32
    %c0_i32 = arith.constant 0 : i32
    %c0_i32_0 = arith.constant 0 : i32
    %c0_i32_1 = arith.constant 0 : i32
    return %1, %c0_i32, %c0_i32_0 : i32, i32, i32
  }
  func.func @transform_3(%arg0: i32, %arg1: i32) -> (i32, i32, i32) {
    %c0_i32 = arith.constant 0 : i32
    %c0_i32_0 = arith.constant 0 : i32
    %c0_i32_1 = arith.constant 0 : i32
    return %c0_i32, %c0_i32_0, %arg1 : i32, i32, i32
  }
  func.func @transform_4(%arg0: i32, %arg1: i32) -> (i32, i32) {
    %c0_i32 = arith.constant 0 : i32
    %c0_i32_0 = arith.constant 0 : i32
    return %c0_i32, %arg1 : i32, i32
  }
  func.func @transform_5(%arg0: i32, %arg1: i32) -> (i32, i32, i32) {
    %c0_i32 = arith.constant 0 : i32
    %c0_i32_0 = arith.constant 0 : i32
    return %arg0, %c0_i32, %arg1 : i32, i32, i32
  }
  func.func @transform_6(%arg0: i32, %arg1: i32) -> (i32, i32, i32) {
    %c0_i32 = arith.constant 0 : i32
    %c0_i32_0 = arith.constant 0 : i32
    return %arg0, %c0_i32, %arg1 : i32, i32, i32
  }
}

module attributes {stable_mosaic.version = 11 : i64} {
  func.func @_final_add_kernel(%arg0: i32, %arg1: memref<1x16x128xbf16, #tpu.memory_space<vmem>>, %arg2: memref<1x16x128xbf16, #tpu.memory_space<vmem>>, %arg3: memref<1x128xf32, #tpu.memory_space<vmem>>, %arg4: memref<1x128xf32, #tpu.memory_space<vmem>>, %arg5: memref<1x128xf32, #tpu.memory_space<vmem>>, %arg6: memref<1x128xf32, #tpu.memory_space<vmem>>, %arg7: memref<1x16x128xf32, #tpu.memory_space<vmem>>) attributes {dimension_semantics = [#tpu.dimension_semantics<parallel>], iteration_bounds = array<i64: 8>, scalar_prefetch = 0 : i64, scratch_operands = 0 : i64, tpu.core_type = #tpu.core_type<tc>, window_params = [{transform_indices = @transform_0, window_bounds = array<i64: 1, 16, 128>}, {transform_indices = @transform_1, window_bounds = array<i64: 1, 16, 128>}, {pipeline_mode = #tpu.pipeline_mode<synchronous>, transform_indices = @transform_2, window_bounds = array<i64: 1, 128>}, {pipeline_mode = #tpu.pipeline_mode<synchronous>, transform_indices = @transform_3, window_bounds = array<i64: 1, 128>}, {pipeline_mode = #tpu.pipeline_mode<synchronous>, transform_indices = @transform_4, window_bounds = array<i64: 1, 128>}, {pipeline_mode = #tpu.pipeline_mode<synchronous>, transform_indices = @transform_5, window_bounds = array<i64: 1, 128>}, {transform_indices = @transform_6, window_bounds = array<i64: 1, 16, 128>}]} {
    %c0 = arith.constant 0 : index
    %c0_0 = arith.constant 0 : index
    %c0_1 = arith.constant 0 : index
    %0 = vector.load %arg1[%c0, %c0_0, %c0_1] : memref<1x16x128xbf16, #tpu.memory_space<vmem>>, vector<1x16x128xbf16>
    %1 = vector.shape_cast %0 : vector<1x16x128xbf16> to vector<16x128xbf16>
    %2 = arith.extf %1 : vector<16x128xbf16> to vector<16x128xf32>
    %c0_2 = arith.constant 0 : index
    %c0_3 = arith.constant 0 : index
    %3 = vector.load %arg3[%c0_2, %c0_3] : memref<1x128xf32, #tpu.memory_space<vmem>>, vector<1x128xf32>
    %4 = vector.broadcast %3 : vector<1x128xf32> to vector<16x128xf32>
    %5 = arith.mulf %2, %4 : vector<16x128xf32>
    %c0_4 = arith.constant 0 : index
    %c0_5 = arith.constant 0 : index
    %6 = vector.load %arg4[%c0_4, %c0_5] : memref<1x128xf32, #tpu.memory_space<vmem>>, vector<1x128xf32>
    %7 = vector.broadcast %6 : vector<1x128xf32> to vector<16x128xf32>
    %8 = arith.addf %5, %7 : vector<16x128xf32>
    %cst = arith.constant 0.000000e+00 : f32
    %9 = vector.broadcast %cst : f32 to vector<16x128xf32>
    %10 = arith.maximumf %8, %9 : vector<16x128xf32>
    %c0_6 = arith.constant 0 : index
    %c0_7 = arith.constant 0 : index
    %c0_8 = arith.constant 0 : index
    %11 = vector.load %arg2[%c0_6, %c0_7, %c0_8] : memref<1x16x128xbf16, #tpu.memory_space<vmem>>, vector<1x16x128xbf16>
    %12 = vector.shape_cast %11 : vector<1x16x128xbf16> to vector<16x128xbf16>
    %13 = arith.extf %12 : vector<16x128xbf16> to vector<16x128xf32>
    %c0_9 = arith.constant 0 : index
    %c0_10 = arith.constant 0 : index
    %14 = vector.load %arg5[%c0_9, %c0_10] : memref<1x128xf32, #tpu.memory_space<vmem>>, vector<1x128xf32>
    %15 = vector.broadcast %14 : vector<1x128xf32> to vector<16x128xf32>
    %16 = arith.mulf %13, %15 : vector<16x128xf32>
    %c0_11 = arith.constant 0 : index
    %c0_12 = arith.constant 0 : index
    %17 = vector.load %arg6[%c0_11, %c0_12] : memref<1x128xf32, #tpu.memory_space<vmem>>, vector<1x128xf32>
    %18 = vector.broadcast %17 : vector<1x128xf32> to vector<16x128xf32>
    %19 = arith.addf %16, %18 : vector<16x128xf32>
    %20 = arith.addf %10, %19 : vector<16x128xf32>
    %c0_13 = arith.constant 0 : index
    %c0_14 = arith.constant 0 : index
    %c0_15 = arith.constant 0 : index
    %21 = vector.load %arg7[%c0_13, %c0_14, %c0_15] : memref<1x16x128xf32, #tpu.memory_space<vmem>>, vector<1x16x128xf32>
    %22 = vector.shape_cast %21 : vector<1x16x128xf32> to vector<16x128xf32>
    %23 = vector.shape_cast %20 : vector<16x128xf32> to vector<1x16x128xf32>
    tpu.vector_store %arg7[%c0_13, %c0_14, %c0_15], %23 {strides = array<i32>} : memref<1x16x128xf32, #tpu.memory_space<vmem>>, vector<1x16x128xf32>,
    return
  }
  func.func @transform_0(%arg0: i32) -> (i32, i32, i32) {
    %c0_i32 = arith.constant 0 : i32
    %c0_i32_0 = arith.constant 0 : i32
    %c0_i32_1 = arith.constant 0 : i32
    return %arg0, %c0_i32, %c0_i32_0 : i32, i32, i32
  }
  func.func @transform_1(%arg0: i32) -> (i32, i32, i32) {
    %c0_i32 = arith.constant 0 : i32
    %c0_i32_0 = arith.constant 0 : i32
    %c0_i32_1 = arith.constant 0 : i32
    return %arg0, %c0_i32, %c0_i32_0 : i32, i32, i32
  }
  func.func @transform_2(%arg0: i32) -> (i32, i32) {
    %c0_i32 = arith.constant 0 : i32
    %c0_i32_0 = arith.constant 0 : i32
    %c0_i32_1 = arith.constant 0 : i32
    return %c0_i32, %c0_i32_0 : i32, i32
  }
  func.func @transform_3(%arg0: i32) -> (i32, i32) {
    %c0_i32 = arith.constant 0 : i32
    %c0_i32_0 = arith.constant 0 : i32
    %c0_i32_1 = arith.constant 0 : i32
    return %c0_i32, %c0_i32_0 : i32, i32
  }
  func.func @transform_4(%arg0: i32) -> (i32, i32) {
    %c0_i32 = arith.constant 0 : i32
    %c0_i32_0 = arith.constant 0 : i32
    %c0_i32_1 = arith.constant 0 : i32
    return %c0_i32, %c0_i32_0 : i32, i32
  }
  func.func @transform_5(%arg0: i32) -> (i32, i32) {
    %c0_i32 = arith.constant 0 : i32
    %c0_i32_0 = arith.constant 0 : i32
    %c0_i32_1 = arith.constant 0 : i32
    return %c0_i32, %c0_i32_0 : i32, i32
  }
  func.func @transform_6(%arg0: i32) -> (i32, i32, i32) {
    %c0_i32 = arith.constant 0 : i32
    %c0_i32_0 = arith.constant 0 : i32
    %c0_i32_1 = arith.constant 0 : i32
    return %arg0, %c0_i32, %c0_i32_0 : i32, i32, i32
  }
}

module attributes {stable_mosaic.version = 11 : i64} {
  func.func @kernel(%arg0: i32, %arg1: i32, %arg2: memref<1x32x128xbf16, #tpu.memory_space<vmem>>, %arg3: memref<1x128x128xbf16, #tpu.memory_space<vmem>>, %arg4: memref<1x128xf32, #tpu.memory_space<vmem>>, %arg5: memref<1x16x128xbf16, #tpu.memory_space<vmem>>, %arg6: memref<1x2x128xf32, #tpu.memory_space<vmem>>, %arg7: memref<16x128xf32, #tpu.memory_space<vmem>>) attributes {dimension_semantics = [#tpu.dimension_semantics<parallel>, #tpu.dimension_semantics<parallel>], iteration_bounds = array<i64: 8, 1>, scalar_prefetch = 0 : i64, scratch_operands = 1 : i64, tpu.core_type = #tpu.core_type<tc>, window_params = [{transform_indices = @transform_0, window_bounds = array<i64: 1, 32, 128>}, {transform_indices = @transform_1, window_bounds = array<i64: 1, 128, 128>}, {transform_indices = @transform_2, window_bounds = array<i64: 1, 128>}, {transform_indices = @transform_3, window_bounds = array<i64: 1, 16, 128>}, {transform_indices = @transform_4, window_bounds = array<i64: 1, 2, 128>}]} {
    %c0 = arith.constant 0 : index
    %c0_0 = arith.constant 0 : index
    %c0_1 = arith.constant 0 : index
    %0 = vector.load %arg2[%c0, %c0_0, %c0_1] : memref<1x32x128xbf16, #tpu.memory_space<vmem>>, vector<1x16x128xbf16>
    %1 = vector.shape_cast %0 : vector<1x16x128xbf16> to vector<16x128xbf16>
    %c0_2 = arith.constant 0 : index
    %c0_3 = arith.constant 0 : index
    %c0_4 = arith.constant 0 : index
    %2 = vector.load %arg3[%c0_2, %c0_3, %c0_4] : memref<1x128x128xbf16, #tpu.memory_space<vmem>>, vector<1x128x128xbf16>
    %3 = vector.shape_cast %2 : vector<1x128x128xbf16> to vector<128x128xbf16>
    %cst = arith.constant dense<0.000000e+00> : vector<16x128xf32>
    %4 = tpu.matmul %1, %3, %cst {dimension_numbers = #tpu.dot_dimension_numbers<[1], [0], [0], [1], [0, 0, 1, 1], [], []>} : vector<16x128xbf16>, vector<128x128xbf16>, vector<16x128xf32> -> vector<16x128xf32>
    %c0_5 = arith.constant 0 : index
    %c0_6 = arith.constant 0 : index
    %5 = vector.load %arg7[%c0_5, %c0_6] : memref<16x128xf32, #tpu.memory_space<vmem>>, vector<16x128xf32>
    tpu.vector_store %arg7[%c0_5, %c0_6], %4 {strides = array<i32>} : memref<16x128xf32, #tpu.memory_space<vmem>>, vector<16x128xf32>,
    %c0_7 = arith.constant 0 : index
    %c0_8 = arith.constant 0 : index
    %6 = vector.load %arg7[%c0_7, %c0_8] : memref<16x128xf32, #tpu.memory_space<vmem>>, vector<16x128xf32>
    %c0_9 = arith.constant 0 : index
    %c0_10 = arith.constant 0 : index
    %7 = vector.load %arg4[%c0_9, %c0_10] : memref<1x128xf32, #tpu.memory_space<vmem>>, vector<1x128xf32>
    %8 = vector.broadcast %7 : vector<1x128xf32> to vector<16x128xf32>
    %9 = arith.addf %6, %8 : vector<16x128xf32>
    %10 = arith.truncf %9 : vector<16x128xf32> to vector<16x128xbf16>
    %c0_11 = arith.constant 0 : index
    %c0_12 = arith.constant 0 : index
    %c0_13 = arith.constant 0 : index
    %11 = vector.load %arg5[%c0_11, %c0_12, %c0_13] : memref<1x16x128xbf16, #tpu.memory_space<vmem>>, vector<1x16x128xbf16>
    %12 = vector.shape_cast %11 : vector<1x16x128xbf16> to vector<16x128xbf16>
    %13 = vector.shape_cast %10 : vector<16x128xbf16> to vector<1x16x128xbf16>
    tpu.vector_store %arg5[%c0_11, %c0_12, %c0_13], %13 {strides = array<i32>} : memref<1x16x128xbf16, #tpu.memory_space<vmem>>, vector<1x16x128xbf16>,
    %cst_14 = arith.constant dense<0.000000e+00> : vector<128xf32>
    %14 = vector.multi_reduction <add>, %9, %cst_14 [0] : vector<16x128xf32> to vector<128xf32>
    %15 = vector.shape_cast %14 : vector<128xf32> to vector<1x128xf32>
    %16 = arith.mulf %9, %9 : vector<16x128xf32>
    %cst_15 = arith.constant dense<0.000000e+00> : vector<128xf32>
    %17 = vector.multi_reduction <add>, %16, %cst_15 [0] : vector<16x128xf32> to vector<128xf32>
    %18 = vector.shape_cast %17 : vector<128xf32> to vector<1x128xf32>
    %19 = tpu.concatenate %15, %18 in 0 : vector<1x128xf32>, vector<1x128xf32> -> vector<2x128xf32>
    %c0_16 = arith.constant 0 : index
    %c0_17 = arith.constant 0 : index
    %c0_18 = arith.constant 0 : index
    %20 = vector.load %arg6[%c0_16, %c0_17, %c0_18] : memref<1x2x128xf32, #tpu.memory_space<vmem>>, vector<1x2x128xf32>
    %21 = vector.shape_cast %20 : vector<1x2x128xf32> to vector<2x128xf32>
    %22 = vector.shape_cast %19 : vector<2x128xf32> to vector<1x2x128xf32>
    tpu.vector_store %arg6[%c0_16, %c0_17, %c0_18], %22 {strides = array<i32>} : memref<1x2x128xf32, #tpu.memory_space<vmem>>, vector<1x2x128xf32>,
    return
  }
  func.func @transform_0(%arg0: i32, %arg1: i32) -> (i32, i32, i32) {
    %c2_i32 = arith.constant 2 : i32
    %0 = arith.muli %arg0, %c2_i32 : i32
    %c0_i32 = arith.constant 0 : i32
    %1 = arith.addi %0, %c0_i32 : i32
    %c0_i32_0 = arith.constant 0 : i32
    %c0_i32_1 = arith.constant 0 : i32
    %c0_i32_2 = arith.constant 0 : i32
    return %1, %c0_i32_0, %c0_i32_1 : i32, i32, i32
  }
  func.func @transform_1(%arg0: i32, %arg1: i32) -> (i32, i32, i32) {
    %c0_i32 = arith.constant 0 : i32
    %c0_i32_0 = arith.constant 0 : i32
    %c0_i32_1 = arith.constant 0 : i32
    return %c0_i32, %c0_i32_0, %arg1 : i32, i32, i32
  }
  func.func @transform_2(%arg0: i32, %arg1: i32) -> (i32, i32) {
    %c0_i32 = arith.constant 0 : i32
    %c0_i32_0 = arith.constant 0 : i32
    return %c0_i32, %arg1 : i32, i32
  }
  func.func @transform_3(%arg0: i32, %arg1: i32) -> (i32, i32, i32) {
    %c0_i32 = arith.constant 0 : i32
    %c0_i32_0 = arith.constant 0 : i32
    return %arg0, %c0_i32, %arg1 : i32, i32, i32
  }
  func.func @transform_4(%arg0: i32, %arg1: i32) -> (i32, i32, i32) {
    %c0_i32 = arith.constant 0 : i32
    %c0_i32_0 = arith.constant 0 : i32
    return %arg0, %c0_i32, %arg1 : i32, i32, i32
  }
}

</mosaic_0001>

<llo_original>
// kernel: res_block.8
$region0: #{res_block.8}
  #allocation0 [shape = 'u32[]', space=smem, size = 0x4, offset = 0x4, fixed_abs, tag = 'smem constant byte address 0x4 - core index']
  #allocation1 [shape = 'u32[72,128]{1,0:T(1,128)}', space=vmem, size = 0x9000, scoped, tag = 'internal scratch']
  %s0 = inlined_call_operand.vmem [shape: bf16[8,16,128], index: 0, kind: input, shape index: {}]
  %s1 = inlined_call_operand.vmem [shape: f32[1,128], index: 1, kind: input, shape index: {}]
  %s2 = inlined_call_operand.vmem [shape: f32[1,128], index: 2, kind: input, shape index: {}]
  %s3 = inlined_call_operand.vmem [shape: bf16[10,34,128], index: 3, kind: output, shape index: {}]
  %s4 = sld [smem:[#allocation0]]
  $region49: #{res_block.8} parent=0
    _
  %s6 = ssub.s32 1, %s4
  %s7 = scalar_select 0, %s6, %s4
  loop: start=0, step=1, limit=12
  $region2: #{res_block.8} parent=0 // loop_pre_header
    _
  $region3: #{res_block.8} parent=0 // loop_header
    %s9 = sphi 0, %s13
    %p10 = scmp.ge.s32.totalorder %s9, 12
    %s29 = sphi 0, %s31
    %s32 = sphi 0, %s29
    %s33 = sphi 0, %s32
    %s49 = sphi 0, %s33
    %s53 = sphi 0, %s53
    %s55 = sphi 0, %s53
    %s56 = sphi 0, %s55
    %s70 = sphi 0, %s56
    %s74 = sphi 0, %s74
    %s76 = sphi 0, %s74
    %s77 = sphi 0, %s76
    %s91 = sphi 0, %s77
    %s97 = sphi 0, %s99
    %s100 = sphi 0, %s97
    %s101 = sphi 0, %s100
    %s117 = sphi 0, %s101
  $region4: #{res_block.8} parent=0 // loop_header_branch
    %12 = sbr.rel (%p10) target = $region8
  $region5: #{res_block.8} parent=0 // loop_body
    %s14 = ssub.s32 %s9, 1
    %s15 = ssub.s32 %s9, 2
    %s16 = sadd.s32 %s9, 1
    %s17 = ssub.s32 %s9, 1
    %p18 = scmp.gt.s32.totalorder %s17, 0
    %s19 = scalar_select %p18, %s17, 0
    %p20 = scmp.lt.s32.totalorder %s19, 7
    %s21 = scalar_select %p20, %s19, 7
    %s22 = ssub.s32 %s16, 1
    %p23 = scmp.gt.s32.totalorder %s22, 0
    %s24 = scalar_select %p23, %s22, 0
    %p25 = scmp.lt.s32.totalorder %s24, 7
    %s26 = scalar_select %p25, %s24, 7
    %s27 = ssub.s32 %s21, %s26
    %p28 = scmp.eq.s32.totalorder %s27, 0
    %s30 = sadd.s32 %s29, 1
    %s31 = scalar_select %p28, %s29, %s30
    %p34 = pneg %p28
    %p35 = scmp.eq.s32.totalorder %s9, 9
    %p36 = por %p34, %p35
    %p37 = scmp.ne.s32.totalorder %s29, %s32
    %p38 = scmp.eq.s32.totalorder %s9, 0
    %p39 = por %p37, %p38
    %p40 = scmp.ne.s32.totalorder %s29, %s32
    %p41 = scmp.eq.s32.totalorder %s14, 9
    %p42 = por %p40, %p41
    %p43 = scmp.ne.s32.totalorder %s32, %s33
    %p44 = scmp.eq.s32.totalorder %s14, 0
    %p45 = por %p43, %p44
    %p46 = scmp.ne.s32.totalorder %s32, %s33
    %p47 = scmp.eq.s32.totalorder %s15, 9
    %p48 = por %p46, %p47
    %p50 = scmp.ne.s32.totalorder %s33, %s49
    %p51 = scmp.eq.s32.totalorder %s15, 0
    %p52 = por %p50, %p51
    %s54 = sadd.s32 %s53, 1
    %p57 = scmp.eq.s32.totalorder %s9, 9
    %p58 = scmp.ne.s32.totalorder %s53, %s55
    %p59 = scmp.eq.s32.totalorder %s9, 0
    %p60 = por %p58, %p59
    %p61 = scmp.ne.s32.totalorder %s53, %s55
    %p62 = scmp.eq.s32.totalorder %s14, 9
    %p63 = por %p61, %p62
    %p64 = scmp.ne.s32.totalorder %s55, %s56
    %p65 = scmp.eq.s32.totalorder %s14, 0
    %p66 = por %p64, %p65
    %p67 = scmp.ne.s32.totalorder %s55, %s56
    %p68 = scmp.eq.s32.totalorder %s15, 9
    %p69 = por %p67, %p68
    %p71 = scmp.ne.s32.totalorder %s56, %s70
    %p72 = scmp.eq.s32.totalorder %s15, 0
    %p73 = por %p71, %p72
    %s75 = sadd.s32 %s74, 1
    %p78 = scmp.eq.s32.totalorder %s9, 9
    %p79 = scmp.ne.s32.totalorder %s74, %s76
    %p80 = scmp.eq.s32.totalorder %s9, 0
    %p81 = por %p79, %p80
    %p82 = scmp.ne.s32.totalorder %s74, %s76
    %p83 = scmp.eq.s32.totalorder %s14, 9
    %p84 = por %p82, %p83
    %p85 = scmp.ne.s32.totalorder %s76, %s77
    %p86 = scmp.eq.s32.totalorder %s14, 0
    %p87 = por %p85, %p86
    %p88 = scmp.ne.s32.totalorder %s76, %s77
    %p89 = scmp.eq.s32.totalorder %s15, 9
    %p90 = por %p88, %p89
    %p92 = scmp.ne.s32.totalorder %s77, %s91
    %p93 = scmp.eq.s32.totalorder %s15, 0
    %p94 = por %p92, %p93
    %s95 = ssub.s32 %s9, %s16
    %p96 = scmp.eq.s32.totalorder %s95, 0
    %s98 = sadd.s32 %s97, 1
    %s99 = scalar_select %p96, %s97, %s98
    %p102 = pneg %p96
    %p103 = scmp.eq.s32.totalorder %s9, 9
    %p104 = por %p102, %p103
    %p105 = scmp.ne.s32.totalorder %s97, %s100
    %p106 = scmp.eq.s32.totalorder %s9, 0
    %p107 = por %p105, %p106
    %p108 = scmp.ne.s32.totalorder %s97, %s100
    %p109 = scmp.eq.s32.totalorder %s14, 9
    %p110 = por %p108, %p109
    %p111 = scmp.ne.s32.totalorder %s100, %s101
    %p112 = scmp.eq.s32.totalorder %s14, 0
    %p113 = por %p111, %p112
    %p114 = scmp.ne.s32.totalorder %s100, %s101
    %p115 = scmp.eq.s32.totalorder %s15, 9
    %p116 = por %p114, %p115
    %p118 = scmp.ne.s32.totalorder %s101, %s117
    %p119 = scmp.eq.s32.totalorder %s15, 0
    %p120 = por %p118, %p119
    %p121 = scmp.le.s32.totalorder 1, %s9
    %p122 = scmp.lt.s32.totalorder %s9, 11
    %p123 = pnand %p121, %p122
    %p124 = pneg %p123
    // Predicated region
    $region9: #{res_block.8} parent=5 // pred_check
      _
    $region10: #{res_block.8} parent=5 // pred_check_branch
      %126 = sbr.rel (%p123) target = $region12
    $region11: #{res_block.8} parent=5 // pred_region
      %s127 = ssub.s32 %s9, 1
      // Predicated region
      $region13: #{res_block.8} parent=11 // pred_check
        %p128 = pneg %p66
      $region14: #{res_block.8} parent=11 // pred_check_branch
        %130 = sbr.rel (%p128) target = $region16
      $region15: #{res_block.8} parent=11 // pred_region
        _
      $region16: #{res_block.8} parent=11 // pred_fallthru
        _
      // Predicated region
      $region17: #{res_block.8} parent=11 // pred_check
        %p131 = pneg %p87
      $region18: #{res_block.8} parent=11 // pred_check_branch
        %133 = sbr.rel (%p131) target = $region20
      $region19: #{res_block.8} parent=11 // pred_region
        _
      $region20: #{res_block.8} parent=11 // pred_fallthru
        _
    $region12: #{res_block.8} parent=5 // pred_fallthru
      _
    %p134 = scmp.lt.s32.totalorder %s9, 10
    // Predicated region
    $region21: #{res_block.8} parent=5 // pred_check
      %p135 = pneg %p134
    $region22: #{res_block.8} parent=5 // pred_check_branch
      %137 = sbr.rel (%p135) target = $region24
    $region23: #{res_block.8} parent=5 // pred_region
      // Predicated region
      $region25: #{res_block.8} parent=23 // pred_check
        %p138 = pneg %p39
      $region26: #{res_block.8} parent=23 // pred_check_branch
        %140 = sbr.rel (%p138) target = $region28
      $region27: #{res_block.8} parent=23 // pred_region
        %s141 = ssub.s32 %s9, 1
        %p142 = scmp.gt.s32.totalorder %s141, 0
        %s143 = scalar_select %p142, %s141, 0
        %p144 = scmp.lt.s32.totalorder %s143, 7
        %s145 = scalar_select %p144, %s143, 7
        %p146 = scmp.lt.s32.totalorder %s145, 7
        %s147 = scalar_select %p146, %s145, 7
        %s148 = smul.addr %s147, 2
        %s149 = smul.addr %s148, 4
        %s150 = scalar_lea.vmem %s0, %s149
        %s151 = ssub.s32 %s9, 1
        %p152 = scmp.gt.s32.totalorder %s151, 0
        %s153 = scalar_select %p152, %s151, 0
        %p154 = scmp.lt.s32.totalorder %s153, 7
        %s155 = scalar_select %p154, %s153, 7
      $region28: #{res_block.8} parent=23 // pred_fallthru
        _
    $region24: #{res_block.8} parent=5 // pred_fallthru
      _
    %p156 = scmp.le.s32.totalorder 1, %s9
    %p157 = scmp.lt.s32.totalorder %s9, 11
    %p158 = pnand %p156, %p157
    %p159 = pneg %p158
    // Predicated region
    $region29: #{res_block.8} parent=5 // pred_check
      _
    $region30: #{res_block.8} parent=5 // pred_check_branch
      %161 = sbr.rel (%p158) target = $region32
    $region31: #{res_block.8} parent=5 // pred_region
      %s162 = ssub.s32 %s9, 1
      %s163 = ssub.s32 %s14, 1
      %p164 = scmp.gt.s32.totalorder %s163, 0
      %s165 = scalar_select %p164, %s163, 0
      %p166 = scmp.lt.s32.totalorder %s165, 7
      %s167 = scalar_select %p166, %s165, 7
      %p168 = scmp.lt.s32.totalorder %s167, 7
      %s169 = scalar_select %p168, %s167, 7
      %s170 = smul.addr %s169, 2
      %s171 = smul.addr %s170, 4
      %s172 = scalar_lea.vmem %s0, %s171
      %p173 = pneg %p45
      %p174 = pneg %p42
      %p175 = pneg %p66
      %p176 = pneg %p63
      %p177 = pneg %p87
      %p178 = pneg %p84
      %p179 = pneg %p113
      %p180 = pneg %p110
      %p181 = scmp.lt.s32.totalorder %s14, 9
      %s182 = scalar_select %p181, %s14, 9
      %s183 = smul.addr %s182, 5
      %s184 = smul.addr %s183, 4
      %s185 = scalar_lea.vmem %s3, %s184
      %s186 = ssub.s32 %s14, 1
      %p187 = scmp.gt.s32.totalorder %s186, 0
      %s188 = scalar_select %p187, %s186, 0
      %p189 = scmp.lt.s32.totalorder %s188, 7
      %s190 = scalar_select %p189, %s188, 7
      %p191 = scmp.lt.s32.totalorder %s190, 7
      %s192 = scalar_select %p191, %s190, 7
      %s193 = smul.addr %s192, 2
      %s194 = smul.addr %s193, 4
      %s195 = scalar_lea.vmem %s0, %s194
      %s196 = ssub.s32 %s14, 1
      %p197 = scmp.gt.s32.totalorder %s196, 0
      %s198 = scalar_select %p197, %s196, 0
      %p199 = scmp.lt.s32.totalorder %s198, 7
      %s200 = scalar_select %p199, %s198, 7
      %p201 = scmp.lt.s32.totalorder %s14, 9
      %s202 = scalar_select %p201, %s14, 9
      %s203 = smul.addr %s202, 5
      %s204 = smul.addr %s203, 4
      %s205 = scalar_lea.vmem %s3, %s204
      %207 = vst [vmem:[%s205] sm:$0xf] 0
      %208 = vst [vmem:[%s205 + $0x4] sm:$0xf] 0
      %209 = vst [vmem:[%s205 + $0x8] sm:$0xf] 0
      %210 = vst [vmem:[%s205 + $0xc] sm:$0xf] 0
      %211 = vst [vmem:[%s205 + $0x10] sm:$0x1] 0
      %p212 = scmp.ge.s32.totalorder %s14, 1
      %p213 = scmp.le.s32.totalorder %s14, 8
      %p214 = pnand %p212, %p213
      %p215 = pneg %p214
      // Predicated region
      $region33: #{res_block.8} parent=31 // pred_check
        _
      $region34: #{res_block.8} parent=31 // pred_check_branch
        %217 = sbr.rel (%p214) target = $region36
      $region35: #{res_block.8} parent=31 // pred_region
        %v218 = vld [vmem:[%s195] sm:$0xf]
        %v219 = vld [vmem:[%s195 + $0x4] sm:$0xf]
        %v220 = vunpack.c.l.bf16 %v218
        %v221 = vunpack.c.l.bf16 %v219
        %v222 = vld [vmem:[%s1] sm:$0x1]
        %v224 = vperm.slane %v222, 0
        %v226 = vmul.f32 %v220, %v224
        %v227 = vmul.f32 %v221, %v224
        %v228 = vld [vmem:[%s2] sm:$0x1]
        %v230 = vperm.slane %v228, 0
        %v232 = vadd.f32 %v226, %v230
        %v233 = vadd.f32 %v227, %v230
        %v234 = vmax.f32 %v232, 0.0
        %v235 = vmax.f32 %v233, 0.0
        %v236 = vpack.c.bf16 %v234, %v234
        %v237 = vpack.c.bf16 %v235, %v235
        %238 = vst [vmem:[%s205 + $0x8] sm:$0xf] %v236
        %239 = vst [vmem:[%s205 + $0xc] sm:$0xf] %v237
      $region36: #{res_block.8} parent=31 // pred_fallthru
        _
      %p240 = scmp.lt.s32.totalorder %s14, 9
      %s241 = scalar_select %p240, %s14, 9
      %s242 = smul.addr %s241, 5
      %s243 = smul.addr %s242, 4
      %s244 = scalar_lea.vmem %s3, %s243
      // Predicated region
      $region37: #{res_block.8} parent=31 // pred_check
        %p245 = pneg %p110
      $region38: #{res_block.8} parent=31 // pred_check_branch
        %247 = sbr.rel (%p245) target = $region40
      $region39: #{res_block.8} parent=31 // pred_region
        _
      $region40: #{res_block.8} parent=31 // pred_fallthru
        _
    $region32: #{res_block.8} parent=5 // pred_fallthru
      _
    %p248 = scmp.le.s32.totalorder 2, %s9
    // Predicated region
    $region41: #{res_block.8} parent=5 // pred_check
      %p249 = pneg %p248
    $region42: #{res_block.8} parent=5 // pred_check_branch
      %251 = sbr.rel (%p249) target = $region44
    $region43: #{res_block.8} parent=5 // pred_region
      %s252 = ssub.s32 %s9, 2
      // Predicated region
      $region45: #{res_block.8} parent=43 // pred_check
        %p253 = pneg %p116
      $region46: #{res_block.8} parent=43 // pred_check_branch
        %255 = sbr.rel (%p253) target = $region48
      $region47: #{res_block.8} parent=43 // pred_region
        %p256 = scmp.lt.s32.totalorder %s15, 9
        %s257 = scalar_select %p256, %s15, 9
        %s258 = smul.addr %s257, 5
        %s259 = smul.addr %s258, 4
        %s260 = scalar_lea.vmem %s3, %s259
      $region48: #{res_block.8} parent=43 // pred_fallthru
        _
    $region44: #{res_block.8} parent=5 // pred_fallthru
      _
  $region6: #{res_block.8} parent=0 // loop_footer
    %s13 = sadd.s32 1, %s9
  $region7: #{res_block.8} parent=0 // loop_footer_branch
    %8 = sbr.rel target = $region3
  $region8: #{res_block.8} parent=0 // loop_exit
    _

// kernel: res_block.7
$region0: #{res_block.7}
  #allocation0 [shape = 'u32[]', space=smem, size = 0x4, offset = 0x4, fixed_abs, tag = 'smem constant byte address 0x4 - core index']
  #allocation1 [shape = 'u32[72,128]{1,0:T(1,128)}', space=vmem, size = 0x9000, scoped, tag = 'internal scratch']
  #allocation2 [shape = 'f32[16,128]{1,0:T(8,128)}', space=vmem, size = 0x2000, scoped, tag = 'scratch operand']
  %s0 = inlined_call_operand.vmem [shape: bf16[18,36,128], index: 0, kind: input, shape index: {}, may-alias: {0,1,2}]
  %s1 = inlined_call_operand.vmem [shape: bf16[18,36,128], index: 1, kind: input, shape index: {}, may-alias: {0,1,2}]
  %s2 = inlined_call_operand.vmem [shape: bf16[18,36,128], index: 2, kind: input, shape index: {}, may-alias: {0,1,2}]
  %s3 = inlined_call_operand.vmem [shape: bf16[3,384,128], index: 3, kind: input, shape index: {}]
  %s4 = inlined_call_operand.vmem [shape: f32[1,128], index: 4, kind: input, shape index: {}]
  %s5 = inlined_call_operand.vmem [shape: bf16[8,16,128], index: 5, kind: output, shape index: {0}]
  %s6 = inlined_call_operand.vmem [shape: f32[8,2,128], index: 6, kind: output, shape index: {1}]
  %7 = xla_tuple %s5, %s6
  %s8 = sld [smem:[#allocation0]]
  $region61: #{res_block.7} parent=0
    _
  %s10 = ssub.s32 1, %s8
  %s11 = scalar_select 0, %s10, %s8
  loop: start=0, step=1, limit=10
  $region2: #{res_block.7} parent=0 // loop_pre_header
    _
  $region3: #{res_block.7} parent=0 // loop_header
    %s13 = sphi 0, %s17
    %p14 = scmp.ge.s32.totalorder %s13, 10
    %s20 = sphi 0, %s32
    %s21 = sphi 0, %s28
    %s22 = sphi 0, %s20
    %s23 = sphi 0, %s21
    %s24 = sphi 0, %s22
    %s25 = sphi 0, %s23
    %s37 = sphi 0, %s39
    %s40 = sphi 0, %s37
    %s41 = sphi 0, %s40
    %s57 = sphi 0, %s41
    %s67 = sphi 0, %s69
    %s70 = sphi 0, %s67
    %s71 = sphi 0, %s70
    %s87 = sphi 0, %s71
    %s97 = sphi 0, %s99
    %s100 = sphi 0, %s97
    %s101 = sphi 0, %s100
    %s117 = sphi 0, %s101
    %s123 = sphi 0, %s125
    %s126 = sphi 0, %s123
    %s127 = sphi 0, %s126
    %s143 = sphi 0, %s127
    %s149 = sphi 0, %s151
    %s152 = sphi 0, %s149
    %s153 = sphi 0, %s152
    %s169 = sphi 0, %s153
    %s177 = sphi 0, %s179
    %s180 = sphi 0, %s177
    %s181 = sphi 0, %s180
    %s197 = sphi 0, %s181
    %s205 = sphi 0, %s207
    %s208 = sphi 0, %s205
    %s209 = sphi 0, %s208
    %s225 = sphi 0, %s209
  $region4: #{res_block.7} parent=0 // loop_header_branch
    %16 = sbr.rel (%p14) target = $region8
  $region5: #{res_block.7} parent=0 // loop_body
    %s18 = ssub.s32 %s13, 1
    %s19 = ssub.s32 %s13, 2
    %s26 = sadd.s32 1, %s21
    %p27 = scmp.ge.s32.totalorder %s26, 1
    %s28 = scalar_select %p27, 0, %s26
    %s29 = sadd.s32 1, %s20
    %s30 = scalar_select %p27, %s29, %s20
    %p31 = scmp.ge.s32.totalorder %s30, 8
    %s32 = scalar_select %p31, 0, %s30
    %s33 = smul.u32 %s20, 2
    %s34 = smul.u32 %s32, 2
    %s35 = ssub.s32 %s33, %s34
    %p36 = scmp.eq.s32.totalorder %s35, 0
    %s38 = sadd.s32 %s37, 1
    %s39 = scalar_select %p36, %s37, %s38
    %p42 = pneg %p36
    %p43 = scmp.eq.s32.totalorder %s13, 7
    %p44 = por %p42, %p43
    %p45 = scmp.ne.s32.totalorder %s37, %s40
    %p46 = scmp.eq.s32.totalorder %s13, 0
    %p47 = por %p45, %p46
    %p48 = scmp.ne.s32.totalorder %s37, %s40
    %p49 = scmp.eq.s32.totalorder %s18, 7
    %p50 = por %p48, %p49
    %p51 = scmp.ne.s32.totalorder %s40, %s41
    %p52 = scmp.eq.s32.totalorder %s18, 0
    %p53 = por %p51, %p52
    %p54 = scmp.ne.s32.totalorder %s40, %s41
    %p55 = scmp.eq.s32.totalorder %s19, 7
    %p56 = por %p54, %p55
    %p58 = scmp.ne.s32.totalorder %s41, %s57
    %p59 = scmp.eq.s32.totalorder %s19, 0
    %p60 = por %p58, %p59
    %s61 = smul.u32 %s20, 2
    %s62 = sadd.s32 %s61, 1
    %s63 = smul.u32 %s32, 2
    %s64 = sadd.s32 %s63, 1
    %s65 = ssub.s32 %s62, %s64
    %p66 = scmp.eq.s32.totalorder %s65, 0
    %s68 = sadd.s32 %s67, 1
    %s69 = scalar_select %p66, %s67, %s68
    %p72 = pneg %p66
    %p73 = scmp.eq.s32.totalorder %s13, 7
    %p74 = por %p72, %p73
    %p75 = scmp.ne.s32.totalorder %s67, %s70
    %p76 = scmp.eq.s32.totalorder %s13, 0
    %p77 = por %p75, %p76
    %p78 = scmp.ne.s32.totalorder %s67, %s70
    %p79 = scmp.eq.s32.totalorder %s18, 7
    %p80 = por %p78, %p79
    %p81 = scmp.ne.s32.totalorder %s70, %s71
    %p82 = scmp.eq.s32.totalorder %s18, 0
    %p83 = por %p81, %p82
    %p84 = scmp.ne.s32.totalorder %s70, %s71
    %p85 = scmp.eq.s32.totalorder %s19, 7
    %p86 = por %p84, %p85
    %p88 = scmp.ne.s32.totalorder %s71, %s87
    %p89 = scmp.eq.s32.totalorder %s19, 0
    %p90 = por %p88, %p89
    %s91 = smul.u32 %s20, 2
    %s92 = sadd.s32 %s91, 2
    %s93 = smul.u32 %s32, 2
    %s94 = sadd.s32 %s93, 2
    %s95 = ssub.s32 %s92, %s94
    %p96 = scmp.eq.s32.totalorder %s95, 0
    %s98 = sadd.s32 %s97, 1
    %s99 = scalar_select %p96, %s97, %s98
    %p102 = pneg %p96
    %p103 = scmp.eq.s32.totalorder %s13, 7
    %p104 = por %p102, %p103
    %p105 = scmp.ne.s32.totalorder %s97, %s100
    %p106 = scmp.eq.s32.totalorder %s13, 0
    %p107 = por %p105, %p106
    %p108 = scmp.ne.s32.totalorder %s97, %s100
    %p109 = scmp.eq.s32.totalorder %s18, 7
    %p110 = por %p108, %p109
    %p111 = scmp.ne.s32.totalorder %s100, %s101
    %p112 = scmp.eq.s32.totalorder %s18, 0
    %p113 = por %p111, %p112
    %p114 = scmp.ne.s32.totalorder %s100, %s101
    %p115 = scmp.eq.s32.totalorder %s19, 7
    %p116 = por %p114, %p115
    %p118 = scmp.ne.s32.totalorder %s101, %s117
    %p119 = scmp.eq.s32.totalorder %s19, 0
    %p120 = por %p118, %p119
    %s121 = ssub.s32 %s21, %s28
    %p122 = scmp.eq.s32.totalorder %s121, 0
    %s124 = sadd.s32 %s123, 1
    %s125 = scalar_select %p122, %s123, %s124
    %p128 = pneg %p122
    %p129 = scmp.eq.s32.totalorder %s13, 7
    %p130 = por %p128, %p129
    %p131 = scmp.ne.s32.totalorder %s123, %s126
    %p132 = scmp.eq.s32.totalorder %s13, 0
    %p133 = por %p131, %p132
    %p134 = scmp.ne.s32.totalorder %s123, %s126
    %p135 = scmp.eq.s32.totalorder %s18, 7
    %p136 = por %p134, %p135
    %p137 = scmp.ne.s32.totalorder %s126, %s127
    %p138 = scmp.eq.s32.totalorder %s18, 0
    %p139 = por %p137, %p138
    %p140 = scmp.ne.s32.totalorder %s126, %s127
    %p141 = scmp.eq.s32.totalorder %s19, 7
    %p142 = por %p140, %p141
    %p144 = scmp.ne.s32.totalorder %s127, %s143
    %p145 = scmp.eq.s32.totalorder %s19, 0
    %p146 = por %p144, %p145
    %s147 = ssub.s32 %s21, %s28
    %p148 = scmp.eq.s32.totalorder %s147, 0
    %s150 = sadd.s32 %s149, 1
    %s151 = scalar_select %p148, %s149, %s150
    %p154 = pneg %p148
    %p155 = scmp.eq.s32.totalorder %s13, 7
    %p156 = por %p154, %p155
    %p157 = scmp.ne.s32.totalorder %s149, %s152
    %p158 = scmp.eq.s32.totalorder %s13, 0
    %p159 = por %p157, %p158
    %p160 = scmp.ne.s32.totalorder %s149, %s152
    %p161 = scmp.eq.s32.totalorder %s18, 7
    %p162 = por %p160, %p161
    %p163 = scmp.ne.s32.totalorder %s152, %s153
    %p164 = scmp.eq.s32.totalorder %s18, 0
    %p165 = por %p163, %p164
    %p166 = scmp.ne.s32.totalorder %s152, %s153
    %p167 = scmp.eq.s32.totalorder %s19, 7
    %p168 = por %p166, %p167
    %p170 = scmp.ne.s32.totalorder %s153, %s169
    %p171 = scmp.eq.s32.totalorder %s19, 0
    %p172 = por %p170, %p171
    %s173 = ssub.s32 %s20, %s32
    %s174 = ssub.s32 %s21, %s28
    %s175 = sor.u32 %s173, %s174
    %p176 = scmp.eq.s32.totalorder %s175, 0
    %s178 = sadd.s32 %s177, 1
    %s179 = scalar_select %p176, %s177, %s178
    %p182 = pneg %p176
    %p183 = scmp.eq.s32.totalorder %s13, 7
    %p184 = por %p182, %p183
    %p185 = scmp.ne.s32.totalorder %s177, %s180
    %p186 = scmp.eq.s32.totalorder %s13, 0
    %p187 = por %p185, %p186
    %p188 = scmp.ne.s32.totalorder %s177, %s180
    %p189 = scmp.eq.s32.totalorder %s18, 7
    %p190 = por %p188, %p189
    %p191 = scmp.ne.s32.totalorder %s180, %s181
    %p192 = scmp.eq.s32.totalorder %s18, 0
    %p193 = por %p191, %p192
    %p194 = scmp.ne.s32.totalorder %s180, %s181
    %p195 = scmp.eq.s32.totalorder %s19, 7
    %p196 = por %p194, %p195
    %p198 = scmp.ne.s32.totalorder %s181, %s197
    %p199 = scmp.eq.s32.totalorder %s19, 0
    %p200 = por %p198, %p199
    %s201 = ssub.s32 %s20, %s32
    %s202 = ssub.s32 %s21, %s28
    %s203 = sor.u32 %s201, %s202
    %p204 = scmp.eq.s32.totalorder %s203, 0
    %s206 = sadd.s32 %s205, 1
    %s207 = scalar_select %p204, %s205, %s206
    %p210 = pneg %p204
    %p211 = scmp.eq.s32.totalorder %s13, 7
    %p212 = por %p210, %p211
    %p213 = scmp.ne.s32.totalorder %s205, %s208
    %p214 = scmp.eq.s32.totalorder %s13, 0
    %p215 = por %p213, %p214
    %p216 = scmp.ne.s32.totalorder %s205, %s208
    %p217 = scmp.eq.s32.totalorder %s18, 7
    %p218 = por %p216, %p217
    %p219 = scmp.ne.s32.totalorder %s208, %s209
    %p220 = scmp.eq.s32.totalorder %s18, 0
    %p221 = por %p219, %p220
    %p222 = scmp.ne.s32.totalorder %s208, %s209
    %p223 = scmp.eq.s32.totalorder %s19, 7
    %p224 = por %p222, %p223
    %p226 = scmp.ne.s32.totalorder %s209, %s225
    %p227 = scmp.eq.s32.totalorder %s19, 0
    %p228 = por %p226, %p227
    %p229 = scmp.le.s32.totalorder 1, %s13
    %p230 = scmp.lt.s32.totalorder %s13, 9
    %p231 = pnand %p229, %p230
    %p232 = pneg %p231
    // Predicated region
    $region9: #{res_block.7} parent=5 // pred_check
      _
    $region10: #{res_block.7} parent=5 // pred_check_branch
      %234 = sbr.rel (%p231) target = $region12
    $region11: #{res_block.7} parent=5 // pred_region
      %s235 = ssub.s32 %s13, 1
      // Predicated region
      $region13: #{res_block.7} parent=11 // pred_check
        %p236 = pneg %p139
      $region14: #{res_block.7} parent=11 // pred_check_branch
        %238 = sbr.rel (%p236) target = $region16
      $region15: #{res_block.7} parent=11 // pred_region
        %p239 = scmp.lt.s32.totalorder %s23, 0
        %s240 = scalar_select %p239, %s23, 0
        %s241 = smul.addr %s240, 4
        %s242 = scalar_lea.vmem %s3, %s241
      $region16: #{res_block.7} parent=11 // pred_fallthru
        _
      // Predicated region
      $region17: #{res_block.7} parent=11 // pred_check
        %p243 = pneg %p165
      $region18: #{res_block.7} parent=11 // pred_check_branch
        %245 = sbr.rel (%p243) target = $region20
      $region19: #{res_block.7} parent=11 // pred_region
        %p246 = scmp.lt.s32.totalorder %s23, 0
        %s247 = scalar_select %p246, %s23, 0
        %s248 = scalar_lea.vmem %s4, %s247
      $region20: #{res_block.7} parent=11 // pred_fallthru
        _
    $region12: #{res_block.7} parent=5 // pred_fallthru
      _
    %p249 = scmp.lt.s32.totalorder %s13, 8
    // Predicated region
    $region21: #{res_block.7} parent=5 // pred_check
      %p250 = pneg %p249
    $region22: #{res_block.7} parent=5 // pred_check_branch
      %252 = sbr.rel (%p250) target = $region24
    $region23: #{res_block.7} parent=5 // pred_region
      // Predicated region
      $region25: #{res_block.7} parent=23 // pred_check
        %p253 = pneg %p47
      $region26: #{res_block.7} parent=23 // pred_check_branch
        %255 = sbr.rel (%p253) target = $region28
      $region27: #{res_block.7} parent=23 // pred_region
        %s256 = smul.u32 %s20, 2
        %p257 = scmp.lt.s32.totalorder %s256, 17
        %s258 = scalar_select %p257, %s256, 17
        %s259 = smul.addr %s258, 5
        %s260 = smul.addr %s259, 4
        %s261 = scalar_lea.vmem %s0, %s260
        %s262 = smul.u32 %s20, 2
      $region28: #{res_block.7} parent=23 // pred_fallthru
        _
      // Predicated region
      $region29: #{res_block.7} parent=23 // pred_check
        %p263 = pneg %p77
      $region30: #{res_block.7} parent=23 // pred_check_branch
        %265 = sbr.rel (%p263) target = $region32
      $region31: #{res_block.7} parent=23 // pred_region
        %s266 = smul.u32 %s20, 2
        %s267 = sadd.s32 %s266, 1
        %p268 = scmp.lt.s32.totalorder %s267, 17
        %s269 = scalar_select %p268, %s267, 17
        %s270 = smul.addr %s269, 5
        %s271 = smul.addr %s270, 4
        %s272 = scalar_lea.vmem %s1, %s271
        %s273 = smul.u32 %s20, 2
        %s274 = sadd.s32 %s273, 1
      $region32: #{res_block.7} parent=23 // pred_fallthru
        _
      // Predicated region
      $region33: #{res_block.7} parent=23 // pred_check
        %p275 = pneg %p107
      $region34: #{res_block.7} parent=23 // pred_check_branch
        %277 = sbr.rel (%p275) target = $region36
      $region35: #{res_block.7} parent=23 // pred_region
        %s278 = smul.u32 %s20, 2
        %s279 = sadd.s32 %s278, 2
        %p280 = scmp.lt.s32.totalorder %s279, 17
        %s281 = scalar_select %p280, %s279, 17
        %s282 = smul.addr %s281, 5
        %s283 = smul.addr %s282, 4
        %s284 = scalar_lea.vmem %s2, %s283
        %s285 = smul.u32 %s20, 2
        %s286 = sadd.s32 %s285, 2
      $region36: #{res_block.7} parent=23 // pred_fallthru
        _
    $region24: #{res_block.7} parent=5 // pred_fallthru
      _
    %p287 = scmp.le.s32.totalorder 1, %s13
    %p288 = scmp.lt.s32.totalorder %s13, 9
    %p289 = pnand %p287, %p288
    %p290 = pneg %p289
    // Predicated region
    $region37: #{res_block.7} parent=5 // pred_check
      _
    $region38: #{res_block.7} parent=5 // pred_check_branch
      %292 = sbr.rel (%p289) target = $region40
    $region39: #{res_block.7} parent=5 // pred_region
      %s293 = ssub.s32 %s13, 1
      %s294 = smul.u32 %s22, 2
      %p295 = scmp.lt.s32.totalorder %s294, 17
      %s296 = scalar_select %p295, %s294, 17
      %s297 = smul.addr %s296, 5
      %s298 = smul.addr %s297, 4
      %s299 = scalar_lea.vmem %s0, %s298
      %p300 = pneg %p53
      %p301 = pneg %p50
      %s302 = smul.u32 %s22, 2
      %s303 = sadd.s32 %s302, 1
      %p304 = scmp.lt.s32.totalorder %s303, 17
      %s305 = scalar_select %p304, %s303, 17
      %s306 = smul.addr %s305, 5
      %s307 = smul.addr %s306, 4
      %s308 = scalar_lea.vmem %s1, %s307
      %p309 = pneg %p83
      %p310 = pneg %p80
      %s311 = smul.u32 %s22, 2
      %s312 = sadd.s32 %s311, 2
      %p313 = scmp.lt.s32.totalorder %s312, 17
      %s314 = scalar_select %p313, %s312, 17
      %s315 = smul.addr %s314, 5
      %s316 = smul.addr %s315, 4
      %s317 = scalar_lea.vmem %s2, %s316
      %p318 = pneg %p113
      %p319 = pneg %p110
      %p320 = scmp.lt.s32.totalorder %s23, 0
      %s321 = scalar_select %p320, %s23, 0
      %s322 = smul.addr %s321, 4
      %s323 = scalar_lea.vmem %s3, %s322
      %p324 = pneg %p139
      %p325 = pneg %p136
      %p326 = scmp.lt.s32.totalorder %s23, 0
      %s327 = scalar_select %p326, %s23, 0
      %s328 = scalar_lea.vmem %s4, %s327
      %p329 = pneg %p165
      %p330 = pneg %p162
      %p331 = pneg %p193
      %p332 = pneg %p190
      %p333 = scmp.lt.s32.totalorder %s22, 7
      %s334 = scalar_select %p333, %s22, 7
      %p335 = scmp.lt.s32.totalorder %s23, 0
      %s336 = scalar_select %p335, %s23, 0
      %s337 = smul.addr %s334, 2
      %s338 = sadd.s32 %s336, %s337
      %s339 = smul.addr %s338, 4
      %s340 = scalar_lea.vmem %s5, %s339
      %p341 = pneg %p221
      %p342 = pneg %p218
      %p343 = scmp.lt.s32.totalorder %s22, 7
      %s344 = scalar_select %p343, %s22, 7
      %p345 = scmp.lt.s32.totalorder %s23, 0
      %s346 = scalar_select %p345, %s23, 0
      %s347 = sadd.s32 %s346, %s344
      %s348 = smul.addr %s347, 2
      %s349 = scalar_lea.vmem %s6, %s348
      %s350 = smul.u32 %s22, 2
      %p351 = scmp.lt.s32.totalorder %s350, 17
      %s352 = scalar_select %p351, %s350, 17
      %s353 = smul.addr %s352, 5
      %s354 = smul.addr %s353, 4
      %s355 = scalar_lea.vmem %s0, %s354
      %s356 = smul.u32 %s22, 2
      %s357 = smul.u32 %s22, 2
      %s358 = sadd.s32 %s357, 1
      %p359 = scmp.lt.s32.totalorder %s358, 17
      %s360 = scalar_select %p359, %s358, 17
      %s361 = smul.addr %s360, 5
      %s362 = smul.addr %s361, 4
      %s363 = scalar_lea.vmem %s1, %s362
      %s364 = smul.u32 %s22, 2
      %s365 = sadd.s32 %s364, 1
      %s366 = smul.u32 %s22, 2
      %s367 = sadd.s32 %s366, 2
      %p368 = scmp.lt.s32.totalorder %s367, 17
      %s369 = scalar_select %p368, %s367, 17
      %s370 = smul.addr %s369, 5
      %s371 = smul.addr %s370, 4
      %s372 = scalar_lea.vmem %s2, %s371
      %s373 = smul.u32 %s22, 2
      %s374 = sadd.s32 %s373, 2
      %p375 = scmp.lt.s32.totalorder %s23, 0
      %s376 = scalar_select %p375, %s23, 0
      %s377 = smul.addr %s376, 4
      %s378 = scalar_lea.vmem %s3, %s377
      %p379 = scmp.lt.s32.totalorder %s23, 0
      %s380 = scalar_select %p379, %s23, 0
      %s381 = scalar_lea.vmem %s4, %s380
      %p382 = scmp.lt.s32.totalorder %s22, 7
      %s383 = scalar_select %p382, %s22, 7
      %p384 = scmp.lt.s32.totalorder %s23, 0
      %s385 = scalar_select %p384, %s23, 0
      %s386 = smul.addr %s383, 2
      %s387 = sadd.s32 %s385, %s386
      %s388 = smul.addr %s387, 4
      %s389 = scalar_lea.vmem %s5, %s388
      %p390 = scmp.lt.s32.totalorder %s22, 7
      %s391 = scalar_select %p390, %s22, 7
      %p392 = scmp.lt.s32.totalorder %s23, 0
      %s393 = scalar_select %p392, %s23, 0
      %s394 = sadd.s32 %s393, %s391
      %s395 = smul.addr %s394, 2
      %s396 = scalar_lea.vmem %s6, %s395
      %v397 = vld [vmem:[%s355] sm:$0xf]
      %v398 = vld [vmem:[%s355 + $0x4] sm:$0xf]
      %v399 = vld [vmem:[%s355 + $0x8] sm:$0xe]
      %v400 = vld [vmem:[%s355 + $0xc] sm:$0xf]
      %v401 = vld [vmem:[%s355 + $0x10] sm:$0x1]
      %v402 = vld [vmem:[%s355] sm:$0xe]
      %v403 = vld [vmem:[%s355 + $0x8] sm:$0x1]
      %v406 = vunpack.c.l.b16 %v397
      %v407 = vunpack.c.l.b16 %v398
      %v408 = vpack.c.b16 %v407, %v406
      %v413 = vunpack.c.l.b16 %v399
      %v414 = vunpack.c.l.b16 %v400
      %v415 = vunpack.c.l.b16 %v401
      %v416 = vpack.c.b16 %v414, %v413
      %v417 = vpack.c.b16 %v415, %v415
      %vm418 = vcmask 1046528
      %v419 = vrot.slane %v416, 1
      %v420 = vrot.slane %v417, 1
      %v421 = vsel %vm418, %v419, %v420
      %v425 = vunpack.c.l.b16 %v402
      %v426 = vunpack.c.l.b16 %v403
      %v427 = vpack.c.b16 %v407, %v425
      %v428 = vpack.c.b16 %v426, %v426
      %v429 = vrot.slane %v427, 1
      %v430 = vrot.slane %v428, 1
      %v431 = vsel %vm418, %v429, %v430
      %v433 = vld [vmem:[%s378] sm:$0xf]
      %v434 = vld [vmem:[%s378 + $0x4] sm:$0xf]
      %v435 = vld [vmem:[%s378 + $0x8] sm:$0xf]
      %v436 = vld [vmem:[%s378 + $0xc] sm:$0xf]
      %v437 = vld [vmem:[%s378 + $0x10] sm:$0xf]
      %v438 = vld [vmem:[%s378 + $0x14] sm:$0xf]
      %v439 = vld [vmem:[%s378 + $0x18] sm:$0xf]
      %v440 = vld [vmem:[%s378 + $0x1c] sm:$0xf]
      %v441 = vld [vmem:[%s378 + $0x20] sm:$0xf]
      %v442 = vld [vmem:[%s378 + $0x24] sm:$0xf]
      %v443 = vld [vmem:[%s378 + $0x28] sm:$0xf]
      %v444 = vld [vmem:[%s378 + $0x2c] sm:$0xf]
      %v445 = vld [vmem:[%s378 + $0x30] sm:$0xf]
      %v446 = vld [vmem:[%s378 + $0x34] sm:$0xf]
      %v447 = vld [vmem:[%s378 + $0x38] sm:$0xf]
      %v448 = vld [vmem:[%s378 + $0x3c] sm:$0xf]
      %v449 = vld [vmem:[%s378 + $0x40] sm:$0xf]
      %v450 = vld [vmem:[%s378 + $0x44] sm:$0xf]
      %v451 = vld [vmem:[%s378 + $0x48] sm:$0xf]
      %v452 = vld [vmem:[%s378 + $0x4c] sm:$0xf]
      %v453 = vld [vmem:[%s378 + $0x50] sm:$0xf]
      %v454 = vld [vmem:[%s378 + $0x54] sm:$0xf]
      %v455 = vld [vmem:[%s378 + $0x58] sm:$0xf]
      %v456 = vld [vmem:[%s378 + $0x5c] sm:$0xf]
      %v457 = vld [vmem:[%s378 + $0x60] sm:$0xf]
      %v458 = vld [vmem:[%s378 + $0x64] sm:$0xf]
      %v459 = vld [vmem:[%s378 + $0x68] sm:$0xf]
      %v460 = vld [vmem:[%s378 + $0x6c] sm:$0xf]
      %v461 = vld [vmem:[%s378 + $0x70] sm:$0xf]
      %v462 = vld [vmem:[%s378 + $0x74] sm:$0xf]
      %v463 = vld [vmem:[%s378 + $0x78] sm:$0xf]
      %v464 = vld [vmem:[%s378 + $0x7c] sm:$0xf]
      %v465 = vld [vmem:[%s378 + $0x80] sm:$0xf]
      %v466 = vld [vmem:[%s378 + $0x84] sm:$0xf]
      %v467 = vld [vmem:[%s378 + $0x88] sm:$0xf]
      %v468 = vld [vmem:[%s378 + $0x8c] sm:$0xf]
      %v469 = vld [vmem:[%s378 + $0x90] sm:$0xf]
      %v470 = vld [vmem:[%s378 + $0x94] sm:$0xf]
      %v471 = vld [vmem:[%s378 + $0x98] sm:$0xf]
      %v472 = vld [vmem:[%s378 + $0x9c] sm:$0xf]
      %v473 = vld [vmem:[%s378 + $0xa0] sm:$0xf]
      %v474 = vld [vmem:[%s378 + $0xa4] sm:$0xf]
      %v475 = vld [vmem:[%s378 + $0xa8] sm:$0xf]
      %v476 = vld [vmem:[%s378 + $0xac] sm:$0xf]
      %v477 = vld [vmem:[%s378 + $0xb0] sm:$0xf]
      %v478 = vld [vmem:[%s378 + $0xb4] sm:$0xf]
      %v479 = vld [vmem:[%s378 + $0xb8] sm:$0xf]
      %v480 = vld [vmem:[%s378 + $0xbc] sm:$0xf]
      %v529 = vunpack.c.l.b16 %v433
      %v530 = vunpack.c.l.b16 %v434
      %v531 = vunpack.c.l.b16 %v435
      %v532 = vunpack.c.l.b16 %v436
      %v533 = vunpack.c.l.b16 %v437
      %v534 = vunpack.c.l.b16 %v438
      %v535 = vunpack.c.l.b16 %v439
      %v536 = vunpack.c.l.b16 %v440
      %v537 = vunpack.c.l.b16 %v441
      %v538 = vunpack.c.l.b16 %v442
      %v539 = vunpack.c.l.b16 %v443
      %v540 = vunpack.c.l.b16 %v444
      %v541 = vunpack.c.l.b16 %v445
      %v542 = vunpack.c.l.b16 %v446
      %v543 = vunpack.c.l.b16 %v447
      %v544 = vunpack.c.l.b16 %v448
      %v545 = vunpack.c.l.b16 %v449
      %v546 = vunpack.c.l.b16 %v450
      %v547 = vunpack.c.l.b16 %v451
      %v548 = vunpack.c.l.b16 %v452
      %v549 = vunpack.c.l.b16 %v453
      %v550 = vunpack.c.l.b16 %v454
      %v551 = vunpack.c.l.b16 %v455
      %v552 = vunpack.c.l.b16 %v456
      %v553 = vunpack.c.l.b16 %v457
      %v554 = vunpack.c.l.b16 %v458
      %v555 = vunpack.c.l.b16 %v459
      %v556 = vunpack.c.l.b16 %v460
      %v557 = vunpack.c.l.b16 %v461
      %v558 = vunpack.c.l.b16 %v462
      %v559 = vunpack.c.l.b16 %v463
      %v560 = vunpack.c.l.b16 %v464
      %v561 = vunpack.c.l.b16 %v465
      %v562 = vunpack.c.l.b16 %v466
      %v563 = vunpack.c.l.b16 %v467
      %v564 = vunpack.c.l.b16 %v468
      %v565 = vunpack.c.l.b16 %v469
      %v566 = vunpack.c.l.b16 %v470
      %v567 = vunpack.c.l.b16 %v471
      %v568 = vunpack.c.l.b16 %v472
      %v569 = vunpack.c.l.b16 %v473
      %v570 = vunpack.c.l.b16 %v474
      %v571 = vunpack.c.l.b16 %v475
      %v572 = vunpack.c.l.b16 %v476
      %v573 = vunpack.c.l.b16 %v477
      %v574 = vunpack.c.l.b16 %v478
      %v575 = vunpack.c.l.b16 %v479
      %v576 = vunpack.c.l.b16 %v480
      %v577 = vpack.c.b16 %v530, %v529
      %v578 = vpack.c.b16 %v532, %v531
      %v579 = vpack.c.b16 %v534, %v533
      %v580 = vpack.c.b16 %v536, %v535
      %v581 = vpack.c.b16 %v538, %v537
      %v582 = vpack.c.b16 %v540, %v539
      %v583 = vpack.c.b16 %v542, %v541
      %v584 = vpack.c.b16 %v544, %v543
      %v585 = vpack.c.b16 %v546, %v545
      %v586 = vpack.c.b16 %v548, %v547
      %v587 = vpack.c.b16 %v550, %v549
      %v588 = vpack.c.b16 %v552, %v551
      %v589 = vpack.c.b16 %v554, %v553
      %v590 = vpack.c.b16 %v556, %v555
      %v591 = vpack.c.b16 %v558, %v557
      %v592 = vpack.c.b16 %v560, %v559
      %v593 = vpack.c.b16 %v562, %v561
      %v594 = vpack.c.b16 %v564, %v563
      %v595 = vpack.c.b16 %v566, %v565
      %v596 = vpack.c.b16 %v568, %v567
      %v597 = vpack.c.b16 %v570, %v569
      %v598 = vpack.c.b16 %v572, %v571
      %v599 = vpack.c.b16 %v574, %v573
      %v600 = vpack.c.b16 %v576, %v575
      %625 = vmatpush.bf16.msra.mxu0 %v584
      %626 = vmatpush.bf16.msra.mxu0 %v583
      %627 = vmatpush.bf16.msra.mxu0 %v582
      %628 = vmatpush.bf16.msra.mxu0 %v581
      %629 = vmatpush.bf16.msra.mxu0 %v580
      %630 = vmatpush.bf16.msra.mxu0 %v579
      %631 = vmatpush.bf16.msra.mxu0 %v578
      %632 = vmatpush.bf16.msra.mxu0 %v577
      %633 = vmatmul.bf16.gmra.mxu0 %v408
      %v634 = vpop.f32.mrf.mxu0
      %v635 = vadd.f32 0.0, %v634
      %v636 = vpop.f32.mrf.mxu0
      %v637 = vadd.f32 0.0, %v636
      %638 = vdwg.mxu0
      %639 = vmatpush.bf16.msra.mxu0 %v592
      %640 = vmatpush.bf16.msra.mxu0 %v591
      %641 = vmatpush.bf16.msra.mxu0 %v590
      %642 = vmatpush.bf16.msra.mxu0 %v589
      %643 = vmatpush.bf16.msra.mxu0 %v588
      %644 = vmatpush.bf16.msra.mxu0 %v587
      %645 = vmatpush.bf16.msra.mxu0 %v586
      %646 = vmatpush.bf16.msra.mxu0 %v585
      %647 = vmatmul.bf16.gmra.mxu0 %v421
      %v648 = vpop.f32.mrf.mxu0
      %v649 = vadd.f32 %v635, %v648
      %v650 = vpop.f32.mrf.mxu0
      %v651 = vadd.f32 %v637, %v650
      %652 = vdwg.mxu0
      %653 = vmatpush.bf16.msra.mxu0 %v600
      %654 = vmatpush.bf16.msra.mxu0 %v599
      %655 = vmatpush.bf16.msra.mxu0 %v598
      %656 = vmatpush.bf16.msra.mxu0 %v597
      %657 = vmatpush.bf16.msra.mxu0 %v596
      %658 = vmatpush.bf16.msra.mxu0 %v595
      %659 = vmatpush.bf16.msra.mxu0 %v594
      %660 = vmatpush.bf16.msra.mxu0 %v593
      %661 = vmatmul.bf16.gmra.mxu0 %v431
      %v662 = vpop.f32.mrf.mxu0
      %v663 = vadd.f32 %v649, %v662
      %v664 = vpop.f32.mrf.mxu0
      %v665 = vadd.f32 %v651, %v664
      %666 = vdwg.mxu0
      %667 = vst [vmem:[#allocation2] sm:$0xff] %v663
      %668 = vst [vmem:[#allocation2 + $0x8] sm:$0xff] %v665
      %v669 = vld [vmem:[#allocation2] sm:$0xff]
      %v670 = vld [vmem:[#allocation2 + $0x8] sm:$0xff]
      %v671 = vld [vmem:[%s363] sm:$0xf]
      %v672 = vld [vmem:[%s363 + $0x4] sm:$0xf]
      %v673 = vld [vmem:[%s363 + $0x8] sm:$0xe]
      %v674 = vld [vmem:[%s363 + $0xc] sm:$0xf]
      %v675 = vld [vmem:[%s363 + $0x10] sm:$0x1]
      %v676 = vld [vmem:[%s363] sm:$0xe]
      %v677 = vld [vmem:[%s363 + $0x8] sm:$0x1]
      %v680 = vunpack.c.l.b16 %v671
      %v681 = vunpack.c.l.b16 %v672
      %v682 = vpack.c.b16 %v681, %v680
      %v687 = vunpack.c.l.b16 %v673
      %v688 = vunpack.c.l.b16 %v674
      %v689 = vunpack.c.l.b16 %v675
      %v690 = vpack.c.b16 %v688, %v687
      %v691 = vpack.c.b16 %v689, %v689
      %v692 = vrot.slane %v690, 1
      %v693 = vrot.slane %v691, 1
      %v694 = vsel %vm418, %v692, %v693
      %v698 = vunpack.c.l.b16 %v676
      %v699 = vunpack.c.l.b16 %v677
      %v700 = vpack.c.b16 %v681, %v698
      %v701 = vpack.c.b16 %v699, %v699
      %v702 = vrot.slane %v700, 1
      %v703 = vrot.slane %v701, 1
      %v704 = vsel %vm418, %v702, %v703
      %s706 = scalar_lea.vmem %s378, 192
      %v707 = vld [vmem:[%s706] sm:$0xf]
      %v708 = vld [vmem:[%s706 + $0x4] sm:$0xf]
      %v709 = vld [vmem:[%s706 + $0x8] sm:$0xf]
      %v710 = vld [vmem:[%s706 + $0xc] sm:$0xf]
      %v711 = vld [vmem:[%s706 + $0x10] sm:$0xf]
      %v712 = vld [vmem:[%s706 + $0x14] sm:$0xf]
      %v713 = vld [vmem:[%s706 + $0x18] sm:$0xf]
      %v714 = vld [vmem:[%s706 + $0x1c] sm:$0xf]
      %v715 = vld [vmem:[%s706 + $0x20] sm:$0xf]
      %v716 = vld [vmem:[%s706 + $0x24] sm:$0xf]
      %v717 = vld [vmem:[%s706 + $0x28] sm:$0xf]
      %v718 = vld [vmem:[%s706 + $0x2c] sm:$0xf]
      %v719 = vld [vmem:[%s706 + $0x30] sm:$0xf]
      %v720 = vld [vmem:[%s706 + $0x34] sm:$0xf]
      %v721 = vld [vmem:[%s706 + $0x38] sm:$0xf]
      %v722 = vld [vmem:[%s706 + $0x3c] sm:$0xf]
      %v723 = vld [vmem:[%s706 + $0x40] sm:$0xf]
      %v724 = vld [vmem:[%s706 + $0x44] sm:$0xf]
      %v725 = vld [vmem:[%s706 + $0x48] sm:$0xf]
      %v726 = vld [vmem:[%s706 + $0x4c] sm:$0xf]
      %v727 = vld [vmem:[%s706 + $0x50] sm:$0xf]
      %v728 = vld [vmem:[%s706 + $0x54] sm:$0xf]
      %v729 = vld [vmem:[%s706 + $0x58] sm:$0xf]
      %v730 = vld [vmem:[%s706 + $0x5c] sm:$0xf]
      %v731 = vld [vmem:[%s706 + $0x60] sm:$0xf]
      %v732 = vld [vmem:[%s706 + $0x64] sm:$0xf]
      %v733 = vld [vmem:[%s706 + $0x68] sm:$0xf]
      %v734 = vld [vmem:[%s706 + $0x6c] sm:$0xf]
      %v735 = vld [vmem:[%s706 + $0x70] sm:$0xf]
      %v736 = vld [vmem:[%s706 + $0x74] sm:$0xf]
      %v737 = vld [vmem:[%s706 + $0x78] sm:$0xf]
      %v738 = vld [vmem:[%s706 + $0x7c] sm:$0xf]
      %v739 = vld [vmem:[%s706 + $0x80] sm:$0xf]
      %v740 = vld [vmem:[%s706 + $0x84] sm:$0xf]
      %v741 = vld [vmem:[%s706 + $0x88] sm:$0xf]
      %v742 = vld [vmem:[%s706 + $0x8c] sm:$0xf]
      %v743 = vld [vmem:[%s706 + $0x90] sm:$0xf]
      %v744 = vld [vmem:[%s706 + $0x94] sm:$0xf]
      %v745 = vld [vmem:[%s706 + $0x98] sm:$0xf]
      %v746 = vld [vmem:[%s706 + $0x9c] sm:$0xf]
      %v747 = vld [vmem:[%s706 + $0xa0] sm:$0xf]
      %v748 = vld [vmem:[%s706 + $0xa4] sm:$0xf]
      %v749 = vld [vmem:[%s706 + $0xa8] sm:$0xf]
      %v750 = vld [vmem:[%s706 + $0xac] sm:$0xf]
      %v751 = vld [vmem:[%s706 + $0xb0] sm:$0xf]
      %v752 = vld [vmem:[%s706 + $0xb4] sm:$0xf]
      %v753 = vld [vmem:[%s706 + $0xb8] sm:$0xf]
      %v754 = vld [vmem:[%s706 + $0xbc] sm:$0xf]
      %v803 = vunpack.c.l.b16 %v707
      %v804 = vunpack.c.l.b16 %v708
      %v805 = vunpack.c.l.b16 %v709
      %v806 = vunpack.c.l.b16 %v710
      %v807 = vunpack.c.l.b16 %v711
      %v808 = vunpack.c.l.b16 %v712
      %v809 = vunpack.c.l.b16 %v713
      %v810 = vunpack.c.l.b16 %v714
      %v811 = vunpack.c.l.b16 %v715
      %v812 = vunpack.c.l.b16 %v716
      %v813 = vunpack.c.l.b16 %v717
      %v814 = vunpack.c.l.b16 %v718
      %v815 = vunpack.c.l.b16 %v719
      %v816 = vunpack.c.l.b16 %v720
      %v817 = vunpack.c.l.b16 %v721
      %v818 = vunpack.c.l.b16 %v722
      %v819 = vunpack.c.l.b16 %v723
      %v820 = vunpack.c.l.b16 %v724
      %v821 = vunpack.c.l.b16 %v725
      %v822 = vunpack.c.l.b16 %v726
      %v823 = vunpack.c.l.b16 %v727
      %v824 = vunpack.c.l.b16 %v728
      %v825 = vunpack.c.l.b16 %v729
      %v826 = vunpack.c.l.b16 %v730
      %v827 = vunpack.c.l.b16 %v731
      %v828 = vunpack.c.l.b16 %v732
      %v829 = vunpack.c.l.b16 %v733
      %v830 = vunpack.c.l.b16 %v734
      %v831 = vunpack.c.l.b16 %v735
      %v832 = vunpack.c.l.b16 %v736
      %v833 = vunpack.c.l.b16 %v737
      %v834 = vunpack.c.l.b16 %v738
      %v835 = vunpack.c.l.b16 %v739
      %v836 = vunpack.c.l.b16 %v740
      %v837 = vunpack.c.l.b16 %v741
      %v838 = vunpack.c.l.b16 %v742
      %v839 = vunpack.c.l.b16 %v743
      %v840 = vunpack.c.l.b16 %v744
      %v841 = vunpack.c.l.b16 %v745
      %v842 = vunpack.c.l.b16 %v746
      %v843 = vunpack.c.l.b16 %v747
      %v844 = vunpack.c.l.b16 %v748
      %v845 = vunpack.c.l.b16 %v749
      %v846 = vunpack.c.l.b16 %v750
      %v847 = vunpack.c.l.b16 %v751
      %v848 = vunpack.c.l.b16 %v752
      %v849 = vunpack.c.l.b16 %v753
      %v850 = vunpack.c.l.b16 %v754
      %v851 = vpack.c.b16 %v804, %v803
      %v852 = vpack.c.b16 %v806, %v805
      %v853 = vpack.c.b16 %v808, %v807
      %v854 = vpack.c.b16 %v810, %v809
      %v855 = vpack.c.b16 %v812, %v811
      %v856 = vpack.c.b16 %v814, %v813
      %v857 = vpack.c.b16 %v816, %v815
      %v858 = vpack.c.b16 %v818, %v817
      %v859 = vpack.c.b16 %v820, %v819
      %v860 = vpack.c.b16 %v822, %v821
      %v861 = vpack.c.b16 %v824, %v823
      %v862 = vpack.c.b16 %v826, %v825
      %v863 = vpack.c.b16 %v828, %v827
      %v864 = vpack.c.b16 %v830, %v829
      %v865 = vpack.c.b16 %v832, %v831
      %v866 = vpack.c.b16 %v834, %v833
      %v867 = vpack.c.b16 %v836, %v835
      %v868 = vpack.c.b16 %v838, %v837
      %v869 = vpack.c.b16 %v840, %v839
      %v870 = vpack.c.b16 %v842, %v841
      %v871 = vpack.c.b16 %v844, %v843
      %v872 = vpack.c.b16 %v846, %v845
      %v873 = vpack.c.b16 %v848, %v847
      %v874 = vpack.c.b16 %v850, %v849
      %899 = vmatpush.bf16.msra.mxu0 %v858
      %900 = vmatpush.bf16.msra.mxu0 %v857
      %901 = vmatpush.bf16.msra.mxu0 %v856
      %902 = vmatpush.bf16.msra.mxu0 %v855
      %903 = vmatpush.bf16.msra.mxu0 %v854
      %904 = vmatpush.bf16.msra.mxu0 %v853
      %905 = vmatpush.bf16.msra.mxu0 %v852
      %906 = vmatpush.bf16.msra.mxu0 %v851
      %907 = vmatmul.bf16.gmra.mxu0 %v682
      %v908 = vpop.f32.mrf.mxu0
      %v909 = vadd.f32 0.0, %v908
      %v910 = vpop.f32.mrf.mxu0
      %v911 = vadd.f32 0.0, %v910
      %912 = vdwg.mxu0
      %913 = vmatpush.bf16.msra.mxu0 %v866
      %914 = vmatpush.bf16.msra.mxu0 %v865
      %915 = vmatpush.bf16.msra.mxu0 %v864
      %916 = vmatpush.bf16.msra.mxu0 %v863
      %917 = vmatpush.bf16.msra.mxu0 %v862
      %918 = vmatpush.bf16.msra.mxu0 %v861
      %919 = vmatpush.bf16.msra.mxu0 %v860
      %920 = vmatpush.bf16.msra.mxu0 %v859
      %921 = vmatmul.bf16.gmra.mxu0 %v694
      %v922 = vpop.f32.mrf.mxu0
      %v923 = vadd.f32 %v909, %v922
      %v924 = vpop.f32.mrf.mxu0
      %v925 = vadd.f32 %v911, %v924
      %926 = vdwg.mxu0
      %927 = vmatpush.bf16.msra.mxu0 %v874
      %928 = vmatpush.bf16.msra.mxu0 %v873
      %929 = vmatpush.bf16.msra.mxu0 %v872
      %930 = vmatpush.bf16.msra.mxu0 %v871
      %931 = vmatpush.bf16.msra.mxu0 %v870
      %932 = vmatpush.bf16.msra.mxu0 %v869
      %933 = vmatpush.bf16.msra.mxu0 %v868
      %934 = vmatpush.bf16.msra.mxu0 %v867
      %935 = vmatmul.bf16.gmra.mxu0 %v704
      %v936 = vpop.f32.mrf.mxu0
      %v937 = vadd.f32 %v923, %v936
      %v938 = vpop.f32.mrf.mxu0
      %v939 = vadd.f32 %v925, %v938
      %940 = vdwg.mxu0
      %v941 = vadd.f32 %v669, %v937
      %v942 = vadd.f32 %v670, %v939
      %943 = vst [vmem:[#allocation2] sm:$0xff] %v941
      %944 = vst [vmem:[#allocation2 + $0x8] sm:$0xff] %v942
      %v945 = vld [vmem:[#allocation2] sm:$0xff]
      %v946 = vld [vmem:[#allocation2 + $0x8] sm:$0xff]
      %v947 = vld [vmem:[%s372] sm:$0xf]
      %v948 = vld [vmem:[%s372 + $0x4] sm:$0xf]
      %v949 = vld [vmem:[%s372 + $0x8] sm:$0xe]
      %v950 = vld [vmem:[%s372 + $0xc] sm:$0xf]
      %v951 = vld [vmem:[%s372 + $0x10] sm:$0x1]
      %v952 = vld [vmem:[%s372] sm:$0xe]
      %v953 = vld [vmem:[%s372 + $0x8] sm:$0x1]
      %v956 = vunpack.c.l.b16 %v947
      %v957 = vunpack.c.l.b16 %v948
      %v958 = vpack.c.b16 %v957, %v956
      %v963 = vunpack.c.l.b16 %v949
      %v964 = vunpack.c.l.b16 %v950
      %v965 = vunpack.c.l.b16 %v951
      %v966 = vpack.c.b16 %v964, %v963
      %v967 = vpack.c.b16 %v965, %v965
      %v968 = vrot.slane %v966, 1
      %v969 = vrot.slane %v967, 1
      %v970 = vsel %vm418, %v968, %v969
      %v974 = vunpack.c.l.b16 %v952
      %v975 = vunpack.c.l.b16 %v953
      %v976 = vpack.c.b16 %v957, %v974
      %v977 = vpack.c.b16 %v975, %v975
      %v978 = vrot.slane %v976, 1
      %v979 = vrot.slane %v977, 1
      %v980 = vsel %vm418, %v978, %v979
      %s982 = scalar_lea.vmem %s378, 384
      %v983 = vld [vmem:[%s982] sm:$0xf]
      %v984 = vld [vmem:[%s982 + $0x4] sm:$0xf]
      %v985 = vld [vmem:[%s982 + $0x8] sm:$0xf]
      %v986 = vld [vmem:[%s982 + $0xc] sm:$0xf]
      %v987 = vld [vmem:[%s982 + $0x10] sm:$0xf]
      %v988 = vld [vmem:[%s982 + $0x14] sm:$0xf]
      %v989 = vld [vmem:[%s982 + $0x18] sm:$0xf]
      %v990 = vld [vmem:[%s982 + $0x1c] sm:$0xf]
      %v991 = vld [vmem:[%s982 + $0x20] sm:$0xf]
      %v992 = vld [vmem:[%s982 + $0x24] sm:$0xf]
      %v993 = vld [vmem:[%s982 + $0x28] sm:$0xf]
      %v994 = vld [vmem:[%s982 + $0x2c] sm:$0xf]
      %v995 = vld [vmem:[%s982 + $0x30] sm:$0xf]
      %v996 = vld [vmem:[%s982 + $0x34] sm:$0xf]
      %v997 = vld [vmem:[%s982 + $0x38] sm:$0xf]
      %v998 = vld [vmem:[%s982 + $0x3c] sm:$0xf]
      %v999 = vld [vmem:[%s982 + $0x40] sm:$0xf]
      %v1000 = vld [vmem:[%s982 + $0x44] sm:$0xf]
      %v1001 = vld [vmem:[%s982 + $0x48] sm:$0xf]
      %v1002 = vld [vmem:[%s982 + $0x4c] sm:$0xf]
      %v1003 = vld [vmem:[%s982 + $0x50] sm:$0xf]
      %v1004 = vld [vmem:[%s982 + $0x54] sm:$0xf]
      %v1005 = vld [vmem:[%s982 + $0x58] sm:$0xf]
      %v1006 = vld [vmem:[%s982 + $0x5c] sm:$0xf]
      %v1007 = vld [vmem:[%s982 + $0x60] sm:$0xf]
      %v1008 = vld [vmem:[%s982 + $0x64] sm:$0xf]
      %v1009 = vld [vmem:[%s982 + $0x68] sm:$0xf]
      %v1010 = vld [vmem:[%s982 + $0x6c] sm:$0xf]
      %v1011 = vld [vmem:[%s982 + $0x70] sm:$0xf]
      %v1012 = vld [vmem:[%s982 + $0x74] sm:$0xf]
      %v1013 = vld [vmem:[%s982 + $0x78] sm:$0xf]
      %v1014 = vld [vmem:[%s982 + $0x7c] sm:$0xf]
      %v1015 = vld [vmem:[%s982 + $0x80] sm:$0xf]
      %v1016 = vld [vmem:[%s982 + $0x84] sm:$0xf]
      %v1017 = vld [vmem:[%s982 + $0x88] sm:$0xf]
      %v1018 = vld [vmem:[%s982 + $0x8c] sm:$0xf]
      %v1019 = vld [vmem:[%s982 + $0x90] sm:$0xf]
      %v1020 = vld [vmem:[%s982 + $0x94] sm:$0xf]
      %v1021 = vld [vmem:[%s982 + $0x98] sm:$0xf]
      %v1022 = vld [vmem:[%s982 + $0x9c] sm:$0xf]
      %v1023 = vld [vmem:[%s982 + $0xa0] sm:$0xf]
      %v1024 = vld [vmem:[%s982 + $0xa4] sm:$0xf]
      %v1025 = vld [vmem:[%s982 + $0xa8] sm:$0xf]
      %v1026 = vld [vmem:[%s982 + $0xac] sm:$0xf]
      %v1027 = vld [vmem:[%s982 + $0xb0] sm:$0xf]
      %v1028 = vld [vmem:[%s982 + $0xb4] sm:$0xf]
      %v1029 = vld [vmem:[%s982 + $0xb8] sm:$0xf]
      %v1030 = vld [vmem:[%s982 + $0xbc] sm:$0xf]
      %v1079 = vunpack.c.l.b16 %v983
      %v1080 = vunpack.c.l.b16 %v984
      %v1081 = vunpack.c.l.b16 %v985
      %v1082 = vunpack.c.l.b16 %v986
      %v1083 = vunpack.c.l.b16 %v987
      %v1084 = vunpack.c.l.b16 %v988
      %v1085 = vunpack.c.l.b16 %v989
      %v1086 = vunpack.c.l.b16 %v990
      %v1087 = vunpack.c.l.b16 %v991
      %v1088 = vunpack.c.l.b16 %v992
      %v1089 = vunpack.c.l.b16 %v993
      %v1090 = vunpack.c.l.b16 %v994
      %v1091 = vunpack.c.l.b16 %v995
      %v1092 = vunpack.c.l.b16 %v996
      %v1093 = vunpack.c.l.b16 %v997
      %v1094 = vunpack.c.l.b16 %v998
      %v1095 = vunpack.c.l.b16 %v999
      %v1096 = vunpack.c.l.b16 %v1000
      %v1097 = vunpack.c.l.b16 %v1001
      %v1098 = vunpack.c.l.b16 %v1002
      %v1099 = vunpack.c.l.b16 %v1003
      %v1100 = vunpack.c.l.b16 %v1004
      %v1101 = vunpack.c.l.b16 %v1005
      %v1102 = vunpack.c.l.b16 %v1006
      %v1103 = vunpack.c.l.b16 %v1007
      %v1104 = vunpack.c.l.b16 %v1008
      %v1105 = vunpack.c.l.b16 %v1009
      %v1106 = vunpack.c.l.b16 %v1010
      %v1107 = vunpack.c.l.b16 %v1011
      %v1108 = vunpack.c.l.b16 %v1012
      %v1109 = vunpack.c.l.b16 %v1013
      %v1110 = vunpack.c.l.b16 %v1014
      %v1111 = vunpack.c.l.b16 %v1015
      %v1112 = vunpack.c.l.b16 %v1016
      %v1113 = vunpack.c.l.b16 %v1017
      %v1114 = vunpack.c.l.b16 %v1018
      %v1115 = vunpack.c.l.b16 %v1019
      %v1116 = vunpack.c.l.b16 %v1020
      %v1117 = vunpack.c.l.b16 %v1021
      %v1118 = vunpack.c.l.b16 %v1022
      %v1119 = vunpack.c.l.b16 %v1023
      %v1120 = vunpack.c.l.b16 %v1024
      %v1121 = vunpack.c.l.b16 %v1025
      %v1122 = vunpack.c.l.b16 %v1026
      %v1123 = vunpack.c.l.b16 %v1027
      %v1124 = vunpack.c.l.b16 %v1028
      %v1125 = vunpack.c.l.b16 %v1029
      %v1126 = vunpack.c.l.b16 %v1030
      %v1127 = vpack.c.b16 %v1080, %v1079
      %v1128 = vpack.c.b16 %v1082, %v1081
      %v1129 = vpack.c.b16 %v1084, %v1083
      %v1130 = vpack.c.b16 %v1086, %v1085
      %v1131 = vpack.c.b16 %v1088, %v1087
      %v1132 = vpack.c.b16 %v1090, %v1089
      %v1133 = vpack.c.b16 %v1092, %v1091
      %v1134 = vpack.c.b16 %v1094, %v1093
      %v1135 = vpack.c.b16 %v1096, %v1095
      %v1136 = vpack.c.b16 %v1098, %v1097
      %v1137 = vpack.c.b16 %v1100, %v1099
      %v1138 = vpack.c.b16 %v1102, %v1101
      %v1139 = vpack.c.b16 %v1104, %v1103
      %v1140 = vpack.c.b16 %v1106, %v1105
      %v1141 = vpack.c.b16 %v1108, %v1107
      %v1142 = vpack.c.b16 %v1110, %v1109
      %v1143 = vpack.c.b16 %v1112, %v1111
      %v1144 = vpack.c.b16 %v1114, %v1113
      %v1145 = vpack.c.b16 %v1116, %v1115
      %v1146 = vpack.c.b16 %v1118, %v1117
      %v1147 = vpack.c.b16 %v1120, %v1119
      %v1148 = vpack.c.b16 %v1122, %v1121
      %v1149 = vpack.c.b16 %v1124, %v1123
      %v1150 = vpack.c.b16 %v1126, %v1125
      %1175 = vmatpush.bf16.msra.mxu0 %v1134
      %1176 = vmatpush.bf16.msra.mxu0 %v1133
      %1177 = vmatpush.bf16.msra.mxu0 %v1132
      %1178 = vmatpush.bf16.msra.mxu0 %v1131
      %1179 = vmatpush.bf16.msra.mxu0 %v1130
      %1180 = vmatpush.bf16.msra.mxu0 %v1129
      %1181 = vmatpush.bf16.msra.mxu0 %v1128
      %1182 = vmatpush.bf16.msra.mxu0 %v1127
      %1183 = vmatmul.bf16.gmra.mxu0 %v958
      %v1184 = vpop.f32.mrf.mxu0
      %v1185 = vadd.f32 0.0, %v1184
      %v1186 = vpop.f32.mrf.mxu0
      %v1187 = vadd.f32 0.0, %v1186
      %1188 = vdwg.mxu0
      %1189 = vmatpush.bf16.msra.mxu0 %v1142
      %1190 = vmatpush.bf16.msra.mxu0 %v1141
      %1191 = vmatpush.bf16.msra.mxu0 %v1140
      %1192 = vmatpush.bf16.msra.mxu0 %v1139
      %1193 = vmatpush.bf16.msra.mxu0 %v1138
      %1194 = vmatpush.bf16.msra.mxu0 %v1137
      %1195 = vmatpush.bf16.msra.mxu0 %v1136
      %1196 = vmatpush.bf16.msra.mxu0 %v1135
      %1197 = vmatmul.bf16.gmra.mxu0 %v970
      %v1198 = vpop.f32.mrf.mxu0
      %v1199 = vadd.f32 %v1185, %v1198
      %v1200 = vpop.f32.mrf.mxu0
      %v1201 = vadd.f32 %v1187, %v1200
      %1202 = vdwg.mxu0
      %1203 = vmatpush.bf16.msra.mxu0 %v1150
      %1204 = vmatpush.bf16.msra.mxu0 %v1149
      %1205 = vmatpush.bf16.msra.mxu0 %v1148
      %1206 = vmatpush.bf16.msra.mxu0 %v1147
      %1207 = vmatpush.bf16.msra.mxu0 %v1146
      %1208 = vmatpush.bf16.msra.mxu0 %v1145
      %1209 = vmatpush.bf16.msra.mxu0 %v1144
      %1210 = vmatpush.bf16.msra.mxu0 %v1143
      %1211 = vmatmul.bf16.gmra.mxu0 %v980
      %v1212 = vpop.f32.mrf.mxu0
      %v1213 = vadd.f32 %v1199, %v1212
      %v1214 = vpop.f32.mrf.mxu0
      %v1215 = vadd.f32 %v1201, %v1214
      %1216 = vdwg.mxu0
      %v1217 = vadd.f32 %v945, %v1213
      %v1218 = vadd.f32 %v946, %v1215
      %1219 = vst [vmem:[#allocation2] sm:$0xff] %v1217
      %1220 = vst [vmem:[#allocation2 + $0x8] sm:$0xff] %v1218
      %v1221 = vld [vmem:[#allocation2] sm:$0xff]
      %v1222 = vld [vmem:[#allocation2 + $0x8] sm:$0xff]
      %v1223 = vld [vmem:[%s381] sm:$0x1]
      %v1225 = vperm.slane %v1223, 0
      %v1227 = vadd.f32 %v1221, %v1225
      %v1228 = vadd.f32 %v1222, %v1225
      %v1229 = vpack.c.bf16 %v1227, %v1227
      %v1230 = vpack.c.bf16 %v1228, %v1228
      %1231 = vst [vmem:[%s389] sm:$0xf] %v1229
      %1232 = vst [vmem:[%s389 + $0x4] sm:$0xf] %v1230
      %v1233 = vadd.f32 %v1227, %v1228
      %v1234 = vrot.slane %v1233, 4
      %v1235 = vadd.f32 %v1233, %v1234
      %v1236 = vrot.slane %v1235, 2
      %v1237 = vadd.f32 %v1235, %v1236
      %v1238 = vrot.slane %v1237, 1
      %v1239 = vadd.f32 %v1237, %v1238
      %v1240 = vmul.f32 %v1227, %v1227
      %v1241 = vmul.f32 %v1228, %v1228
      %v1242 = vadd.f32 %v1240, %v1241
      %v1243 = vrot.slane %v1242, 4
      %v1244 = vadd.f32 %v1242, %v1243
      %v1245 = vrot.slane %v1244, 2
      %v1246 = vadd.f32 %v1244, %v1245
      %v1247 = vrot.slane %v1246, 1
      %v1248 = vadd.f32 %v1246, %v1247
      %vm1249 = vcmask 1040384
      %v1250 = vsel %vm1249, %v1239, %v1248
      %1251 = vst [vmem:[%s396] sm:$0x3] %v1250
      %p1252 = scmp.lt.s32.totalorder %s22, 7
      %s1253 = scalar_select %p1252, %s22, 7
      %p1254 = scmp.lt.s32.totalorder %s23, 0
      %s1255 = scalar_select %p1254, %s23, 0
      %s1256 = smul.addr %s1253, 2
      %s1257 = sadd.s32 %s1255, %s1256
      %s1258 = smul.addr %s1257, 4
      %s1259 = scalar_lea.vmem %s5, %s1258
      %p1260 = scmp.lt.s32.totalorder %s22, 7
      %s1261 = scalar_select %p1260, %s22, 7
      %p1262 = scmp.lt.s32.totalorder %s23, 0
      %s1263 = scalar_select %p1262, %s23, 0
      %s1264 = sadd.s32 %s1263, %s1261
      %s1265 = smul.addr %s1264, 2
      %s1266 = scalar_lea.vmem %s6, %s1265
      // Predicated region
      $region41: #{res_block.7} parent=39 // pred_check
        %p1267 = pneg %p190
      $region42: #{res_block.7} parent=39 // pred_check_branch
        %1269 = sbr.rel (%p1267) target = $region44
      $region43: #{res_block.7} parent=39 // pred_region
        _
      $region44: #{res_block.7} parent=39 // pred_fallthru
        _
      // Predicated region
      $region45: #{res_block.7} parent=39 // pred_check
        %p1270 = pneg %p218
      $region46: #{res_block.7} parent=39 // pred_check_branch
        %1272 = sbr.rel (%p1270) target = $region48
      $region47: #{res_block.7} parent=39 // pred_region
        _
      $region48: #{res_block.7} parent=39 // pred_fallthru
        _
    $region40: #{res_block.7} parent=5 // pred_fallthru
      _
    %p1273 = scmp.le.s32.totalorder 2, %s13
    // Predicated region
    $region49: #{res_block.7} parent=5 // pred_check
      %p1274 = pneg %p1273
    $region50: #{res_block.7} parent=5 // pred_check_branch
      %1276 = sbr.rel (%p1274) target = $region52
    $region51: #{res_block.7} parent=5 // pred_region
      %s1277 = ssub.s32 %s13, 2
      // Predicated region
      $region53: #{res_block.7} parent=51 // pred_check
        %p1278 = pneg %p196
      $region54: #{res_block.7} parent=51 // pred_check_branch
        %1280 = sbr.rel (%p1278) target = $region56
      $region55: #{res_block.7} parent=51 // pred_region
        %p1281 = scmp.lt.s32.totalorder %s24, 7
        %s1282 = scalar_select %p1281, %s24, 7
        %p1283 = scmp.lt.s32.totalorder %s25, 0
        %s1284 = scalar_select %p1283, %s25, 0
        %s1285 = smul.addr %s1282, 2
        %s1286 = sadd.s32 %s1284, %s1285
        %s1287 = smul.addr %s1286, 4
        %s1288 = scalar_lea.vmem %s5, %s1287
      $region56: #{res_block.7} parent=51 // pred_fallthru
        _
      // Predicated region
      $region57: #{res_block.7} parent=51 // pred_check
        %p1289 = pneg %p224
      $region58: #{res_block.7} parent=51 // pred_check_branch
        %1291 = sbr.rel (%p1289) target = $region60
      $region59: #{res_block.7} parent=51 // pred_region
        %p1292 = scmp.lt.s32.totalorder %s24, 7
        %s1293 = scalar_select %p1292, %s24, 7
        %p1294 = scmp.lt.s32.totalorder %s25, 0
        %s1295 = scalar_select %p1294, %s25, 0
        %s1296 = sadd.s32 %s1295, %s1293
        %s1297 = smul.addr %s1296, 2
        %s1298 = scalar_lea.vmem %s6, %s1297
      $region60: #{res_block.7} parent=51 // pred_fallthru
        _
    $region52: #{res_block.7} parent=5 // pred_fallthru
      _
  $region6: #{res_block.7} parent=0 // loop_footer
    %s17 = sadd.s32 1, %s13
  $region7: #{res_block.7} parent=0 // loop_footer_branch
    %12 = sbr.rel target = $region3
  $region8: #{res_block.7} parent=0 // loop_exit
    _

// kernel: res_block.9
$region0: #{res_block.9}
  #allocation0 [shape = 'u32[]', space=smem, size = 0x4, offset = 0x4, fixed_abs, tag = 'smem constant byte address 0x4 - core index']
  #allocation1 [shape = 'u32[72,128]{1,0:T(1,128)}', space=vmem, size = 0x9000, scoped, tag = 'internal scratch']
  #allocation2 [shape = 'f32[16,128]{1,0:T(8,128)}', space=vmem, size = 0x2000, scoped, tag = 'scratch operand']
  %s0 = inlined_call_operand.vmem [shape: bf16[10,34,128], index: 0, kind: input, shape index: {}, may-alias: {0,1,2}]
  %s1 = inlined_call_operand.vmem [shape: bf16[10,34,128], index: 1, kind: input, shape index: {}, may-alias: {0,1,2}]
  %s2 = inlined_call_operand.vmem [shape: bf16[10,34,128], index: 2, kind: input, shape index: {}, may-alias: {0,1,2}]
  %s3 = inlined_call_operand.vmem [shape: bf16[3,384,128], index: 3, kind: input, shape index: {}]
  %s4 = inlined_call_operand.vmem [shape: f32[1,128], index: 4, kind: input, shape index: {}]
  %s5 = inlined_call_operand.vmem [shape: bf16[8,16,128], index: 5, kind: output, shape index: {0}]
  %s6 = inlined_call_operand.vmem [shape: f32[8,2,128], index: 6, kind: output, shape index: {1}]
  %7 = xla_tuple %s5, %s6
  %s8 = sld [smem:[#allocation0]]
  $region61: #{res_block.9} parent=0
    _
  %s10 = ssub.s32 1, %s8
  %s11 = scalar_select 0, %s10, %s8
  loop: start=0, step=1, limit=10
  $region2: #{res_block.9} parent=0 // loop_pre_header
    _
  $region3: #{res_block.9} parent=0 // loop_header
    %s13 = sphi 0, %s17
    %p14 = scmp.ge.s32.totalorder %s13, 10
    %s20 = sphi 0, %s32
    %s21 = sphi 0, %s28
    %s22 = sphi 0, %s20
    %s23 = sphi 0, %s21
    %s24 = sphi 0, %s22
    %s25 = sphi 0, %s23
    %s35 = sphi 0, %s37
    %s38 = sphi 0, %s35
    %s39 = sphi 0, %s38
    %s55 = sphi 0, %s39
    %s63 = sphi 0, %s65
    %s66 = sphi 0, %s63
    %s67 = sphi 0, %s66
    %s83 = sphi 0, %s67
    %s91 = sphi 0, %s93
    %s94 = sphi 0, %s91
    %s95 = sphi 0, %s94
    %s111 = sphi 0, %s95
    %s117 = sphi 0, %s119
    %s120 = sphi 0, %s117
    %s121 = sphi 0, %s120
    %s137 = sphi 0, %s121
    %s143 = sphi 0, %s145
    %s146 = sphi 0, %s143
    %s147 = sphi 0, %s146
    %s163 = sphi 0, %s147
    %s171 = sphi 0, %s173
    %s174 = sphi 0, %s171
    %s175 = sphi 0, %s174
    %s191 = sphi 0, %s175
    %s199 = sphi 0, %s201
    %s202 = sphi 0, %s199
    %s203 = sphi 0, %s202
    %s219 = sphi 0, %s203
  $region4: #{res_block.9} parent=0 // loop_header_branch
    %16 = sbr.rel (%p14) target = $region8
  $region5: #{res_block.9} parent=0 // loop_body
    %s18 = ssub.s32 %s13, 1
    %s19 = ssub.s32 %s13, 2
    %s26 = sadd.s32 1, %s21
    %p27 = scmp.ge.s32.totalorder %s26, 1
    %s28 = scalar_select %p27, 0, %s26
    %s29 = sadd.s32 1, %s20
    %s30 = scalar_select %p27, %s29, %s20
    %p31 = scmp.ge.s32.totalorder %s30, 8
    %s32 = scalar_select %p31, 0, %s30
    %s33 = ssub.s32 %s20, %s32
    %p34 = scmp.eq.s32.totalorder %s33, 0
    %s36 = sadd.s32 %s35, 1
    %s37 = scalar_select %p34, %s35, %s36
    %p40 = pneg %p34
    %p41 = scmp.eq.s32.totalorder %s13, 7
    %p42 = por %p40, %p41
    %p43 = scmp.ne.s32.totalorder %s35, %s38
    %p44 = scmp.eq.s32.totalorder %s13, 0
    %p45 = por %p43, %p44
    %p46 = scmp.ne.s32.totalorder %s35, %s38
    %p47 = scmp.eq.s32.totalorder %s18, 7
    %p48 = por %p46, %p47
    %p49 = scmp.ne.s32.totalorder %s38, %s39
    %p50 = scmp.eq.s32.totalorder %s18, 0
    %p51 = por %p49, %p50
    %p52 = scmp.ne.s32.totalorder %s38, %s39
    %p53 = scmp.eq.s32.totalorder %s19, 7
    %p54 = por %p52, %p53
    %p56 = scmp.ne.s32.totalorder %s39, %s55
    %p57 = scmp.eq.s32.totalorder %s19, 0
    %p58 = por %p56, %p57
    %s59 = sadd.s32 %s20, 1
    %s60 = sadd.s32 %s32, 1
    %s61 = ssub.s32 %s59, %s60
    %p62 = scmp.eq.s32.totalorder %s61, 0
    %s64 = sadd.s32 %s63, 1
    %s65 = scalar_select %p62, %s63, %s64
    %p68 = pneg %p62
    %p69 = scmp.eq.s32.totalorder %s13, 7
    %p70 = por %p68, %p69
    %p71 = scmp.ne.s32.totalorder %s63, %s66
    %p72 = scmp.eq.s32.totalorder %s13, 0
    %p73 = por %p71, %p72
    %p74 = scmp.ne.s32.totalorder %s63, %s66
    %p75 = scmp.eq.s32.totalorder %s18, 7
    %p76 = por %p74, %p75
    %p77 = scmp.ne.s32.totalorder %s66, %s67
    %p78 = scmp.eq.s32.totalorder %s18, 0
    %p79 = por %p77, %p78
    %p80 = scmp.ne.s32.totalorder %s66, %s67
    %p81 = scmp.eq.s32.totalorder %s19, 7
    %p82 = por %p80, %p81
    %p84 = scmp.ne.s32.totalorder %s67, %s83
    %p85 = scmp.eq.s32.totalorder %s19, 0
    %p86 = por %p84, %p85
    %s87 = sadd.s32 %s20, 2
    %s88 = sadd.s32 %s32, 2
    %s89 = ssub.s32 %s87, %s88
    %p90 = scmp.eq.s32.totalorder %s89, 0
    %s92 = sadd.s32 %s91, 1
    %s93 = scalar_select %p90, %s91, %s92
    %p96 = pneg %p90
    %p97 = scmp.eq.s32.totalorder %s13, 7
    %p98 = por %p96, %p97
    %p99 = scmp.ne.s32.totalorder %s91, %s94
    %p100 = scmp.eq.s32.totalorder %s13, 0
    %p101 = por %p99, %p100
    %p102 = scmp.ne.s32.totalorder %s91, %s94
    %p103 = scmp.eq.s32.totalorder %s18, 7
    %p104 = por %p102, %p103
    %p105 = scmp.ne.s32.totalorder %s94, %s95
    %p106 = scmp.eq.s32.totalorder %s18, 0
    %p107 = por %p105, %p106
    %p108 = scmp.ne.s32.totalorder %s94, %s95
    %p109 = scmp.eq.s32.totalorder %s19, 7
    %p110 = por %p108, %p109
    %p112 = scmp.ne.s32.totalorder %s95, %s111
    %p113 = scmp.eq.s32.totalorder %s19, 0
    %p114 = por %p112, %p113
    %s115 = ssub.s32 %s21, %s28
    %p116 = scmp.eq.s32.totalorder %s115, 0
    %s118 = sadd.s32 %s117, 1
    %s119 = scalar_select %p116, %s117, %s118
    %p122 = pneg %p116
    %p123 = scmp.eq.s32.totalorder %s13, 7
    %p124 = por %p122, %p123
    %p125 = scmp.ne.s32.totalorder %s117, %s120
    %p126 = scmp.eq.s32.totalorder %s13, 0
    %p127 = por %p125, %p126
    %p128 = scmp.ne.s32.totalorder %s117, %s120
    %p129 = scmp.eq.s32.totalorder %s18, 7
    %p130 = por %p128, %p129
    %p131 = scmp.ne.s32.totalorder %s120, %s121
    %p132 = scmp.eq.s32.totalorder %s18, 0
    %p133 = por %p131, %p132
    %p134 = scmp.ne.s32.totalorder %s120, %s121
    %p135 = scmp.eq.s32.totalorder %s19, 7
    %p136 = por %p134, %p135
    %p138 = scmp.ne.s32.totalorder %s121, %s137
    %p139 = scmp.eq.s32.totalorder %s19, 0
    %p140 = por %p138, %p139
    %s141 = ssub.s32 %s21, %s28
    %p142 = scmp.eq.s32.totalorder %s141, 0
    %s144 = sadd.s32 %s143, 1
    %s145 = scalar_select %p142, %s143, %s144
    %p148 = pneg %p142
    %p149 = scmp.eq.s32.totalorder %s13, 7
    %p150 = por %p148, %p149
    %p151 = scmp.ne.s32.totalorder %s143, %s146
    %p152 = scmp.eq.s32.totalorder %s13, 0
    %p153 = por %p151, %p152
    %p154 = scmp.ne.s32.totalorder %s143, %s146
    %p155 = scmp.eq.s32.totalorder %s18, 7
    %p156 = por %p154, %p155
    %p157 = scmp.ne.s32.totalorder %s146, %s147
    %p158 = scmp.eq.s32.totalorder %s18, 0
    %p159 = por %p157, %p158
    %p160 = scmp.ne.s32.totalorder %s146, %s147
    %p161 = scmp.eq.s32.totalorder %s19, 7
    %p162 = por %p160, %p161
    %p164 = scmp.ne.s32.totalorder %s147, %s163
    %p165 = scmp.eq.s32.totalorder %s19, 0
    %p166 = por %p164, %p165
    %s167 = ssub.s32 %s20, %s32
    %s168 = ssub.s32 %s21, %s28
    %s169 = sor.u32 %s167, %s168
    %p170 = scmp.eq.s32.totalorder %s169, 0
    %s172 = sadd.s32 %s171, 1
    %s173 = scalar_select %p170, %s171, %s172
    %p176 = pneg %p170
    %p177 = scmp.eq.s32.totalorder %s13, 7
    %p178 = por %p176, %p177
    %p179 = scmp.ne.s32.totalorder %s171, %s174
    %p180 = scmp.eq.s32.totalorder %s13, 0
    %p181 = por %p179, %p180
    %p182 = scmp.ne.s32.totalorder %s171, %s174
    %p183 = scmp.eq.s32.totalorder %s18, 7
    %p184 = por %p182, %p183
    %p185 = scmp.ne.s32.totalorder %s174, %s175
    %p186 = scmp.eq.s32.totalorder %s18, 0
    %p187 = por %p185, %p186
    %p188 = scmp.ne.s32.totalorder %s174, %s175
    %p189 = scmp.eq.s32.totalorder %s19, 7
    %p190 = por %p188, %p189
    %p192 = scmp.ne.s32.totalorder %s175, %s191
    %p193 = scmp.eq.s32.totalorder %s19, 0
    %p194 = por %p192, %p193
    %s195 = ssub.s32 %s20, %s32
    %s196 = ssub.s32 %s21, %s28
    %s197 = sor.u32 %s195, %s196
    %p198 = scmp.eq.s32.totalorder %s197, 0
    %s200 = sadd.s32 %s199, 1
    %s201 = scalar_select %p198, %s199, %s200
    %p204 = pneg %p198
    %p205 = scmp.eq.s32.totalorder %s13, 7
    %p206 = por %p204, %p205
    %p207 = scmp.ne.s32.totalorder %s199, %s202
    %p208 = scmp.eq.s32.totalorder %s13, 0
    %p209 = por %p207, %p208
    %p210 = scmp.ne.s32.totalorder %s199, %s202
    %p211 = scmp.eq.s32.totalorder %s18, 7
    %p212 = por %p210, %p211
    %p213 = scmp.ne.s32.totalorder %s202, %s203
    %p214 = scmp.eq.s32.totalorder %s18, 0
    %p215 = por %p213, %p214
    %p216 = scmp.ne.s32.totalorder %s202, %s203
    %p217 = scmp.eq.s32.totalorder %s19, 7
    %p218 = por %p216, %p217
    %p220 = scmp.ne.s32.totalorder %s203, %s219
    %p221 = scmp.eq.s32.totalorder %s19, 0
    %p222 = por %p220, %p221
    %p223 = scmp.le.s32.totalorder 1, %s13
    %p224 = scmp.lt.s32.totalorder %s13, 9
    %p225 = pnand %p223, %p224
    %p226 = pneg %p225
    // Predicated region
    $region9: #{res_block.9} parent=5 // pred_check
      _
    $region10: #{res_block.9} parent=5 // pred_check_branch
      %228 = sbr.rel (%p225) target = $region12
    $region11: #{res_block.9} parent=5 // pred_region
      %s229 = ssub.s32 %s13, 1
      // Predicated region
      $region13: #{res_block.9} parent=11 // pred_check
        %p230 = pneg %p133
      $region14: #{res_block.9} parent=11 // pred_check_branch
        %232 = sbr.rel (%p230) target = $region16
      $region15: #{res_block.9} parent=11 // pred_region
        %p233 = scmp.lt.s32.totalorder %s23, 0
        %s234 = scalar_select %p233, %s23, 0
        %s235 = smul.addr %s234, 4
        %s236 = scalar_lea.vmem %s3, %s235
      $region16: #{res_block.9} parent=11 // pred_fallthru
        _
      // Predicated region
      $region17: #{res_block.9} parent=11 // pred_check
        %p237 = pneg %p159
      $region18: #{res_block.9} parent=11 // pred_check_branch
        %239 = sbr.rel (%p237) target = $region20
      $region19: #{res_block.9} parent=11 // pred_region
        %p240 = scmp.lt.s32.totalorder %s23, 0
        %s241 = scalar_select %p240, %s23, 0
        %s242 = scalar_lea.vmem %s4, %s241
      $region20: #{res_block.9} parent=11 // pred_fallthru
        _
    $region12: #{res_block.9} parent=5 // pred_fallthru
      _
    %p243 = scmp.lt.s32.totalorder %s13, 8
    // Predicated region
    $region21: #{res_block.9} parent=5 // pred_check
      %p244 = pneg %p243
    $region22: #{res_block.9} parent=5 // pred_check_branch
      %246 = sbr.rel (%p244) target = $region24
    $region23: #{res_block.9} parent=5 // pred_region
      // Predicated region
      $region25: #{res_block.9} parent=23 // pred_check
        %p247 = pneg %p45
      $region26: #{res_block.9} parent=23 // pred_check_branch
        %249 = sbr.rel (%p247) target = $region28
      $region27: #{res_block.9} parent=23 // pred_region
        %p250 = scmp.lt.s32.totalorder %s20, 9
        %s251 = scalar_select %p250, %s20, 9
        %s252 = smul.addr %s251, 5
        %s253 = smul.addr %s252, 4
        %s254 = scalar_lea.vmem %s0, %s253
      $region28: #{res_block.9} parent=23 // pred_fallthru
        _
      // Predicated region
      $region29: #{res_block.9} parent=23 // pred_check
        %p255 = pneg %p73
      $region30: #{res_block.9} parent=23 // pred_check_branch
        %257 = sbr.rel (%p255) target = $region32
      $region31: #{res_block.9} parent=23 // pred_region
        %s258 = sadd.s32 %s20, 1
        %p259 = scmp.lt.s32.totalorder %s258, 9
        %s260 = scalar_select %p259, %s258, 9
        %s261 = smul.addr %s260, 5
        %s262 = smul.addr %s261, 4
        %s263 = scalar_lea.vmem %s1, %s262
        %s264 = sadd.s32 %s20, 1
      $region32: #{res_block.9} parent=23 // pred_fallthru
        _
      // Predicated region
      $region33: #{res_block.9} parent=23 // pred_check
        %p265 = pneg %p101
      $region34: #{res_block.9} parent=23 // pred_check_branch
        %267 = sbr.rel (%p265) target = $region36
      $region35: #{res_block.9} parent=23 // pred_region
        %s268 = sadd.s32 %s20, 2
        %p269 = scmp.lt.s32.totalorder %s268, 9
        %s270 = scalar_select %p269, %s268, 9
        %s271 = smul.addr %s270, 5
        %s272 = smul.addr %s271, 4
        %s273 = scalar_lea.vmem %s2, %s272
        %s274 = sadd.s32 %s20, 2
      $region36: #{res_block.9} parent=23 // pred_fallthru
        _
    $region24: #{res_block.9} parent=5 // pred_fallthru
      _
    %p275 = scmp.le.s32.totalorder 1, %s13
    %p276 = scmp.lt.s32.totalorder %s13, 9
    %p277 = pnand %p275, %p276
    %p278 = pneg %p277
    // Predicated region
    $region37: #{res_block.9} parent=5 // pred_check
      _
    $region38: #{res_block.9} parent=5 // pred_check_branch
      %280 = sbr.rel (%p277) target = $region40
    $region39: #{res_block.9} parent=5 // pred_region
      %s281 = ssub.s32 %s13, 1
      %p282 = scmp.lt.s32.totalorder %s22, 9
      %s283 = scalar_select %p282, %s22, 9
      %s284 = smul.addr %s283, 5
      %s285 = smul.addr %s284, 4
      %s286 = scalar_lea.vmem %s0, %s285
      %p287 = pneg %p51
      %p288 = pneg %p48
      %s289 = sadd.s32 %s22, 1
      %p290 = scmp.lt.s32.totalorder %s289, 9
      %s291 = scalar_select %p290, %s289, 9
      %s292 = smul.addr %s291, 5
      %s293 = smul.addr %s292, 4
      %s294 = scalar_lea.vmem %s1, %s293
      %p295 = pneg %p79
      %p296 = pneg %p76
      %s297 = sadd.s32 %s22, 2
      %p298 = scmp.lt.s32.totalorder %s297, 9
      %s299 = scalar_select %p298, %s297, 9
      %s300 = smul.addr %s299, 5
      %s301 = smul.addr %s300, 4
      %s302 = scalar_lea.vmem %s2, %s301
      %p303 = pneg %p107
      %p304 = pneg %p104
      %p305 = scmp.lt.s32.totalorder %s23, 0
      %s306 = scalar_select %p305, %s23, 0
      %s307 = smul.addr %s306, 4
      %s308 = scalar_lea.vmem %s3, %s307
      %p309 = pneg %p133
      %p310 = pneg %p130
      %p311 = scmp.lt.s32.totalorder %s23, 0
      %s312 = scalar_select %p311, %s23, 0
      %s313 = scalar_lea.vmem %s4, %s312
      %p314 = pneg %p159
      %p315 = pneg %p156
      %p316 = pneg %p187
      %p317 = pneg %p184
      %p318 = scmp.lt.s32.totalorder %s22, 7
      %s319 = scalar_select %p318, %s22, 7
      %p320 = scmp.lt.s32.totalorder %s23, 0
      %s321 = scalar_select %p320, %s23, 0
      %s322 = smul.addr %s319, 2
      %s323 = sadd.s32 %s321, %s322
      %s324 = smul.addr %s323, 4
      %s325 = scalar_lea.vmem %s5, %s324
      %p326 = pneg %p215
      %p327 = pneg %p212
      %p328 = scmp.lt.s32.totalorder %s22, 7
      %s329 = scalar_select %p328, %s22, 7
      %p330 = scmp.lt.s32.totalorder %s23, 0
      %s331 = scalar_select %p330, %s23, 0
      %s332 = sadd.s32 %s331, %s329
      %s333 = smul.addr %s332, 2
      %s334 = scalar_lea.vmem %s6, %s333
      %p335 = scmp.lt.s32.totalorder %s22, 9
      %s336 = scalar_select %p335, %s22, 9
      %s337 = smul.addr %s336, 5
      %s338 = smul.addr %s337, 4
      %s339 = scalar_lea.vmem %s0, %s338
      %s340 = sadd.s32 %s22, 1
      %p341 = scmp.lt.s32.totalorder %s340, 9
      %s342 = scalar_select %p341, %s340, 9
      %s343 = smul.addr %s342, 5
      %s344 = smul.addr %s343, 4
      %s345 = scalar_lea.vmem %s1, %s344
      %s346 = sadd.s32 %s22, 1
      %s347 = sadd.s32 %s22, 2
      %p348 = scmp.lt.s32.totalorder %s347, 9
      %s349 = scalar_select %p348, %s347, 9
      %s350 = smul.addr %s349, 5
      %s351 = smul.addr %s350, 4
      %s352 = scalar_lea.vmem %s2, %s351
      %s353 = sadd.s32 %s22, 2
      %p354 = scmp.lt.s32.totalorder %s23, 0
      %s355 = scalar_select %p354, %s23, 0
      %s356 = smul.addr %s355, 4
      %s357 = scalar_lea.vmem %s3, %s356
      %p358 = scmp.lt.s32.totalorder %s23, 0
      %s359 = scalar_select %p358, %s23, 0
      %s360 = scalar_lea.vmem %s4, %s359
      %p361 = scmp.lt.s32.totalorder %s22, 7
      %s362 = scalar_select %p361, %s22, 7
      %p363 = scmp.lt.s32.totalorder %s23, 0
      %s364 = scalar_select %p363, %s23, 0
      %s365 = smul.addr %s362, 2
      %s366 = sadd.s32 %s364, %s365
      %s367 = smul.addr %s366, 4
      %s368 = scalar_lea.vmem %s5, %s367
      %p369 = scmp.lt.s32.totalorder %s22, 7
      %s370 = scalar_select %p369, %s22, 7
      %p371 = scmp.lt.s32.totalorder %s23, 0
      %s372 = scalar_select %p371, %s23, 0
      %s373 = sadd.s32 %s372, %s370
      %s374 = smul.addr %s373, 2
      %s375 = scalar_lea.vmem %s6, %s374
      %v376 = vld [vmem:[%s339 + $0x4] sm:$0x8]
      %v377 = vld [vmem:[%s339 + $0x8] sm:$0xf]
      %v378 = vld [vmem:[%s339 + $0xc] sm:$0x7]
      %v379 = vld [vmem:[%s339 + $0xc] sm:$0xf]
      %v380 = vld [vmem:[%s339 + $0x8] sm:$0xe]
      %v381 = vld [vmem:[%s339 + $0x10] sm:$0x1]
      %v385 = vunpack.c.l.b16 %v376
      %v386 = vunpack.c.l.b16 %v377
      %v387 = vunpack.c.l.b16 %v378
      %v388 = vpack.c.b16 %v386, %v385
      %v389 = vpack.c.b16 %v387, %v387
      %v391 = vunpack.c.l.b16 %v379
      %v392 = vpack.c.b16 %v391, %v386
      %v393 = vrot.slane %v392, 5
      %v396 = vunpack.c.l.b16 %v380
      %v397 = vunpack.c.l.b16 %v381
      %v398 = vpack.c.b16 %v391, %v396
      %v399 = vpack.c.b16 %v397, %v397
      %vm400 = vcmask 1041408
      %v401 = vrot.slane %v398, 6
      %v402 = vrot.slane %v399, 6
      %v403 = vsel %vm400, %v401, %v402
      %v404 = vld [vmem:[%s357] sm:$0xf]
      %v405 = vld [vmem:[%s357 + $0x4] sm:$0xf]
      %v406 = vld [vmem:[%s357 + $0x8] sm:$0xf]
      %v407 = vld [vmem:[%s357 + $0xc] sm:$0xf]
      %v408 = vld [vmem:[%s357 + $0x10] sm:$0xf]
      %v409 = vld [vmem:[%s357 + $0x14] sm:$0xf]
      %v410 = vld [vmem:[%s357 + $0x18] sm:$0xf]
      %v411 = vld [vmem:[%s357 + $0x1c] sm:$0xf]
      %v412 = vld [vmem:[%s357 + $0x20] sm:$0xf]
      %v413 = vld [vmem:[%s357 + $0x24] sm:$0xf]
      %v414 = vld [vmem:[%s357 + $0x28] sm:$0xf]
      %v415 = vld [vmem:[%s357 + $0x2c] sm:$0xf]
      %v416 = vld [vmem:[%s357 + $0x30] sm:$0xf]
      %v417 = vld [vmem:[%s357 + $0x34] sm:$0xf]
      %v418 = vld [vmem:[%s357 + $0x38] sm:$0xf]
      %v419 = vld [vmem:[%s357 + $0x3c] sm:$0xf]
      %v420 = vld [vmem:[%s357 + $0x40] sm:$0xf]
      %v421 = vld [vmem:[%s357 + $0x44] sm:$0xf]
      %v422 = vld [vmem:[%s357 + $0x48] sm:$0xf]
      %v423 = vld [vmem:[%s357 + $0x4c] sm:$0xf]
      %v424 = vld [vmem:[%s357 + $0x50] sm:$0xf]
      %v425 = vld [vmem:[%s357 + $0x54] sm:$0xf]
      %v426 = vld [vmem:[%s357 + $0x58] sm:$0xf]
      %v427 = vld [vmem:[%s357 + $0x5c] sm:$0xf]
      %v428 = vld [vmem:[%s357 + $0x60] sm:$0xf]
      %v429 = vld [vmem:[%s357 + $0x64] sm:$0xf]
      %v430 = vld [vmem:[%s357 + $0x68] sm:$0xf]
      %v431 = vld [vmem:[%s357 + $0x6c] sm:$0xf]
      %v432 = vld [vmem:[%s357 + $0x70] sm:$0xf]
      %v433 = vld [vmem:[%s357 + $0x74] sm:$0xf]
      %v434 = vld [vmem:[%s357 + $0x78] sm:$0xf]
      %v435 = vld [vmem:[%s357 + $0x7c] sm:$0xf]
      %v436 = vld [vmem:[%s357 + $0x80] sm:$0xf]
      %v437 = vld [vmem:[%s357 + $0x84] sm:$0xf]
      %v438 = vld [vmem:[%s357 + $0x88] sm:$0xf]
      %v439 = vld [vmem:[%s357 + $0x8c] sm:$0xf]
      %v440 = vld [vmem:[%s357 + $0x90] sm:$0xf]
      %v441 = vld [vmem:[%s357 + $0x94] sm:$0xf]
      %v442 = vld [vmem:[%s357 + $0x98] sm:$0xf]
      %v443 = vld [vmem:[%s357 + $0x9c] sm:$0xf]
      %v444 = vld [vmem:[%s357 + $0xa0] sm:$0xf]
      %v445 = vld [vmem:[%s357 + $0xa4] sm:$0xf]
      %v446 = vld [vmem:[%s357 + $0xa8] sm:$0xf]
      %v447 = vld [vmem:[%s357 + $0xac] sm:$0xf]
      %v448 = vld [vmem:[%s357 + $0xb0] sm:$0xf]
      %v449 = vld [vmem:[%s357 + $0xb4] sm:$0xf]
      %v450 = vld [vmem:[%s357 + $0xb8] sm:$0xf]
      %v451 = vld [vmem:[%s357 + $0xbc] sm:$0xf]
      %vm452 = vcmask 1044480
      %v453 = vrot.slane %v388, 3
      %v454 = vrot.slane %v389, 3
      %v455 = vsel %vm452, %v453, %v454
      %v456 = vrot.slane %v393, 3
      %v457 = vsel %vm452, %v456, %v456
      %v458 = vrot.slane %v401, 3
      %v459 = vrot.slane %v403, 3
      %v460 = vsel %vm452, %v458, %v459
      %v512 = vunpack.c.l.b16 %v404
      %v513 = vunpack.c.l.b16 %v405
      %v514 = vunpack.c.l.b16 %v406
      %v515 = vunpack.c.l.b16 %v407
      %v516 = vunpack.c.l.b16 %v408
      %v517 = vunpack.c.l.b16 %v409
      %v518 = vunpack.c.l.b16 %v410
      %v519 = vunpack.c.l.b16 %v411
      %v520 = vunpack.c.l.b16 %v412
      %v521 = vunpack.c.l.b16 %v413
      %v522 = vunpack.c.l.b16 %v414
      %v523 = vunpack.c.l.b16 %v415
      %v524 = vunpack.c.l.b16 %v416
      %v525 = vunpack.c.l.b16 %v417
      %v526 = vunpack.c.l.b16 %v418
      %v527 = vunpack.c.l.b16 %v419
      %v528 = vunpack.c.l.b16 %v420
      %v529 = vunpack.c.l.b16 %v421
      %v530 = vunpack.c.l.b16 %v422
      %v531 = vunpack.c.l.b16 %v423
      %v532 = vunpack.c.l.b16 %v424
      %v533 = vunpack.c.l.b16 %v425
      %v534 = vunpack.c.l.b16 %v426
      %v535 = vunpack.c.l.b16 %v427
      %v536 = vunpack.c.l.b16 %v428
      %v537 = vunpack.c.l.b16 %v429
      %v538 = vunpack.c.l.b16 %v430
      %v539 = vunpack.c.l.b16 %v431
      %v540 = vunpack.c.l.b16 %v432
      %v541 = vunpack.c.l.b16 %v433
      %v542 = vunpack.c.l.b16 %v434
      %v543 = vunpack.c.l.b16 %v435
      %v544 = vunpack.c.l.b16 %v436
      %v545 = vunpack.c.l.b16 %v437
      %v546 = vunpack.c.l.b16 %v438
      %v547 = vunpack.c.l.b16 %v439
      %v548 = vunpack.c.l.b16 %v440
      %v549 = vunpack.c.l.b16 %v441
      %v550 = vunpack.c.l.b16 %v442
      %v551 = vunpack.c.l.b16 %v443
      %v552 = vunpack.c.l.b16 %v444
      %v553 = vunpack.c.l.b16 %v445
      %v554 = vunpack.c.l.b16 %v446
      %v555 = vunpack.c.l.b16 %v447
      %v556 = vunpack.c.l.b16 %v448
      %v557 = vunpack.c.l.b16 %v449
      %v558 = vunpack.c.l.b16 %v450
      %v559 = vunpack.c.l.b16 %v451
      %v560 = vpack.c.b16 %v513, %v512
      %v561 = vpack.c.b16 %v515, %v514
      %v562 = vpack.c.b16 %v517, %v516
      %v563 = vpack.c.b16 %v519, %v518
      %v564 = vpack.c.b16 %v521, %v520
      %v565 = vpack.c.b16 %v523, %v522
      %v566 = vpack.c.b16 %v525, %v524
      %v567 = vpack.c.b16 %v527, %v526
      %v568 = vpack.c.b16 %v529, %v528
      %v569 = vpack.c.b16 %v531, %v530
      %v570 = vpack.c.b16 %v533, %v532
      %v571 = vpack.c.b16 %v535, %v534
      %v572 = vpack.c.b16 %v537, %v536
      %v573 = vpack.c.b16 %v539, %v538
      %v574 = vpack.c.b16 %v541, %v540
      %v575 = vpack.c.b16 %v543, %v542
      %v576 = vpack.c.b16 %v545, %v544
      %v577 = vpack.c.b16 %v547, %v546
      %v578 = vpack.c.b16 %v549, %v548
      %v579 = vpack.c.b16 %v551, %v550
      %v580 = vpack.c.b16 %v553, %v552
      %v581 = vpack.c.b16 %v555, %v554
      %v582 = vpack.c.b16 %v557, %v556
      %v583 = vpack.c.b16 %v559, %v558
      %608 = vmatpush.bf16.msra.mxu0 %v567
      %609 = vmatpush.bf16.msra.mxu0 %v566
      %610 = vmatpush.bf16.msra.mxu0 %v565
      %611 = vmatpush.bf16.msra.mxu0 %v564
      %612 = vmatpush.bf16.msra.mxu0 %v563
      %613 = vmatpush.bf16.msra.mxu0 %v562
      %614 = vmatpush.bf16.msra.mxu0 %v561
      %615 = vmatpush.bf16.msra.mxu0 %v560
      %616 = vmatmul.bf16.gmra.mxu0 %v455
      %v617 = vpop.f32.mrf.mxu0
      %v618 = vadd.f32 0.0, %v617
      %v619 = vpop.f32.mrf.mxu0
      %v620 = vadd.f32 0.0, %v619
      %621 = vdwg.mxu0
      %622 = vmatpush.bf16.msra.mxu0 %v575
      %623 = vmatpush.bf16.msra.mxu0 %v574
      %624 = vmatpush.bf16.msra.mxu0 %v573
      %625 = vmatpush.bf16.msra.mxu0 %v572
      %626 = vmatpush.bf16.msra.mxu0 %v571
      %627 = vmatpush.bf16.msra.mxu0 %v570
      %628 = vmatpush.bf16.msra.mxu0 %v569
      %629 = vmatpush.bf16.msra.mxu0 %v568
      %630 = vmatmul.bf16.gmra.mxu0 %v457
      %v631 = vpop.f32.mrf.mxu0
      %v632 = vadd.f32 %v618, %v631
      %v633 = vpop.f32.mrf.mxu0
      %v634 = vadd.f32 %v620, %v633
      %635 = vdwg.mxu0
      %636 = vmatpush.bf16.msra.mxu0 %v583
      %637 = vmatpush.bf16.msra.mxu0 %v582
      %638 = vmatpush.bf16.msra.mxu0 %v581
      %639 = vmatpush.bf16.msra.mxu0 %v580
      %640 = vmatpush.bf16.msra.mxu0 %v579
      %641 = vmatpush.bf16.msra.mxu0 %v578
      %642 = vmatpush.bf16.msra.mxu0 %v577
      %643 = vmatpush.bf16.msra.mxu0 %v576
      %644 = vmatmul.bf16.gmra.mxu0 %v460
      %v645 = vpop.f32.mrf.mxu0
      %v646 = vadd.f32 %v632, %v645
      %v647 = vpop.f32.mrf.mxu0
      %v648 = vadd.f32 %v634, %v647
      %649 = vdwg.mxu0
      %650 = vst [vmem:[#allocation2] sm:$0xff] %v646
      %651 = vst [vmem:[#allocation2 + $0x8] sm:$0xff] %v648
      %v652 = vld [vmem:[#allocation2] sm:$0xff]
      %v653 = vld [vmem:[#allocation2 + $0x8] sm:$0xff]
      %v654 = vld [vmem:[%s345 + $0x4] sm:$0x8]
      %v655 = vld [vmem:[%s345 + $0x8] sm:$0xf]
      %v656 = vld [vmem:[%s345 + $0xc] sm:$0x7]
      %v657 = vld [vmem:[%s345 + $0xc] sm:$0xf]
      %v658 = vld [vmem:[%s345 + $0x8] sm:$0xe]
      %v659 = vld [vmem:[%s345 + $0x10] sm:$0x1]
      %v663 = vunpack.c.l.b16 %v654
      %v664 = vunpack.c.l.b16 %v655
      %v665 = vunpack.c.l.b16 %v656
      %v666 = vpack.c.b16 %v664, %v663
      %v667 = vpack.c.b16 %v665, %v665
      %v669 = vunpack.c.l.b16 %v657
      %v670 = vpack.c.b16 %v669, %v664
      %v671 = vrot.slane %v670, 5
      %v674 = vunpack.c.l.b16 %v658
      %v675 = vunpack.c.l.b16 %v659
      %v676 = vpack.c.b16 %v669, %v674
      %v677 = vpack.c.b16 %v675, %v675
      %v678 = vrot.slane %v676, 6
      %v679 = vrot.slane %v677, 6
      %v680 = vsel %vm400, %v678, %v679
      %s681 = scalar_lea.vmem %s357, 192
      %v682 = vld [vmem:[%s681] sm:$0xf]
      %v683 = vld [vmem:[%s681 + $0x4] sm:$0xf]
      %v684 = vld [vmem:[%s681 + $0x8] sm:$0xf]
      %v685 = vld [vmem:[%s681 + $0xc] sm:$0xf]
      %v686 = vld [vmem:[%s681 + $0x10] sm:$0xf]
      %v687 = vld [vmem:[%s681 + $0x14] sm:$0xf]
      %v688 = vld [vmem:[%s681 + $0x18] sm:$0xf]
      %v689 = vld [vmem:[%s681 + $0x1c] sm:$0xf]
      %v690 = vld [vmem:[%s681 + $0x20] sm:$0xf]
      %v691 = vld [vmem:[%s681 + $0x24] sm:$0xf]
      %v692 = vld [vmem:[%s681 + $0x28] sm:$0xf]
      %v693 = vld [vmem:[%s681 + $0x2c] sm:$0xf]
      %v694 = vld [vmem:[%s681 + $0x30] sm:$0xf]
      %v695 = vld [vmem:[%s681 + $0x34] sm:$0xf]
      %v696 = vld [vmem:[%s681 + $0x38] sm:$0xf]
      %v697 = vld [vmem:[%s681 + $0x3c] sm:$0xf]
      %v698 = vld [vmem:[%s681 + $0x40] sm:$0xf]
      %v699 = vld [vmem:[%s681 + $0x44] sm:$0xf]
      %v700 = vld [vmem:[%s681 + $0x48] sm:$0xf]
      %v701 = vld [vmem:[%s681 + $0x4c] sm:$0xf]
      %v702 = vld [vmem:[%s681 + $0x50] sm:$0xf]
      %v703 = vld [vmem:[%s681 + $0x54] sm:$0xf]
      %v704 = vld [vmem:[%s681 + $0x58] sm:$0xf]
      %v705 = vld [vmem:[%s681 + $0x5c] sm:$0xf]
      %v706 = vld [vmem:[%s681 + $0x60] sm:$0xf]
      %v707 = vld [vmem:[%s681 + $0x64] sm:$0xf]
      %v708 = vld [vmem:[%s681 + $0x68] sm:$0xf]
      %v709 = vld [vmem:[%s681 + $0x6c] sm:$0xf]
      %v710 = vld [vmem:[%s681 + $0x70] sm:$0xf]
      %v711 = vld [vmem:[%s681 + $0x74] sm:$0xf]
      %v712 = vld [vmem:[%s681 + $0x78] sm:$0xf]
      %v713 = vld [vmem:[%s681 + $0x7c] sm:$0xf]
      %v714 = vld [vmem:[%s681 + $0x80] sm:$0xf]
      %v715 = vld [vmem:[%s681 + $0x84] sm:$0xf]
      %v716 = vld [vmem:[%s681 + $0x88] sm:$0xf]
      %v717 = vld [vmem:[%s681 + $0x8c] sm:$0xf]
      %v718 = vld [vmem:[%s681 + $0x90] sm:$0xf]
      %v719 = vld [vmem:[%s681 + $0x94] sm:$0xf]
      %v720 = vld [vmem:[%s681 + $0x98] sm:$0xf]
      %v721 = vld [vmem:[%s681 + $0x9c] sm:$0xf]
      %v722 = vld [vmem:[%s681 + $0xa0] sm:$0xf]
      %v723 = vld [vmem:[%s681 + $0xa4] sm:$0xf]
      %v724 = vld [vmem:[%s681 + $0xa8] sm:$0xf]
      %v725 = vld [vmem:[%s681 + $0xac] sm:$0xf]
      %v726 = vld [vmem:[%s681 + $0xb0] sm:$0xf]
      %v727 = vld [vmem:[%s681 + $0xb4] sm:$0xf]
      %v728 = vld [vmem:[%s681 + $0xb8] sm:$0xf]
      %v729 = vld [vmem:[%s681 + $0xbc] sm:$0xf]
      %v730 = vrot.slane %v666, 3
      %v731 = vrot.slane %v667, 3
      %v732 = vsel %vm452, %v730, %v731
      %v733 = vrot.slane %v671, 3
      %v734 = vsel %vm452, %v733, %v733
      %v735 = vrot.slane %v678, 3
      %v736 = vrot.slane %v680, 3
      %v737 = vsel %vm452, %v735, %v736
      %v789 = vunpack.c.l.b16 %v682
      %v790 = vunpack.c.l.b16 %v683
      %v791 = vunpack.c.l.b16 %v684
      %v792 = vunpack.c.l.b16 %v685
      %v793 = vunpack.c.l.b16 %v686
      %v794 = vunpack.c.l.b16 %v687
      %v795 = vunpack.c.l.b16 %v688
      %v796 = vunpack.c.l.b16 %v689
      %v797 = vunpack.c.l.b16 %v690
      %v798 = vunpack.c.l.b16 %v691
      %v799 = vunpack.c.l.b16 %v692
      %v800 = vunpack.c.l.b16 %v693
      %v801 = vunpack.c.l.b16 %v694
      %v802 = vunpack.c.l.b16 %v695
      %v803 = vunpack.c.l.b16 %v696
      %v804 = vunpack.c.l.b16 %v697
      %v805 = vunpack.c.l.b16 %v698
      %v806 = vunpack.c.l.b16 %v699
      %v807 = vunpack.c.l.b16 %v700
      %v808 = vunpack.c.l.b16 %v701
      %v809 = vunpack.c.l.b16 %v702
      %v810 = vunpack.c.l.b16 %v703
      %v811 = vunpack.c.l.b16 %v704
      %v812 = vunpack.c.l.b16 %v705
      %v813 = vunpack.c.l.b16 %v706
      %v814 = vunpack.c.l.b16 %v707
      %v815 = vunpack.c.l.b16 %v708
      %v816 = vunpack.c.l.b16 %v709
      %v817 = vunpack.c.l.b16 %v710
      %v818 = vunpack.c.l.b16 %v711
      %v819 = vunpack.c.l.b16 %v712
      %v820 = vunpack.c.l.b16 %v713
      %v821 = vunpack.c.l.b16 %v714
      %v822 = vunpack.c.l.b16 %v715
      %v823 = vunpack.c.l.b16 %v716
      %v824 = vunpack.c.l.b16 %v717
      %v825 = vunpack.c.l.b16 %v718
      %v826 = vunpack.c.l.b16 %v719
      %v827 = vunpack.c.l.b16 %v720
      %v828 = vunpack.c.l.b16 %v721
      %v829 = vunpack.c.l.b16 %v722
      %v830 = vunpack.c.l.b16 %v723
      %v831 = vunpack.c.l.b16 %v724
      %v832 = vunpack.c.l.b16 %v725
      %v833 = vunpack.c.l.b16 %v726
      %v834 = vunpack.c.l.b16 %v727
      %v835 = vunpack.c.l.b16 %v728
      %v836 = vunpack.c.l.b16 %v729
      %v837 = vpack.c.b16 %v790, %v789
      %v838 = vpack.c.b16 %v792, %v791
      %v839 = vpack.c.b16 %v794, %v793
      %v840 = vpack.c.b16 %v796, %v795
      %v841 = vpack.c.b16 %v798, %v797
      %v842 = vpack.c.b16 %v800, %v799
      %v843 = vpack.c.b16 %v802, %v801
      %v844 = vpack.c.b16 %v804, %v803
      %v845 = vpack.c.b16 %v806, %v805
      %v846 = vpack.c.b16 %v808, %v807
      %v847 = vpack.c.b16 %v810, %v809
      %v848 = vpack.c.b16 %v812, %v811
      %v849 = vpack.c.b16 %v814, %v813
      %v850 = vpack.c.b16 %v816, %v815
      %v851 = vpack.c.b16 %v818, %v817
      %v852 = vpack.c.b16 %v820, %v819
      %v853 = vpack.c.b16 %v822, %v821
      %v854 = vpack.c.b16 %v824, %v823
      %v855 = vpack.c.b16 %v826, %v825
      %v856 = vpack.c.b16 %v828, %v827
      %v857 = vpack.c.b16 %v830, %v829
      %v858 = vpack.c.b16 %v832, %v831
      %v859 = vpack.c.b16 %v834, %v833
      %v860 = vpack.c.b16 %v836, %v835
      %885 = vmatpush.bf16.msra.mxu0 %v844
      %886 = vmatpush.bf16.msra.mxu0 %v843
      %887 = vmatpush.bf16.msra.mxu0 %v842
      %888 = vmatpush.bf16.msra.mxu0 %v841
      %889 = vmatpush.bf16.msra.mxu0 %v840
      %890 = vmatpush.bf16.msra.mxu0 %v839
      %891 = vmatpush.bf16.msra.mxu0 %v838
      %892 = vmatpush.bf16.msra.mxu0 %v837
      %893 = vmatmul.bf16.gmra.mxu0 %v732
      %v894 = vpop.f32.mrf.mxu0
      %v895 = vadd.f32 0.0, %v894
      %v896 = vpop.f32.mrf.mxu0
      %v897 = vadd.f32 0.0, %v896
      %898 = vdwg.mxu0
      %899 = vmatpush.bf16.msra.mxu0 %v852
      %900 = vmatpush.bf16.msra.mxu0 %v851
      %901 = vmatpush.bf16.msra.mxu0 %v850
      %902 = vmatpush.bf16.msra.mxu0 %v849
      %903 = vmatpush.bf16.msra.mxu0 %v848
      %904 = vmatpush.bf16.msra.mxu0 %v847
      %905 = vmatpush.bf16.msra.mxu0 %v846
      %906 = vmatpush.bf16.msra.mxu0 %v845
      %907 = vmatmul.bf16.gmra.mxu0 %v734
      %v908 = vpop.f32.mrf.mxu0
      %v909 = vadd.f32 %v895, %v908
      %v910 = vpop.f32.mrf.mxu0
      %v911 = vadd.f32 %v897, %v910
      %912 = vdwg.mxu0
      %913 = vmatpush.bf16.msra.mxu0 %v860
      %914 = vmatpush.bf16.msra.mxu0 %v859
      %915 = vmatpush.bf16.msra.mxu0 %v858
      %916 = vmatpush.bf16.msra.mxu0 %v857
      %917 = vmatpush.bf16.msra.mxu0 %v856
      %918 = vmatpush.bf16.msra.mxu0 %v855
      %919 = vmatpush.bf16.msra.mxu0 %v854
      %920 = vmatpush.bf16.msra.mxu0 %v853
      %921 = vmatmul.bf16.gmra.mxu0 %v737
      %v922 = vpop.f32.mrf.mxu0
      %v923 = vadd.f32 %v909, %v922
      %v924 = vpop.f32.mrf.mxu0
      %v925 = vadd.f32 %v911, %v924
      %926 = vdwg.mxu0
      %v927 = vadd.f32 %v652, %v923
      %v928 = vadd.f32 %v653, %v925
      %929 = vst [vmem:[#allocation2] sm:$0xff] %v927
      %930 = vst [vmem:[#allocation2 + $0x8] sm:$0xff] %v928
      %v931 = vld [vmem:[#allocation2] sm:$0xff]
      %v932 = vld [vmem:[#allocation2 + $0x8] sm:$0xff]
      %v933 = vld [vmem:[%s352 + $0x4] sm:$0x8]
      %v934 = vld [vmem:[%s352 + $0x8] sm:$0xf]
      %v935 = vld [vmem:[%s352 + $0xc] sm:$0x7]
      %v936 = vld [vmem:[%s352 + $0xc] sm:$0xf]
      %v937 = vld [vmem:[%s352 + $0x8] sm:$0xe]
      %v938 = vld [vmem:[%s352 + $0x10] sm:$0x1]
      %v942 = vunpack.c.l.b16 %v933
      %v943 = vunpack.c.l.b16 %v934
      %v944 = vunpack.c.l.b16 %v935
      %v945 = vpack.c.b16 %v943, %v942
      %v946 = vpack.c.b16 %v944, %v944
      %v948 = vunpack.c.l.b16 %v936
      %v949 = vpack.c.b16 %v948, %v943
      %v950 = vrot.slane %v949, 5
      %v953 = vunpack.c.l.b16 %v937
      %v954 = vunpack.c.l.b16 %v938
      %v955 = vpack.c.b16 %v948, %v953
      %v956 = vpack.c.b16 %v954, %v954
      %v957 = vrot.slane %v955, 6
      %v958 = vrot.slane %v956, 6
      %v959 = vsel %vm400, %v957, %v958
      %s960 = scalar_lea.vmem %s357, 384
      %v961 = vld [vmem:[%s960] sm:$0xf]
      %v962 = vld [vmem:[%s960 + $0x4] sm:$0xf]
      %v963 = vld [vmem:[%s960 + $0x8] sm:$0xf]
      %v964 = vld [vmem:[%s960 + $0xc] sm:$0xf]
      %v965 = vld [vmem:[%s960 + $0x10] sm:$0xf]
      %v966 = vld [vmem:[%s960 + $0x14] sm:$0xf]
      %v967 = vld [vmem:[%s960 + $0x18] sm:$0xf]
      %v968 = vld [vmem:[%s960 + $0x1c] sm:$0xf]
      %v969 = vld [vmem:[%s960 + $0x20] sm:$0xf]
      %v970 = vld [vmem:[%s960 + $0x24] sm:$0xf]
      %v971 = vld [vmem:[%s960 + $0x28] sm:$0xf]
      %v972 = vld [vmem:[%s960 + $0x2c] sm:$0xf]
      %v973 = vld [vmem:[%s960 + $0x30] sm:$0xf]
      %v974 = vld [vmem:[%s960 + $0x34] sm:$0xf]
      %v975 = vld [vmem:[%s960 + $0x38] sm:$0xf]
      %v976 = vld [vmem:[%s960 + $0x3c] sm:$0xf]
      %v977 = vld [vmem:[%s960 + $0x40] sm:$0xf]
      %v978 = vld [vmem:[%s960 + $0x44] sm:$0xf]
      %v979 = vld [vmem:[%s960 + $0x48] sm:$0xf]
      %v980 = vld [vmem:[%s960 + $0x4c] sm:$0xf]
      %v981 = vld [vmem:[%s960 + $0x50] sm:$0xf]
      %v982 = vld [vmem:[%s960 + $0x54] sm:$0xf]
      %v983 = vld [vmem:[%s960 + $0x58] sm:$0xf]
      %v984 = vld [vmem:[%s960 + $0x5c] sm:$0xf]
      %v985 = vld [vmem:[%s960 + $0x60] sm:$0xf]
      %v986 = vld [vmem:[%s960 + $0x64] sm:$0xf]
      %v987 = vld [vmem:[%s960 + $0x68] sm:$0xf]
      %v988 = vld [vmem:[%s960 + $0x6c] sm:$0xf]
      %v989 = vld [vmem:[%s960 + $0x70] sm:$0xf]
      %v990 = vld [vmem:[%s960 + $0x74] sm:$0xf]
      %v991 = vld [vmem:[%s960 + $0x78] sm:$0xf]
      %v992 = vld [vmem:[%s960 + $0x7c] sm:$0xf]
      %v993 = vld [vmem:[%s960 + $0x80] sm:$0xf]
      %v994 = vld [vmem:[%s960 + $0x84] sm:$0xf]
      %v995 = vld [vmem:[%s960 + $0x88] sm:$0xf]
      %v996 = vld [vmem:[%s960 + $0x8c] sm:$0xf]
      %v997 = vld [vmem:[%s960 + $0x90] sm:$0xf]
      %v998 = vld [vmem:[%s960 + $0x94] sm:$0xf]
      %v999 = vld [vmem:[%s960 + $0x98] sm:$0xf]
      %v1000 = vld [vmem:[%s960 + $0x9c] sm:$0xf]
      %v1001 = vld [vmem:[%s960 + $0xa0] sm:$0xf]
      %v1002 = vld [vmem:[%s960 + $0xa4] sm:$0xf]
      %v1003 = vld [vmem:[%s960 + $0xa8] sm:$0xf]
      %v1004 = vld [vmem:[%s960 + $0xac] sm:$0xf]
      %v1005 = vld [vmem:[%s960 + $0xb0] sm:$0xf]
      %v1006 = vld [vmem:[%s960 + $0xb4] sm:$0xf]
      %v1007 = vld [vmem:[%s960 + $0xb8] sm:$0xf]
      %v1008 = vld [vmem:[%s960 + $0xbc] sm:$0xf]
      %v1009 = vrot.slane %v945, 3
      %v1010 = vrot.slane %v946, 3
      %v1011 = vsel %vm452, %v1009, %v1010
      %v1012 = vrot.slane %v950, 3
      %v1013 = vsel %vm452, %v1012, %v1012
      %v1014 = vrot.slane %v957, 3
      %v1015 = vrot.slane %v959, 3
      %v1016 = vsel %vm452, %v1014, %v1015
      %v1068 = vunpack.c.l.b16 %v961
      %v1069 = vunpack.c.l.b16 %v962
      %v1070 = vunpack.c.l.b16 %v963
      %v1071 = vunpack.c.l.b16 %v964
      %v1072 = vunpack.c.l.b16 %v965
      %v1073 = vunpack.c.l.b16 %v966
      %v1074 = vunpack.c.l.b16 %v967
      %v1075 = vunpack.c.l.b16 %v968
      %v1076 = vunpack.c.l.b16 %v969
      %v1077 = vunpack.c.l.b16 %v970
      %v1078 = vunpack.c.l.b16 %v971
      %v1079 = vunpack.c.l.b16 %v972
      %v1080 = vunpack.c.l.b16 %v973
      %v1081 = vunpack.c.l.b16 %v974
      %v1082 = vunpack.c.l.b16 %v975
      %v1083 = vunpack.c.l.b16 %v976
      %v1084 = vunpack.c.l.b16 %v977
      %v1085 = vunpack.c.l.b16 %v978
      %v1086 = vunpack.c.l.b16 %v979
      %v1087 = vunpack.c.l.b16 %v980
      %v1088 = vunpack.c.l.b16 %v981
      %v1089 = vunpack.c.l.b16 %v982
      %v1090 = vunpack.c.l.b16 %v983
      %v1091 = vunpack.c.l.b16 %v984
      %v1092 = vunpack.c.l.b16 %v985
      %v1093 = vunpack.c.l.b16 %v986
      %v1094 = vunpack.c.l.b16 %v987
      %v1095 = vunpack.c.l.b16 %v988
      %v1096 = vunpack.c.l.b16 %v989
      %v1097 = vunpack.c.l.b16 %v990
      %v1098 = vunpack.c.l.b16 %v991
      %v1099 = vunpack.c.l.b16 %v992
      %v1100 = vunpack.c.l.b16 %v993
      %v1101 = vunpack.c.l.b16 %v994
      %v1102 = vunpack.c.l.b16 %v995
      %v1103 = vunpack.c.l.b16 %v996
      %v1104 = vunpack.c.l.b16 %v997
      %v1105 = vunpack.c.l.b16 %v998
      %v1106 = vunpack.c.l.b16 %v999
      %v1107 = vunpack.c.l.b16 %v1000
      %v1108 = vunpack.c.l.b16 %v1001
      %v1109 = vunpack.c.l.b16 %v1002
      %v1110 = vunpack.c.l.b16 %v1003
      %v1111 = vunpack.c.l.b16 %v1004
      %v1112 = vunpack.c.l.b16 %v1005
      %v1113 = vunpack.c.l.b16 %v1006
      %v1114 = vunpack.c.l.b16 %v1007
      %v1115 = vunpack.c.l.b16 %v1008
      %v1116 = vpack.c.b16 %v1069, %v1068
      %v1117 = vpack.c.b16 %v1071, %v1070
      %v1118 = vpack.c.b16 %v1073, %v1072
      %v1119 = vpack.c.b16 %v1075, %v1074
      %v1120 = vpack.c.b16 %v1077, %v1076
      %v1121 = vpack.c.b16 %v1079, %v1078
      %v1122 = vpack.c.b16 %v1081, %v1080
      %v1123 = vpack.c.b16 %v1083, %v1082
      %v1124 = vpack.c.b16 %v1085, %v1084
      %v1125 = vpack.c.b16 %v1087, %v1086
      %v1126 = vpack.c.b16 %v1089, %v1088
      %v1127 = vpack.c.b16 %v1091, %v1090
      %v1128 = vpack.c.b16 %v1093, %v1092
      %v1129 = vpack.c.b16 %v1095, %v1094
      %v1130 = vpack.c.b16 %v1097, %v1096
      %v1131 = vpack.c.b16 %v1099, %v1098
      %v1132 = vpack.c.b16 %v1101, %v1100
      %v1133 = vpack.c.b16 %v1103, %v1102
      %v1134 = vpack.c.b16 %v1105, %v1104
      %v1135 = vpack.c.b16 %v1107, %v1106
      %v1136 = vpack.c.b16 %v1109, %v1108
      %v1137 = vpack.c.b16 %v1111, %v1110
      %v1138 = vpack.c.b16 %v1113, %v1112
      %v1139 = vpack.c.b16 %v1115, %v1114
      %1164 = vmatpush.bf16.msra.mxu0 %v1123
      %1165 = vmatpush.bf16.msra.mxu0 %v1122
      %1166 = vmatpush.bf16.msra.mxu0 %v1121
      %1167 = vmatpush.bf16.msra.mxu0 %v1120
      %1168 = vmatpush.bf16.msra.mxu0 %v1119
      %1169 = vmatpush.bf16.msra.mxu0 %v1118
      %1170 = vmatpush.bf16.msra.mxu0 %v1117
      %1171 = vmatpush.bf16.msra.mxu0 %v1116
      %1172 = vmatmul.bf16.gmra.mxu0 %v1011
      %v1173 = vpop.f32.mrf.mxu0
      %v1174 = vadd.f32 0.0, %v1173
      %v1175 = vpop.f32.mrf.mxu0
      %v1176 = vadd.f32 0.0, %v1175
      %1177 = vdwg.mxu0
      %1178 = vmatpush.bf16.msra.mxu0 %v1131
      %1179 = vmatpush.bf16.msra.mxu0 %v1130
      %1180 = vmatpush.bf16.msra.mxu0 %v1129
      %1181 = vmatpush.bf16.msra.mxu0 %v1128
      %1182 = vmatpush.bf16.msra.mxu0 %v1127
      %1183 = vmatpush.bf16.msra.mxu0 %v1126
      %1184 = vmatpush.bf16.msra.mxu0 %v1125
      %1185 = vmatpush.bf16.msra.mxu0 %v1124
      %1186 = vmatmul.bf16.gmra.mxu0 %v1013
      %v1187 = vpop.f32.mrf.mxu0
      %v1188 = vadd.f32 %v1174, %v1187
      %v1189 = vpop.f32.mrf.mxu0
      %v1190 = vadd.f32 %v1176, %v1189
      %1191 = vdwg.mxu0
      %1192 = vmatpush.bf16.msra.mxu0 %v1139
      %1193 = vmatpush.bf16.msra.mxu0 %v1138
      %1194 = vmatpush.bf16.msra.mxu0 %v1137
      %1195 = vmatpush.bf16.msra.mxu0 %v1136
      %1196 = vmatpush.bf16.msra.mxu0 %v1135
      %1197 = vmatpush.bf16.msra.mxu0 %v1134
      %1198 = vmatpush.bf16.msra.mxu0 %v1133
      %1199 = vmatpush.bf16.msra.mxu0 %v1132
      %1200 = vmatmul.bf16.gmra.mxu0 %v1016
      %v1201 = vpop.f32.mrf.mxu0
      %v1202 = vadd.f32 %v1188, %v1201
      %v1203 = vpop.f32.mrf.mxu0
      %v1204 = vadd.f32 %v1190, %v1203
      %1205 = vdwg.mxu0
      %v1206 = vadd.f32 %v931, %v1202
      %v1207 = vadd.f32 %v932, %v1204
      %1208 = vst [vmem:[#allocation2] sm:$0xff] %v1206
      %1209 = vst [vmem:[#allocation2 + $0x8] sm:$0xff] %v1207
      %v1210 = vld [vmem:[#allocation2] sm:$0xff]
      %v1211 = vld [vmem:[#allocation2 + $0x8] sm:$0xff]
      %v1212 = vld [vmem:[%s360] sm:$0x1]
      %v1214 = vperm.slane %v1212, 0
      %v1216 = vadd.f32 %v1210, %v1214
      %v1217 = vadd.f32 %v1211, %v1214
      %v1218 = vpack.c.bf16 %v1216, %v1216
      %v1219 = vpack.c.bf16 %v1217, %v1217
      %1220 = vst [vmem:[%s368] sm:$0xf] %v1218
      %1221 = vst [vmem:[%s368 + $0x4] sm:$0xf] %v1219
      %v1222 = vadd.f32 %v1216, %v1217
      %v1223 = vrot.slane %v1222, 4
      %v1224 = vadd.f32 %v1222, %v1223
      %v1225 = vrot.slane %v1224, 2
      %v1226 = vadd.f32 %v1224, %v1225
      %v1227 = vrot.slane %v1226, 1
      %v1228 = vadd.f32 %v1226, %v1227
      %v1229 = vmul.f32 %v1216, %v1216
      %v1230 = vmul.f32 %v1217, %v1217
      %v1231 = vadd.f32 %v1229, %v1230
      %v1232 = vrot.slane %v1231, 4
      %v1233 = vadd.f32 %v1231, %v1232
      %v1234 = vrot.slane %v1233, 2
      %v1235 = vadd.f32 %v1233, %v1234
      %v1236 = vrot.slane %v1235, 1
      %v1237 = vadd.f32 %v1235, %v1236
      %vm1238 = vcmask 1040384
      %v1239 = vsel %vm1238, %v1228, %v1237
      %1240 = vst [vmem:[%s375] sm:$0x3] %v1239
      %p1241 = scmp.lt.s32.totalorder %s22, 7
      %s1242 = scalar_select %p1241, %s22, 7
      %p1243 = scmp.lt.s32.totalorder %s23, 0
      %s1244 = scalar_select %p1243, %s23, 0
      %s1245 = smul.addr %s1242, 2
      %s1246 = sadd.s32 %s1244, %s1245
      %s1247 = smul.addr %s1246, 4
      %s1248 = scalar_lea.vmem %s5, %s1247
      %p1249 = scmp.lt.s32.totalorder %s22, 7
      %s1250 = scalar_select %p1249, %s22, 7
      %p1251 = scmp.lt.s32.totalorder %s23, 0
      %s1252 = scalar_select %p1251, %s23, 0
      %s1253 = sadd.s32 %s1252, %s1250
      %s1254 = smul.addr %s1253, 2
      %s1255 = scalar_lea.vmem %s6, %s1254
      // Predicated region
      $region41: #{res_block.9} parent=39 // pred_check
        %p1256 = pneg %p184
      $region42: #{res_block.9} parent=39 // pred_check_branch
        %1258 = sbr.rel (%p1256) target = $region44
      $region43: #{res_block.9} parent=39 // pred_region
        _
      $region44: #{res_block.9} parent=39 // pred_fallthru
        _
      // Predicated region
      $region45: #{res_block.9} parent=39 // pred_check
        %p1259 = pneg %p212
      $region46: #{res_block.9} parent=39 // pred_check_branch
        %1261 = sbr.rel (%p1259) target = $region48
      $region47: #{res_block.9} parent=39 // pred_region
        _
      $region48: #{res_block.9} parent=39 // pred_fallthru
        _
    $region40: #{res_block.9} parent=5 // pred_fallthru
      _
    %p1262 = scmp.le.s32.totalorder 2, %s13
    // Predicated region
    $region49: #{res_block.9} parent=5 // pred_check
      %p1263 = pneg %p1262
    $region50: #{res_block.9} parent=5 // pred_check_branch
      %1265 = sbr.rel (%p1263) target = $region52
    $region51: #{res_block.9} parent=5 // pred_region
      %s1266 = ssub.s32 %s13, 2
      // Predicated region
      $region53: #{res_block.9} parent=51 // pred_check
        %p1267 = pneg %p190
      $region54: #{res_block.9} parent=51 // pred_check_branch
        %1269 = sbr.rel (%p1267) target = $region56
      $region55: #{res_block.9} parent=51 // pred_region
        %p1270 = scmp.lt.s32.totalorder %s24, 7
        %s1271 = scalar_select %p1270, %s24, 7
        %p1272 = scmp.lt.s32.totalorder %s25, 0
        %s1273 = scalar_select %p1272, %s25, 0
        %s1274 = smul.addr %s1271, 2
        %s1275 = sadd.s32 %s1273, %s1274
        %s1276 = smul.addr %s1275, 4
        %s1277 = scalar_lea.vmem %s5, %s1276
      $region56: #{res_block.9} parent=51 // pred_fallthru
        _
      // Predicated region
      $region57: #{res_block.9} parent=51 // pred_check
        %p1278 = pneg %p218
      $region58: #{res_block.9} parent=51 // pred_check_branch
        %1280 = sbr.rel (%p1278) target = $region60
      $region59: #{res_block.9} parent=51 // pred_region
        %p1281 = scmp.lt.s32.totalorder %s24, 7
        %s1282 = scalar_select %p1281, %s24, 7
        %p1283 = scmp.lt.s32.totalorder %s25, 0
        %s1284 = scalar_select %p1283, %s25, 0
        %s1285 = sadd.s32 %s1284, %s1282
        %s1286 = smul.addr %s1285, 2
        %s1287 = scalar_lea.vmem %s6, %s1286
      $region60: #{res_block.9} parent=51 // pred_fallthru
        _
    $region52: #{res_block.9} parent=5 // pred_fallthru
      _
  $region6: #{res_block.9} parent=0 // loop_footer
    %s17 = sadd.s32 1, %s13
  $region7: #{res_block.9} parent=0 // loop_footer_branch
    %12 = sbr.rel target = $region3
  $region8: #{res_block.9} parent=0 // loop_exit
    _

// kernel: res_block.13
$region0: #{res_block.13}
  #allocation0 [shape = 'u32[]', space=smem, size = 0x4, offset = 0x4, fixed_abs, tag = 'smem constant byte address 0x4 - core index']
  #allocation1 [shape = 'u32[72,128]{1,0:T(1,128)}', space=vmem, size = 0x9000, scoped, tag = 'internal scratch']
  %s0 = inlined_call_operand.vmem [shape: bf16[8,16,128], index: 0, kind: input, shape index: {}]
  %s1 = inlined_call_operand.vmem [shape: bf16[8,16,128], index: 1, kind: input, shape index: {}]
  %s2 = inlined_call_operand.vmem [shape: f32[1,128], index: 2, kind: input, shape index: {}]
  %s3 = inlined_call_operand.vmem [shape: f32[1,128], index: 3, kind: input, shape index: {}]
  %s4 = inlined_call_operand.vmem [shape: f32[1,128], index: 4, kind: input, shape index: {}]
  %s5 = inlined_call_operand.vmem [shape: f32[1,128], index: 5, kind: input, shape index: {}]
  %s6 = inlined_call_operand.vmem [shape: f32[8,16,128], index: 6, kind: output, shape index: {}]
  %s7 = sld [smem:[#allocation0]]
  $region57: #{res_block.13} parent=0
    _
  %s9 = ssub.s32 1, %s7
  %s10 = scalar_select 0, %s9, %s7
  loop: start=0, step=1, limit=10
  $region2: #{res_block.13} parent=0 // loop_pre_header
    _
  $region3: #{res_block.13} parent=0 // loop_header
    %s12 = sphi 0, %s16
    %p13 = scmp.ge.s32.totalorder %s12, 10
    %s22 = sphi 0, %s24
    %s25 = sphi 0, %s22
    %s26 = sphi 0, %s25
    %s42 = sphi 0, %s26
    %s48 = sphi 0, %s50
    %s51 = sphi 0, %s48
    %s52 = sphi 0, %s51
    %s68 = sphi 0, %s52
    %s72 = sphi 0, %s72
    %s74 = sphi 0, %s72
    %s75 = sphi 0, %s74
    %s89 = sphi 0, %s75
    %s93 = sphi 0, %s93
    %s95 = sphi 0, %s93
    %s96 = sphi 0, %s95
    %s110 = sphi 0, %s96
    %s114 = sphi 0, %s114
    %s116 = sphi 0, %s114
    %s117 = sphi 0, %s116
    %s131 = sphi 0, %s117
    %s135 = sphi 0, %s135
    %s137 = sphi 0, %s135
    %s138 = sphi 0, %s137
    %s152 = sphi 0, %s138
    %s158 = sphi 0, %s160
    %s161 = sphi 0, %s158
    %s162 = sphi 0, %s161
    %s178 = sphi 0, %s162
  $region4: #{res_block.13} parent=0 // loop_header_branch
    %15 = sbr.rel (%p13) target = $region8
  $region5: #{res_block.13} parent=0 // loop_body
    %s17 = ssub.s32 %s12, 1
    %s18 = ssub.s32 %s12, 2
    %s19 = sadd.s32 %s12, 1
    %s20 = ssub.s32 %s12, %s19
    %p21 = scmp.eq.s32.totalorder %s20, 0
    %s23 = sadd.s32 %s22, 1
    %s24 = scalar_select %p21, %s22, %s23
    %p27 = pneg %p21
    %p28 = scmp.eq.s32.totalorder %s12, 7
    %p29 = por %p27, %p28
    %p30 = scmp.ne.s32.totalorder %s22, %s25
    %p31 = scmp.eq.s32.totalorder %s12, 0
    %p32 = por %p30, %p31
    %p33 = scmp.ne.s32.totalorder %s22, %s25
    %p34 = scmp.eq.s32.totalorder %s17, 7
    %p35 = por %p33, %p34
    %p36 = scmp.ne.s32.totalorder %s25, %s26
    %p37 = scmp.eq.s32.totalorder %s17, 0
    %p38 = por %p36, %p37
    %p39 = scmp.ne.s32.totalorder %s25, %s26
    %p40 = scmp.eq.s32.totalorder %s18, 7
    %p41 = por %p39, %p40
    %p43 = scmp.ne.s32.totalorder %s26, %s42
    %p44 = scmp.eq.s32.totalorder %s18, 0
    %p45 = por %p43, %p44
    %s46 = ssub.s32 %s12, %s19
    %p47 = scmp.eq.s32.totalorder %s46, 0
    %s49 = sadd.s32 %s48, 1
    %s50 = scalar_select %p47, %s48, %s49
    %p53 = pneg %p47
    %p54 = scmp.eq.s32.totalorder %s12, 7
    %p55 = por %p53, %p54
    %p56 = scmp.ne.s32.totalorder %s48, %s51
    %p57 = scmp.eq.s32.totalorder %s12, 0
    %p58 = por %p56, %p57
    %p59 = scmp.ne.s32.totalorder %s48, %s51
    %p60 = scmp.eq.s32.totalorder %s17, 7
    %p61 = por %p59, %p60
    %p62 = scmp.ne.s32.totalorder %s51, %s52
    %p63 = scmp.eq.s32.totalorder %s17, 0
    %p64 = por %p62, %p63
    %p65 = scmp.ne.s32.totalorder %s51, %s52
    %p66 = scmp.eq.s32.totalorder %s18, 7
    %p67 = por %p65, %p66
    %p69 = scmp.ne.s32.totalorder %s52, %s68
    %p70 = scmp.eq.s32.totalorder %s18, 0
    %p71 = por %p69, %p70
    %s73 = sadd.s32 %s72, 1
    %p76 = scmp.eq.s32.totalorder %s12, 7
    %p77 = scmp.ne.s32.totalorder %s72, %s74
    %p78 = scmp.eq.s32.totalorder %s12, 0
    %p79 = por %p77, %p78
    %p80 = scmp.ne.s32.totalorder %s72, %s74
    %p81 = scmp.eq.s32.totalorder %s17, 7
    %p82 = por %p80, %p81
    %p83 = scmp.ne.s32.totalorder %s74, %s75
    %p84 = scmp.eq.s32.totalorder %s17, 0
    %p85 = por %p83, %p84
    %p86 = scmp.ne.s32.totalorder %s74, %s75
    %p87 = scmp.eq.s32.totalorder %s18, 7
    %p88 = por %p86, %p87
    %p90 = scmp.ne.s32.totalorder %s75, %s89
    %p91 = scmp.eq.s32.totalorder %s18, 0
    %p92 = por %p90, %p91
    %s94 = sadd.s32 %s93, 1
    %p97 = scmp.eq.s32.totalorder %s12, 7
    %p98 = scmp.ne.s32.totalorder %s93, %s95
    %p99 = scmp.eq.s32.totalorder %s12, 0
    %p100 = por %p98, %p99
    %p101 = scmp.ne.s32.totalorder %s93, %s95
    %p102 = scmp.eq.s32.totalorder %s17, 7
    %p103 = por %p101, %p102
    %p104 = scmp.ne.s32.totalorder %s95, %s96
    %p105 = scmp.eq.s32.totalorder %s17, 0
    %p106 = por %p104, %p105
    %p107 = scmp.ne.s32.totalorder %s95, %s96
    %p108 = scmp.eq.s32.totalorder %s18, 7
    %p109 = por %p107, %p108
    %p111 = scmp.ne.s32.totalorder %s96, %s110
    %p112 = scmp.eq.s32.totalorder %s18, 0
    %p113 = por %p111, %p112
    %s115 = sadd.s32 %s114, 1
    %p118 = scmp.eq.s32.totalorder %s12, 7
    %p119 = scmp.ne.s32.totalorder %s114, %s116
    %p120 = scmp.eq.s32.totalorder %s12, 0
    %p121 = por %p119, %p120
    %p122 = scmp.ne.s32.totalorder %s114, %s116
    %p123 = scmp.eq.s32.totalorder %s17, 7
    %p124 = por %p122, %p123
    %p125 = scmp.ne.s32.totalorder %s116, %s117
    %p126 = scmp.eq.s32.totalorder %s17, 0
    %p127 = por %p125, %p126
    %p128 = scmp.ne.s32.totalorder %s116, %s117
    %p129 = scmp.eq.s32.totalorder %s18, 7
    %p130 = por %p128, %p129
    %p132 = scmp.ne.s32.totalorder %s117, %s131
    %p133 = scmp.eq.s32.totalorder %s18, 0
    %p134 = por %p132, %p133
    %s136 = sadd.s32 %s135, 1
    %p139 = scmp.eq.s32.totalorder %s12, 7
    %p140 = scmp.ne.s32.totalorder %s135, %s137
    %p141 = scmp.eq.s32.totalorder %s12, 0
    %p142 = por %p140, %p141
    %p143 = scmp.ne.s32.totalorder %s135, %s137
    %p144 = scmp.eq.s32.totalorder %s17, 7
    %p145 = por %p143, %p144
    %p146 = scmp.ne.s32.totalorder %s137, %s138
    %p147 = scmp.eq.s32.totalorder %s17, 0
    %p148 = por %p146, %p147
    %p149 = scmp.ne.s32.totalorder %s137, %s138
    %p150 = scmp.eq.s32.totalorder %s18, 7
    %p151 = por %p149, %p150
    %p153 = scmp.ne.s32.totalorder %s138, %s152
    %p154 = scmp.eq.s32.totalorder %s18, 0
    %p155 = por %p153, %p154
    %s156 = ssub.s32 %s12, %s19
    %p157 = scmp.eq.s32.totalorder %s156, 0
    %s159 = sadd.s32 %s158, 1
    %s160 = scalar_select %p157, %s158, %s159
    %p163 = pneg %p157
    %p164 = scmp.eq.s32.totalorder %s12, 7
    %p165 = por %p163, %p164
    %p166 = scmp.ne.s32.totalorder %s158, %s161
    %p167 = scmp.eq.s32.totalorder %s12, 0
    %p168 = por %p166, %p167
    %p169 = scmp.ne.s32.totalorder %s158, %s161
    %p170 = scmp.eq.s32.totalorder %s17, 7
    %p171 = por %p169, %p170
    %p172 = scmp.ne.s32.totalorder %s161, %s162
    %p173 = scmp.eq.s32.totalorder %s17, 0
    %p174 = por %p172, %p173
    %p175 = scmp.ne.s32.totalorder %s161, %s162
    %p176 = scmp.eq.s32.totalorder %s18, 7
    %p177 = por %p175, %p176
    %p179 = scmp.ne.s32.totalorder %s162, %s178
    %p180 = scmp.eq.s32.totalorder %s18, 0
    %p181 = por %p179, %p180
    %p182 = scmp.le.s32.totalorder 1, %s12
    %p183 = scmp.lt.s32.totalorder %s12, 9
    %p184 = pnand %p182, %p183
    %p185 = pneg %p184
    // Predicated region
    $region9: #{res_block.13} parent=5 // pred_check
      _
    $region10: #{res_block.13} parent=5 // pred_check_branch
      %187 = sbr.rel (%p184) target = $region12
    $region11: #{res_block.13} parent=5 // pred_region
      %s188 = ssub.s32 %s12, 1
      // Predicated region
      $region13: #{res_block.13} parent=11 // pred_check
        %p189 = pneg %p85
      $region14: #{res_block.13} parent=11 // pred_check_branch
        %191 = sbr.rel (%p189) target = $region16
      $region15: #{res_block.13} parent=11 // pred_region
        _
      $region16: #{res_block.13} parent=11 // pred_fallthru
        _
      // Predicated region
      $region17: #{res_block.13} parent=11 // pred_check
        %p192 = pneg %p106
      $region18: #{res_block.13} parent=11 // pred_check_branch
        %194 = sbr.rel (%p192) target = $region20
      $region19: #{res_block.13} parent=11 // pred_region
        _
      $region20: #{res_block.13} parent=11 // pred_fallthru
        _
      // Predicated region
      $region21: #{res_block.13} parent=11 // pred_check
        %p195 = pneg %p127
      $region22: #{res_block.13} parent=11 // pred_check_branch
        %197 = sbr.rel (%p195) target = $region24
      $region23: #{res_block.13} parent=11 // pred_region
        _
      $region24: #{res_block.13} parent=11 // pred_fallthru
        _
      // Predicated region
      $region25: #{res_block.13} parent=11 // pred_check
        %p198 = pneg %p148
      $region26: #{res_block.13} parent=11 // pred_check_branch
        %200 = sbr.rel (%p198) target = $region28
      $region27: #{res_block.13} parent=11 // pred_region
        _
      $region28: #{res_block.13} parent=11 // pred_fallthru
        _
    $region12: #{res_block.13} parent=5 // pred_fallthru
      _
    %p201 = scmp.lt.s32.totalorder %s12, 8
    // Predicated region
    $region29: #{res_block.13} parent=5 // pred_check
      %p202 = pneg %p201
    $region30: #{res_block.13} parent=5 // pred_check_branch
      %204 = sbr.rel (%p202) target = $region32
    $region31: #{res_block.13} parent=5 // pred_region
      // Predicated region
      $region33: #{res_block.13} parent=31 // pred_check
        %p205 = pneg %p32
      $region34: #{res_block.13} parent=31 // pred_check_branch
        %207 = sbr.rel (%p205) target = $region36
      $region35: #{res_block.13} parent=31 // pred_region
        %p208 = scmp.lt.s32.totalorder %s12, 7
        %s209 = scalar_select %p208, %s12, 7
        %s210 = smul.addr %s209, 2
        %s211 = smul.addr %s210, 4
        %s212 = scalar_lea.vmem %s0, %s211
      $region36: #{res_block.13} parent=31 // pred_fallthru
        _
      // Predicated region
      $region37: #{res_block.13} parent=31 // pred_check
        %p213 = pneg %p58
      $region38: #{res_block.13} parent=31 // pred_check_branch
        %215 = sbr.rel (%p213) target = $region40
      $region39: #{res_block.13} parent=31 // pred_region
        %p216 = scmp.lt.s32.totalorder %s12, 7
        %s217 = scalar_select %p216, %s12, 7
        %s218 = smul.addr %s217, 2
        %s219 = smul.addr %s218, 4
        %s220 = scalar_lea.vmem %s1, %s219
      $region40: #{res_block.13} parent=31 // pred_fallthru
        _
    $region32: #{res_block.13} parent=5 // pred_fallthru
      _
    %p221 = scmp.le.s32.totalorder 1, %s12
    %p222 = scmp.lt.s32.totalorder %s12, 9
    %p223 = pnand %p221, %p222
    %p224 = pneg %p223
    // Predicated region
    $region41: #{res_block.13} parent=5 // pred_check
      _
    $region42: #{res_block.13} parent=5 // pred_check_branch
      %226 = sbr.rel (%p223) target = $region44
    $region43: #{res_block.13} parent=5 // pred_region
      %s227 = ssub.s32 %s12, 1
      %p228 = scmp.lt.s32.totalorder %s17, 7
      %s229 = scalar_select %p228, %s17, 7
      %s230 = smul.addr %s229, 2
      %s231 = smul.addr %s230, 4
      %s232 = scalar_lea.vmem %s0, %s231
      %p233 = pneg %p38
      %p234 = pneg %p35
      %p235 = scmp.lt.s32.totalorder %s17, 7
      %s236 = scalar_select %p235, %s17, 7
      %s237 = smul.addr %s236, 2
      %s238 = smul.addr %s237, 4
      %s239 = scalar_lea.vmem %s1, %s238
      %p240 = pneg %p64
      %p241 = pneg %p61
      %p242 = pneg %p85
      %p243 = pneg %p82
      %p244 = pneg %p106
      %p245 = pneg %p103
      %p246 = pneg %p127
      %p247 = pneg %p124
      %p248 = pneg %p148
      %p249 = pneg %p145
      %p250 = pneg %p174
      %p251 = pneg %p171
      %p252 = scmp.lt.s32.totalorder %s17, 7
      %s253 = scalar_select %p252, %s17, 7
      %s254 = smul.addr %s253, 2
      %s255 = smul.addr %s254, 8
      %s256 = scalar_lea.vmem %s6, %s255
      %p257 = scmp.lt.s32.totalorder %s17, 7
      %s258 = scalar_select %p257, %s17, 7
      %s259 = smul.addr %s258, 2
      %s260 = smul.addr %s259, 4
      %s261 = scalar_lea.vmem %s0, %s260
      %p262 = scmp.lt.s32.totalorder %s17, 7
      %s263 = scalar_select %p262, %s17, 7
      %s264 = smul.addr %s263, 2
      %s265 = smul.addr %s264, 4
      %s266 = scalar_lea.vmem %s1, %s265
      %p267 = scmp.lt.s32.totalorder %s17, 7
      %s268 = scalar_select %p267, %s17, 7
      %s269 = smul.addr %s268, 2
      %s270 = smul.addr %s269, 8
      %s271 = scalar_lea.vmem %s6, %s270
      %v272 = vld [vmem:[%s261] sm:$0xf]
      %v273 = vld [vmem:[%s261 + $0x4] sm:$0xf]
      %v274 = vunpack.c.l.bf16 %v272
      %v275 = vunpack.c.l.bf16 %v273
      %v276 = vld [vmem:[%s2] sm:$0x1]
      %v278 = vperm.slane %v276, 0
      %v280 = vmul.f32 %v274, %v278
      %v281 = vmul.f32 %v275, %v278
      %v282 = vld [vmem:[%s3] sm:$0x1]
      %v284 = vperm.slane %v282, 0
      %v286 = vadd.f32 %v280, %v284
      %v287 = vadd.f32 %v281, %v284
      %v288 = vmax.f32 %v286, 0.0
      %v289 = vmax.f32 %v287, 0.0
      %v290 = vld [vmem:[%s266] sm:$0xf]
      %v291 = vld [vmem:[%s266 + $0x4] sm:$0xf]
      %v292 = vunpack.c.l.bf16 %v290
      %v293 = vunpack.c.l.bf16 %v291
      %v294 = vld [vmem:[%s4] sm:$0x1]
      %v296 = vperm.slane %v294, 0
      %v298 = vmul.f32 %v292, %v296
      %v299 = vmul.f32 %v293, %v296
      %v300 = vld [vmem:[%s5] sm:$0x1]
      %v302 = vperm.slane %v300, 0
      %v304 = vadd.f32 %v298, %v302
      %v305 = vadd.f32 %v299, %v302
      %v306 = vadd.f32 %v288, %v304
      %v307 = vadd.f32 %v289, %v305
      %308 = vst [vmem:[%s271] sm:$0xff] %v306
      %309 = vst [vmem:[%s271 + $0x8] sm:$0xff] %v307
      %p310 = scmp.lt.s32.totalorder %s17, 7
      %s311 = scalar_select %p310, %s17, 7
      %s312 = smul.addr %s311, 2
      %s313 = smul.addr %s312, 8
      %s314 = scalar_lea.vmem %s6, %s313
      // Predicated region
      $region45: #{res_block.13} parent=43 // pred_check
        %p315 = pneg %p171
      $region46: #{res_block.13} parent=43 // pred_check_branch
        %317 = sbr.rel (%p315) target = $region48
      $region47: #{res_block.13} parent=43 // pred_region
        _
      $region48: #{res_block.13} parent=43 // pred_fallthru
        _
    $region44: #{res_block.13} parent=5 // pred_fallthru
      _
    %p318 = scmp.le.s32.totalorder 2, %s12
    // Predicated region
    $region49: #{res_block.13} parent=5 // pred_check
      %p319 = pneg %p318
    $region50: #{res_block.13} parent=5 // pred_check_branch
      %321 = sbr.rel (%p319) target = $region52
    $region51: #{res_block.13} parent=5 // pred_region
      %s322 = ssub.s32 %s12, 2
      // Predicated region
      $region53: #{res_block.13} parent=51 // pred_check
        %p323 = pneg %p177
      $region54: #{res_block.13} parent=51 // pred_check_branch
        %325 = sbr.rel (%p323) target = $region56
      $region55: #{res_block.13} parent=51 // pred_region
        %p326 = scmp.lt.s32.totalorder %s18, 7
        %s327 = scalar_select %p326, %s18, 7
        %s328 = smul.addr %s327, 2
        %s329 = smul.addr %s328, 8
        %s330 = scalar_lea.vmem %s6, %s329
      $region56: #{res_block.13} parent=51 // pred_fallthru
        _
    $region52: #{res_block.13} parent=5 // pred_fallthru
      _
  $region6: #{res_block.13} parent=0 // loop_footer
    %s16 = sadd.s32 1, %s12
  $region7: #{res_block.13} parent=0 // loop_footer_branch
    %11 = sbr.rel target = $region3
  $region8: #{res_block.13} parent=0 // loop_exit
    _

// kernel: res_block.12
$region0: #{res_block.12}
  #allocation0 [shape = 'u32[]', space=smem, size = 0x4, offset = 0x4, fixed_abs, tag = 'smem constant byte address 0x4 - core index']
  #allocation1 [shape = 'u32[72,128]{1,0:T(1,128)}', space=vmem, size = 0x9000, scoped, tag = 'internal scratch']
  #allocation2 [shape = 'f32[16,128]{1,0:T(8,128)}', space=vmem, size = 0x2000, scoped, tag = 'scratch operand']
  %s0 = inlined_call_operand.vmem [shape: bf16[16,32,128], index: 0, kind: input, shape index: {}]
  %s1 = inlined_call_operand.vmem [shape: bf16[1,128,128], index: 1, kind: input, shape index: {}]
  %s2 = inlined_call_operand.vmem [shape: f32[1,128], index: 2, kind: input, shape index: {}]
  %s3 = inlined_call_operand.vmem [shape: bf16[8,16,128], index: 3, kind: output, shape index: {0}]
  %s4 = inlined_call_operand.vmem [shape: f32[8,2,128], index: 4, kind: output, shape index: {1}]
  %5 = xla_tuple %s3, %s4
  %s6 = sld [smem:[#allocation0]]
  $region53: #{res_block.12} parent=0
    _
  %s8 = ssub.s32 1, %s6
  %s9 = scalar_select 0, %s8, %s6
  loop: start=0, step=1, limit=10
  $region2: #{res_block.12} parent=0 // loop_pre_header
    _
  $region3: #{res_block.12} parent=0 // loop_header
    %s11 = sphi 0, %s15
    %p12 = scmp.ge.s32.totalorder %s11, 10
    %s18 = sphi 0, %s30
    %s19 = sphi 0, %s26
    %s20 = sphi 0, %s18
    %s21 = sphi 0, %s19
    %s22 = sphi 0, %s20
    %s23 = sphi 0, %s21
    %s35 = sphi 0, %s37
    %s38 = sphi 0, %s35
    %s39 = sphi 0, %s38
    %s55 = sphi 0, %s39
    %s61 = sphi 0, %s63
    %s64 = sphi 0, %s61
    %s65 = sphi 0, %s64
    %s81 = sphi 0, %s65
    %s87 = sphi 0, %s89
    %s90 = sphi 0, %s87
    %s91 = sphi 0, %s90
    %s107 = sphi 0, %s91
    %s115 = sphi 0, %s117
    %s118 = sphi 0, %s115
    %s119 = sphi 0, %s118
    %s135 = sphi 0, %s119
    %s143 = sphi 0, %s145
    %s146 = sphi 0, %s143
    %s147 = sphi 0, %s146
    %s163 = sphi 0, %s147
  $region4: #{res_block.12} parent=0 // loop_header_branch
    %14 = sbr.rel (%p12) target = $region8
  $region5: #{res_block.12} parent=0 // loop_body
    %s16 = ssub.s32 %s11, 1
    %s17 = ssub.s32 %s11, 2
    %s24 = sadd.s32 1, %s19
    %p25 = scmp.ge.s32.totalorder %s24, 1
    %s26 = scalar_select %p25, 0, %s24
    %s27 = sadd.s32 1, %s18
    %s28 = scalar_select %p25, %s27, %s18
    %p29 = scmp.ge.s32.totalorder %s28, 8
    %s30 = scalar_select %p29, 0, %s28
    %s31 = smul.u32 %s18, 2
    %s32 = smul.u32 %s30, 2
    %s33 = ssub.s32 %s31, %s32
    %p34 = scmp.eq.s32.totalorder %s33, 0
    %s36 = sadd.s32 %s35, 1
    %s37 = scalar_select %p34, %s35, %s36
    %p40 = pneg %p34
    %p41 = scmp.eq.s32.totalorder %s11, 7
    %p42 = por %p40, %p41
    %p43 = scmp.ne.s32.totalorder %s35, %s38
    %p44 = scmp.eq.s32.totalorder %s11, 0
    %p45 = por %p43, %p44
    %p46 = scmp.ne.s32.totalorder %s35, %s38
    %p47 = scmp.eq.s32.totalorder %s16, 7
    %p48 = por %p46, %p47
    %p49 = scmp.ne.s32.totalorder %s38, %s39
    %p50 = scmp.eq.s32.totalorder %s16, 0
    %p51 = por %p49, %p50
    %p52 = scmp.ne.s32.totalorder %s38, %s39
    %p53 = scmp.eq.s32.totalorder %s17, 7
    %p54 = por %p52, %p53
    %p56 = scmp.ne.s32.totalorder %s39, %s55
    %p57 = scmp.eq.s32.totalorder %s17, 0
    %p58 = por %p56, %p57
    %s59 = ssub.s32 %s19, %s26
    %p60 = scmp.eq.s32.totalorder %s59, 0
    %s62 = sadd.s32 %s61, 1
    %s63 = scalar_select %p60, %s61, %s62
    %p66 = pneg %p60
    %p67 = scmp.eq.s32.totalorder %s11, 7
    %p68 = por %p66, %p67
    %p69 = scmp.ne.s32.totalorder %s61, %s64
    %p70 = scmp.eq.s32.totalorder %s11, 0
    %p71 = por %p69, %p70
    %p72 = scmp.ne.s32.totalorder %s61, %s64
    %p73 = scmp.eq.s32.totalorder %s16, 7
    %p74 = por %p72, %p73
    %p75 = scmp.ne.s32.totalorder %s64, %s65
    %p76 = scmp.eq.s32.totalorder %s16, 0
    %p77 = por %p75, %p76
    %p78 = scmp.ne.s32.totalorder %s64, %s65
    %p79 = scmp.eq.s32.totalorder %s17, 7
    %p80 = por %p78, %p79
    %p82 = scmp.ne.s32.totalorder %s65, %s81
    %p83 = scmp.eq.s32.totalorder %s17, 0
    %p84 = por %p82, %p83
    %s85 = ssub.s32 %s19, %s26
    %p86 = scmp.eq.s32.totalorder %s85, 0
    %s88 = sadd.s32 %s87, 1
    %s89 = scalar_select %p86, %s87, %s88
    %p92 = pneg %p86
    %p93 = scmp.eq.s32.totalorder %s11, 7
    %p94 = por %p92, %p93
    %p95 = scmp.ne.s32.totalorder %s87, %s90
    %p96 = scmp.eq.s32.totalorder %s11, 0
    %p97 = por %p95, %p96
    %p98 = scmp.ne.s32.totalorder %s87, %s90
    %p99 = scmp.eq.s32.totalorder %s16, 7
    %p100 = por %p98, %p99
    %p101 = scmp.ne.s32.totalorder %s90, %s91
    %p102 = scmp.eq.s32.totalorder %s16, 0
    %p103 = por %p101, %p102
    %p104 = scmp.ne.s32.totalorder %s90, %s91
    %p105 = scmp.eq.s32.totalorder %s17, 7
    %p106 = por %p104, %p105
    %p108 = scmp.ne.s32.totalorder %s91, %s107
    %p109 = scmp.eq.s32.totalorder %s17, 0
    %p110 = por %p108, %p109
    %s111 = ssub.s32 %s18, %s30
    %s112 = ssub.s32 %s19, %s26
    %s113 = sor.u32 %s111, %s112
    %p114 = scmp.eq.s32.totalorder %s113, 0
    %s116 = sadd.s32 %s115, 1
    %s117 = scalar_select %p114, %s115, %s116
    %p120 = pneg %p114
    %p121 = scmp.eq.s32.totalorder %s11, 7
    %p122 = por %p120, %p121
    %p123 = scmp.ne.s32.totalorder %s115, %s118
    %p124 = scmp.eq.s32.totalorder %s11, 0
    %p125 = por %p123, %p124
    %p126 = scmp.ne.s32.totalorder %s115, %s118
    %p127 = scmp.eq.s32.totalorder %s16, 7
    %p128 = por %p126, %p127
    %p129 = scmp.ne.s32.totalorder %s118, %s119
    %p130 = scmp.eq.s32.totalorder %s16, 0
    %p131 = por %p129, %p130
    %p132 = scmp.ne.s32.totalorder %s118, %s119
    %p133 = scmp.eq.s32.totalorder %s17, 7
    %p134 = por %p132, %p133
    %p136 = scmp.ne.s32.totalorder %s119, %s135
    %p137 = scmp.eq.s32.totalorder %s17, 0
    %p138 = por %p136, %p137
    %s139 = ssub.s32 %s18, %s30
    %s140 = ssub.s32 %s19, %s26
    %s141 = sor.u32 %s139, %s140
    %p142 = scmp.eq.s32.totalorder %s141, 0
    %s144 = sadd.s32 %s143, 1
    %s145 = scalar_select %p142, %s143, %s144
    %p148 = pneg %p142
    %p149 = scmp.eq.s32.totalorder %s11, 7
    %p150 = por %p148, %p149
    %p151 = scmp.ne.s32.totalorder %s143, %s146
    %p152 = scmp.eq.s32.totalorder %s11, 0
    %p153 = por %p151, %p152
    %p154 = scmp.ne.s32.totalorder %s143, %s146
    %p155 = scmp.eq.s32.totalorder %s16, 7
    %p156 = por %p154, %p155
    %p157 = scmp.ne.s32.totalorder %s146, %s147
    %p158 = scmp.eq.s32.totalorder %s16, 0
    %p159 = por %p157, %p158
    %p160 = scmp.ne.s32.totalorder %s146, %s147
    %p161 = scmp.eq.s32.totalorder %s17, 7
    %p162 = por %p160, %p161
    %p164 = scmp.ne.s32.totalorder %s147, %s163
    %p165 = scmp.eq.s32.totalorder %s17, 0
    %p166 = por %p164, %p165
    %p167 = scmp.le.s32.totalorder 1, %s11
    %p168 = scmp.lt.s32.totalorder %s11, 9
    %p169 = pnand %p167, %p168
    %p170 = pneg %p169
    // Predicated region
    $region9: #{res_block.12} parent=5 // pred_check
      _
    $region10: #{res_block.12} parent=5 // pred_check_branch
      %172 = sbr.rel (%p169) target = $region12
    $region11: #{res_block.12} parent=5 // pred_region
      %s173 = ssub.s32 %s11, 1
      // Predicated region
      $region13: #{res_block.12} parent=11 // pred_check
        %p174 = pneg %p77
      $region14: #{res_block.12} parent=11 // pred_check_branch
        %176 = sbr.rel (%p174) target = $region16
      $region15: #{res_block.12} parent=11 // pred_region
        %p177 = scmp.lt.s32.totalorder %s21, 0
        %s178 = scalar_select %p177, %s21, 0
        %s179 = smul.addr %s178, 4
        %s180 = scalar_lea.vmem %s1, %s179
      $region16: #{res_block.12} parent=11 // pred_fallthru
        _
      // Predicated region
      $region17: #{res_block.12} parent=11 // pred_check
        %p181 = pneg %p103
      $region18: #{res_block.12} parent=11 // pred_check_branch
        %183 = sbr.rel (%p181) target = $region20
      $region19: #{res_block.12} parent=11 // pred_region
        %p184 = scmp.lt.s32.totalorder %s21, 0
        %s185 = scalar_select %p184, %s21, 0
        %s186 = scalar_lea.vmem %s2, %s185
      $region20: #{res_block.12} parent=11 // pred_fallthru
        _
    $region12: #{res_block.12} parent=5 // pred_fallthru
      _
    %p187 = scmp.lt.s32.totalorder %s11, 8
    // Predicated region
    $region21: #{res_block.12} parent=5 // pred_check
      %p188 = pneg %p187
    $region22: #{res_block.12} parent=5 // pred_check_branch
      %190 = sbr.rel (%p188) target = $region24
    $region23: #{res_block.12} parent=5 // pred_region
      // Predicated region
      $region25: #{res_block.12} parent=23 // pred_check
        %p191 = pneg %p45
      $region26: #{res_block.12} parent=23 // pred_check_branch
        %193 = sbr.rel (%p191) target = $region28
      $region27: #{res_block.12} parent=23 // pred_region
        %s194 = smul.u32 %s18, 2
        %p195 = scmp.lt.s32.totalorder %s194, 15
        %s196 = scalar_select %p195, %s194, 15
        %s197 = smul.addr %s196, 4
        %s198 = smul.addr %s197, 4
        %s199 = scalar_lea.vmem %s0, %s198
        %s200 = smul.u32 %s18, 2
      $region28: #{res_block.12} parent=23 // pred_fallthru
        _
    $region24: #{res_block.12} parent=5 // pred_fallthru
      _
    %p201 = scmp.le.s32.totalorder 1, %s11
    %p202 = scmp.lt.s32.totalorder %s11, 9
    %p203 = pnand %p201, %p202
    %p204 = pneg %p203
    // Predicated region
    $region29: #{res_block.12} parent=5 // pred_check
      _
    $region30: #{res_block.12} parent=5 // pred_check_branch
      %206 = sbr.rel (%p203) target = $region32
    $region31: #{res_block.12} parent=5 // pred_region
      %s207 = ssub.s32 %s11, 1
      %s208 = smul.u32 %s20, 2
      %p209 = scmp.lt.s32.totalorder %s208, 15
      %s210 = scalar_select %p209, %s208, 15
      %s211 = smul.addr %s210, 4
      %s212 = smul.addr %s211, 4
      %s213 = scalar_lea.vmem %s0, %s212
      %p214 = pneg %p51
      %p215 = pneg %p48
      %p216 = scmp.lt.s32.totalorder %s21, 0
      %s217 = scalar_select %p216, %s21, 0
      %s218 = smul.addr %s217, 4
      %s219 = scalar_lea.vmem %s1, %s218
      %p220 = pneg %p77
      %p221 = pneg %p74
      %p222 = scmp.lt.s32.totalorder %s21, 0
      %s223 = scalar_select %p222, %s21, 0
      %s224 = scalar_lea.vmem %s2, %s223
      %p225 = pneg %p103
      %p226 = pneg %p100
      %p227 = pneg %p131
      %p228 = pneg %p128
      %p229 = scmp.lt.s32.totalorder %s20, 7
      %s230 = scalar_select %p229, %s20, 7
      %p231 = scmp.lt.s32.totalorder %s21, 0
      %s232 = scalar_select %p231, %s21, 0
      %s233 = smul.addr %s230, 2
      %s234 = sadd.s32 %s232, %s233
      %s235 = smul.addr %s234, 4
      %s236 = scalar_lea.vmem %s3, %s235
      %p237 = pneg %p159
      %p238 = pneg %p156
      %p239 = scmp.lt.s32.totalorder %s20, 7
      %s240 = scalar_select %p239, %s20, 7
      %p241 = scmp.lt.s32.totalorder %s21, 0
      %s242 = scalar_select %p241, %s21, 0
      %s243 = sadd.s32 %s242, %s240
      %s244 = smul.addr %s243, 2
      %s245 = scalar_lea.vmem %s4, %s244
      %s246 = smul.u32 %s20, 2
      %p247 = scmp.lt.s32.totalorder %s246, 15
      %s248 = scalar_select %p247, %s246, 15
      %s249 = smul.addr %s248, 4
      %s250 = smul.addr %s249, 4
      %s251 = scalar_lea.vmem %s0, %s250
      %s252 = smul.u32 %s20, 2
      %p253 = scmp.lt.s32.totalorder %s21, 0
      %s254 = scalar_select %p253, %s21, 0
      %s255 = smul.addr %s254, 4
      %s256 = scalar_lea.vmem %s1, %s255
      %p257 = scmp.lt.s32.totalorder %s21, 0
      %s258 = scalar_select %p257, %s21, 0
      %s259 = scalar_lea.vmem %s2, %s258
      %p260 = scmp.lt.s32.totalorder %s20, 7
      %s261 = scalar_select %p260, %s20, 7
      %p262 = scmp.lt.s32.totalorder %s21, 0
      %s263 = scalar_select %p262, %s21, 0
      %s264 = smul.addr %s261, 2
      %s265 = sadd.s32 %s263, %s264
      %s266 = smul.addr %s265, 4
      %s267 = scalar_lea.vmem %s3, %s266
      %p268 = scmp.lt.s32.totalorder %s20, 7
      %s269 = scalar_select %p268, %s20, 7
      %p270 = scmp.lt.s32.totalorder %s21, 0
      %s271 = scalar_select %p270, %s21, 0
      %s272 = sadd.s32 %s271, %s269
      %s273 = smul.addr %s272, 2
      %s274 = scalar_lea.vmem %s4, %s273
      %v275 = vld [vmem:[%s251] sm:$0xf]
      %v276 = vld [vmem:[%s251 + $0x4] sm:$0xf]
      %v277 = vld [vmem:[%s256] sm:$0xf]
      %v278 = vld [vmem:[%s256 + $0x4] sm:$0xf]
      %v279 = vld [vmem:[%s256 + $0x8] sm:$0xf]
      %v280 = vld [vmem:[%s256 + $0xc] sm:$0xf]
      %v281 = vld [vmem:[%s256 + $0x10] sm:$0xf]
      %v282 = vld [vmem:[%s256 + $0x14] sm:$0xf]
      %v283 = vld [vmem:[%s256 + $0x18] sm:$0xf]
      %v284 = vld [vmem:[%s256 + $0x1c] sm:$0xf]
      %v285 = vld [vmem:[%s256 + $0x20] sm:$0xf]
      %v286 = vld [vmem:[%s256 + $0x24] sm:$0xf]
      %v287 = vld [vmem:[%s256 + $0x28] sm:$0xf]
      %v288 = vld [vmem:[%s256 + $0x2c] sm:$0xf]
      %v289 = vld [vmem:[%s256 + $0x30] sm:$0xf]
      %v290 = vld [vmem:[%s256 + $0x34] sm:$0xf]
      %v291 = vld [vmem:[%s256 + $0x38] sm:$0xf]
      %v292 = vld [vmem:[%s256 + $0x3c] sm:$0xf]
      %v295 = vunpack.c.l.b16 %v275
      %v296 = vunpack.c.l.b16 %v276
      %v297 = vpack.c.b16 %v296, %v295
      %v315 = vunpack.c.l.b16 %v277
      %v316 = vunpack.c.l.b16 %v278
      %v317 = vunpack.c.l.b16 %v279
      %v318 = vunpack.c.l.b16 %v280
      %v319 = vunpack.c.l.b16 %v281
      %v320 = vunpack.c.l.b16 %v282
      %v321 = vunpack.c.l.b16 %v283
      %v322 = vunpack.c.l.b16 %v284
      %v323 = vunpack.c.l.b16 %v285
      %v324 = vunpack.c.l.b16 %v286
      %v325 = vunpack.c.l.b16 %v287
      %v326 = vunpack.c.l.b16 %v288
      %v327 = vunpack.c.l.b16 %v289
      %v328 = vunpack.c.l.b16 %v290
      %v329 = vunpack.c.l.b16 %v291
      %v330 = vunpack.c.l.b16 %v292
      %v331 = vpack.c.b16 %v316, %v315
      %v332 = vpack.c.b16 %v318, %v317
      %v333 = vpack.c.b16 %v320, %v319
      %v334 = vpack.c.b16 %v322, %v321
      %v335 = vpack.c.b16 %v324, %v323
      %v336 = vpack.c.b16 %v326, %v325
      %v337 = vpack.c.b16 %v328, %v327
      %v338 = vpack.c.b16 %v330, %v329
      %347 = vmatpush.bf16.msra.mxu0 %v338
      %348 = vmatpush.bf16.msra.mxu0 %v337
      %349 = vmatpush.bf16.msra.mxu0 %v336
      %350 = vmatpush.bf16.msra.mxu0 %v335
      %351 = vmatpush.bf16.msra.mxu0 %v334
      %352 = vmatpush.bf16.msra.mxu0 %v333
      %353 = vmatpush.bf16.msra.mxu0 %v332
      %354 = vmatpush.bf16.msra.mxu0 %v331
      %355 = vmatmul.bf16.gmra.mxu0 %v297
      %v356 = vpop.f32.mrf.mxu0
      %v357 = vadd.f32 0.0, %v356
      %v358 = vpop.f32.mrf.mxu0
      %v359 = vadd.f32 0.0, %v358
      %360 = vdwg.mxu0
      %361 = vst [vmem:[#allocation2] sm:$0xff] %v357
      %362 = vst [vmem:[#allocation2 + $0x8] sm:$0xff] %v359
      %v363 = vld [vmem:[#allocation2] sm:$0xff]
      %v364 = vld [vmem:[#allocation2 + $0x8] sm:$0xff]
      %v365 = vld [vmem:[%s259] sm:$0x1]
      %v367 = vperm.slane %v365, 0
      %v369 = vadd.f32 %v363, %v367
      %v370 = vadd.f32 %v364, %v367
      %v371 = vpack.c.bf16 %v369, %v369
      %v372 = vpack.c.bf16 %v370, %v370
      %373 = vst [vmem:[%s267] sm:$0xf] %v371
      %374 = vst [vmem:[%s267 + $0x4] sm:$0xf] %v372
      %v375 = vadd.f32 %v369, %v370
      %v376 = vrot.slane %v375, 4
      %v377 = vadd.f32 %v375, %v376
      %v378 = vrot.slane %v377, 2
      %v379 = vadd.f32 %v377, %v378
      %v380 = vrot.slane %v379, 1
      %v381 = vadd.f32 %v379, %v380
      %v382 = vmul.f32 %v369, %v369
      %v383 = vmul.f32 %v370, %v370
      %v384 = vadd.f32 %v382, %v383
      %v385 = vrot.slane %v384, 4
      %v386 = vadd.f32 %v384, %v385
      %v387 = vrot.slane %v386, 2
      %v388 = vadd.f32 %v386, %v387
      %v389 = vrot.slane %v388, 1
      %v390 = vadd.f32 %v388, %v389
      %vm391 = vcmask 1040384
      %v392 = vsel %vm391, %v381, %v390
      %393 = vst [vmem:[%s274] sm:$0x3] %v392
      %p394 = scmp.lt.s32.totalorder %s20, 7
      %s395 = scalar_select %p394, %s20, 7
      %p396 = scmp.lt.s32.totalorder %s21, 0
      %s397 = scalar_select %p396, %s21, 0
      %s398 = smul.addr %s395, 2
      %s399 = sadd.s32 %s397, %s398
      %s400 = smul.addr %s399, 4
      %s401 = scalar_lea.vmem %s3, %s400
      %p402 = scmp.lt.s32.totalorder %s20, 7
      %s403 = scalar_select %p402, %s20, 7
      %p404 = scmp.lt.s32.totalorder %s21, 0
      %s405 = scalar_select %p404, %s21, 0
      %s406 = sadd.s32 %s405, %s403
      %s407 = smul.addr %s406, 2
      %s408 = scalar_lea.vmem %s4, %s407
      // Predicated region
      $region33: #{res_block.12} parent=31 // pred_check
        %p409 = pneg %p128
      $region34: #{res_block.12} parent=31 // pred_check_branch
        %411 = sbr.rel (%p409) target = $region36
      $region35: #{res_block.12} parent=31 // pred_region
        _
      $region36: #{res_block.12} parent=31 // pred_fallthru
        _
      // Predicated region
      $region37: #{res_block.12} parent=31 // pred_check
        %p412 = pneg %p156
      $region38: #{res_block.12} parent=31 // pred_check_branch
        %414 = sbr.rel (%p412) target = $region40
      $region39: #{res_block.12} parent=31 // pred_region
        _
      $region40: #{res_block.12} parent=31 // pred_fallthru
        _
    $region32: #{res_block.12} parent=5 // pred_fallthru
      _
    %p415 = scmp.le.s32.totalorder 2, %s11
    // Predicated region
    $region41: #{res_block.12} parent=5 // pred_check
      %p416 = pneg %p415
    $region42: #{res_block.12} parent=5 // pred_check_branch
      %418 = sbr.rel (%p416) target = $region44
    $region43: #{res_block.12} parent=5 // pred_region
      %s419 = ssub.s32 %s11, 2
      // Predicated region
      $region45: #{res_block.12} parent=43 // pred_check
        %p420 = pneg %p134
      $region46: #{res_block.12} parent=43 // pred_check_branch
        %422 = sbr.rel (%p420) target = $region48
      $region47: #{res_block.12} parent=43 // pred_region
        %p423 = scmp.lt.s32.totalorder %s22, 7
        %s424 = scalar_select %p423, %s22, 7
        %p425 = scmp.lt.s32.totalorder %s23, 0
        %s426 = scalar_select %p425, %s23, 0
        %s427 = smul.addr %s424, 2
        %s428 = sadd.s32 %s426, %s427
        %s429 = smul.addr %s428, 4
        %s430 = scalar_lea.vmem %s3, %s429
      $region48: #{res_block.12} parent=43 // pred_fallthru
        _
      // Predicated region
      $region49: #{res_block.12} parent=43 // pred_check
        %p431 = pneg %p162
      $region50: #{res_block.12} parent=43 // pred_check_branch
        %433 = sbr.rel (%p431) target = $region52
      $region51: #{res_block.12} parent=43 // pred_region
        %p434 = scmp.lt.s32.totalorder %s22, 7
        %s435 = scalar_select %p434, %s22, 7
        %p436 = scmp.lt.s32.totalorder %s23, 0
        %s437 = scalar_select %p436, %s23, 0
        %s438 = sadd.s32 %s437, %s435
        %s439 = smul.addr %s438, 2
        %s440 = scalar_lea.vmem %s4, %s439
      $region52: #{res_block.12} parent=43 // pred_fallthru
        _
    $region44: #{res_block.12} parent=5 // pred_fallthru
      _
  $region6: #{res_block.12} parent=0 // loop_footer
    %s15 = sadd.s32 1, %s11
  $region7: #{res_block.12} parent=0 // loop_footer_branch
    %10 = sbr.rel target = $region3
  $region8: #{res_block.12} parent=0 // loop_exit
    _

</llo_original>
